<compile_context>
chip_gen: v7x
topology: tpu7x:2x2x1
jax: 0.10.0
libtpu: 0.0.40
codegen_flags: <defaults>
</compile_context>

<pallas_src>
import jax
import jax.numpy as jnp
from jax import lax
from jax.experimental import pallas as pl
from jax.experimental.pallas import tpu as pltpu


def _round_up(x, m):
    return ((x + m - 1) // m) * m


def _heads_per_group(H, N):
    """Largest divisor G of H with G*N <= 128 (lane-dense head packing)."""
    gmax = max(1, 128 // N) if N <= 128 else 1
    g = 1
    for cand in range(1, min(H, gmax) + 1):
        if H % cand == 0:
            g = cand
    return g


# --------------------------------------------------------------------------
# Pallas kernel: one (batch, outer-chunk) step of the RWKV6 WKV recurrence.
#
# Serial semantics (per head, state S[i, j], i=value chan, j=key chan,
# d = exp(-exp(w))):
#   y[t,i] = sum_j r[t,j] * (u[j]*k[t,j]*v[t,i] + S[i,j])
#   S[i,j] = S[i,j]*d[t,j] + k[t,j]*v[t,i]
#
# Chunked reformulation within a sub-block (A_t = prod_{s<t} d_s):
#   y      = (r*A) @ S^T  +  causal(R~ K~^T) @ V  +  (r.u*k blockdiag-sum) * v
#   S_new  = S * A_L  +  blockdiag(V^T (k * A_L / A_{t+1}))
# --------------------------------------------------------------------------
def _make_wkv6_kernel(n_sub, Ls, n_groups, G, Cg, ew_cap):
    def kernel(r_ref, k_ref, v_ref, w_ref, u_ref,
               tri_ref, causal_ref, hmcc_ref, hmlc_ref, s0_ref,
               y_ref, st_ref):
        # Constant tiles (constant index_map -> stay VMEM resident).
        tri = tri_ref[...]                       # (Ls, Ls) inclusive lower-tri ones
        causal = causal_ref[...] > 0.5           # (Ls, G*Ls) strict causal per head col-block
        hm_cc = hmcc_ref[...]                    # (Cg, Cg) block-diag head mask
        hm_lc = hmlc_ref[...]                    # (G*Ls, Cg) row-head == col-head mask
        u = u_ref[...]                           # (1, C)

        # (Re)load the shared initial state at the first chunk of every sequence.
        @pl.when(pl.program_id(1) == 0)
        def _init():
            st_ref[...] = s0_ref[...]

        # ---- two-level chunking: L = n_sub * Ls timesteps per grid step ----
        for sub in range(n_sub):
            t0 = sub * Ls
            r = r_ref[t0:t0 + Ls, :].astype(jnp.float32)     # (Ls, C)
            k = k_ref[t0:t0 + Ls, :].astype(jnp.float32)
            v = v_ref[t0:t0 + Ls, :].astype(jnp.float32)
            w = w_ref[t0:t0 + Ls, :].astype(jnp.float32)

            # Decay exponent, clamped so the mid-shifted exponents stay inside
            # f32 range (max exponent <= ew_cap*(Ls/2+1) ~ 70).  The clamp
            # only bites for w > log(ew_cap) ~ 2 (never for RWKV decays); the
            # serial reference only ever evaluates exp(-exp(w)) and underflows.
            ew = jnp.minimum(jnp.exp(w), ew_cap)             # full-tile exp #1
            # Inclusive cumulative sum over time as one small MXU matmul.
            cs = jnp.dot(tri, ew, preferred_element_type=jnp.float32)
            cs_last = cs[Ls - 1:Ls, :]                       # (1, C) total exponent
            cs_mid = cs[Ls // 2:Ls // 2 + 1, :]              # (1, C) stability shift

            decay_in = jnp.exp(ew - cs)                      # full-tile exp #2: A_t
            grow = jnp.exp(cs - cs_mid)                      # full-tile exp #3
            r_state = r * decay_in                           # r_t * A_t   (state path)
            r_intra = r_state * jnp.exp(cs_mid)              # (1,C)-exp broadcast
            k_intra = k * grow
            k_state = k_intra * jnp.exp(cs_mid - cs_last)    # k_s * A_L / A_{s+1}
            a_last = jnp.exp(-cs_last)                       # A_L          (1, C)
            ruk = r * u * k                                  # current-step bonus

            # ---- per head-group: G heads packed to Cg = G*N <= 128 lanes ----
            for g in range(n_groups):
                sl = slice(g * Cg, (g + 1) * Cg)
                S = st_ref[g]                                # (Cg, Cg) block-diag state
                rs, ri = r_state[:, sl], r_intra[:, sl]
                ki, ks = k_intra[:, sl], k_state[:, sl]
                vg = v[:, sl]

                # Carried-state term: y[t,(h,i)] += sum_j r~[t,(h,j)] S[(h,i),(h,j)]
                y = lax.dot_general(rs, S, (((1,), (1,)), ((), ())),
                                    preferred_element_type=jnp.float32)

                # Intra-sub-block causal attention for all G heads of the
                # group, packed into two lane-dense matmuls via head masks.
                if G > 1:
                    k_t = jnp.concatenate([ki] * G, axis=0) * hm_lc   # (G*Ls, Cg)
                    v_t = jnp.concatenate([vg] * G, axis=0) * hm_lc
                else:
                    k_t, v_t = ki, vg
                att = lax.dot_general(ri, k_t, (((1,), (1,)), ((), ())),
                                      preferred_element_type=jnp.float32)  # (Ls, G*Ls)
                # Masked-out entries can be inf/nan (over-range exponents):
                # select, never multiply-by-zero.
                att = jnp.where(causal, att, 0.0)
                y = y + jnp.dot(att, v_t, preferred_element_type=jnp.float32)

                # Current-step bonus: per-head row-sum of r*u*k as one matmul
                # against the block-diag ones mask (no XLU reductions).
                y = y + jnp.dot(ruk[:, sl], hm_cc,
                                preferred_element_type=jnp.float32) * vg

                # Single lane-dense (Ls, Cg) store per sub-block / head group.
                y_ref[t0:t0 + Ls, sl] = y.astype(y_ref.dtype)

                # State update: S' = S * A_L (per key column) + blockdiag(V^T K~)
                kv = lax.dot_general(vg, ks, (((0,), (0,)), ((), ())),
                                     preferred_element_type=jnp.float32)   # (Cg, Cg)
                st_ref[g] = S * a_last[:, sl] + kv * hm_cc

    return kernel


def run_wkv6(r, k, v, w, u, s, *, chunk_size=64, sub_block=16):
    """r,k,v,w: (B,T,C); u: (H,N); s: (H,N,N) -> (B,T,C) in r.dtype.

    chunk_size: outer chunk per grid step (raise to 128+ for long sequences).
    sub_block : inner numerically-safe sub-block length (multiple of 8).
    """
    B, T, C = r.shape
    H, N = u.shape
    assert H * N == C

    Ls = max(8, _round_up(sub_block, 8))
    L = min(_round_up(chunk_size, Ls), _round_up(T, Ls))     # outer chunk length
    n_sub = L // Ls
    T_pad = _round_up(T, L)
    if T_pad != T:
        # End-of-sequence padding never affects real outputs (causal recurrence,
        # final state is not returned).
        pad = ((0, 0), (0, T_pad - T), (0, 0))
        r, k, v, w = [jnp.pad(a, pad) for a in (r, k, v, w)]
    n_chunks = T_pad // L

    # Head packing: G heads -> one lane-dense group of Cg = G*N channels.
    G = _heads_per_group(H, N)
    Cg = G * N
    n_groups = H // G

    # Decay math stays f32; r/k/v stream in their native dtype (bf16 supported).
    w = w.astype(jnp.float32)
    u2 = u.reshape(1, C).astype(jnp.float32)

    # Block-diagonal initial state per group: Sbd[g, h*N+i, h*N+j] = s[hG+h,i,j]
    s_g = s.astype(jnp.float32).reshape(n_groups, G, N, N)
    s_bd = jnp.zeros((n_groups, Cg, Cg), jnp.float32)
    for h in range(G):
        s_bd = s_bd.at[:, h * N:(h + 1) * N, h * N:(h + 1) * N].set(s_g[:, h])

    # Constant masks (hoisted out of the kernel body; VMEM-resident).
    t_idx = jnp.arange(Ls)
    tri = (t_idx[:, None] >= t_idx[None, :]).astype(jnp.float32)        # (Ls, Ls)
    strict = (t_idx[:, None] > t_idx[None, :]).astype(jnp.float32)
    causal = jnp.tile(strict, (1, G))                                    # (Ls, G*Ls)
    head_of_c = jnp.arange(Cg) // N
    hm_cc = (head_of_c[:, None] == head_of_c[None, :]).astype(jnp.float32)  # (Cg, Cg)
    row_head = jnp.repeat(jnp.arange(G), Ls)
    hm_lc = (row_head[:, None] == head_of_c[None, :]).astype(jnp.float32)   # (G*Ls, Cg)

    ew_cap = 70.0 / (Ls // 2 + 1)

    kernel = _make_wkv6_kernel(n_sub, Ls, n_groups, G, Cg, ew_cap)

    io_itm = jnp.dtype(r.dtype).itemsize
    # VMEM budget: double-buffered streams + constants + state (input & scratch).
    stream = 2 * L * C * (3 * io_itm + 4 + io_itm)
    consts = 4 * (Ls * Ls + Ls * G * Ls + Cg * Cg + G * Ls * Cg + C)
    state = 4 * 2 * n_groups * Cg * Cg
    vmem_limit = int(min(48 * 2 ** 20, max(24 * 2 ** 20, 4 * (stream + consts + state))))

    cost = pl.CostEstimate(
        flops=int(2 * B * T_pad * C * (3 * Cg + 2 * G * Ls + Ls)),
        transcendentals=int(3 * B * T_pad * C),
        bytes_accessed=int(B * T_pad * C * (4 * io_itm + 4) + 4 * B * n_groups * Cg * Cg),
    )

    io_blk = lambda: pl.BlockSpec((None, L, C), lambda b, c: (b, c, 0))

    y = pl.pallas_call(
        kernel,
        out_shape=jax.ShapeDtypeStruct((B, T_pad, C), r.dtype),
        grid=(B, n_chunks),
        in_specs=[
            io_blk(), io_blk(), io_blk(), io_blk(),                     # r, k, v, w
            pl.BlockSpec((1, C), lambda b, c: (0, 0)),                  # u
            pl.BlockSpec((Ls, Ls), lambda b, c: (0, 0)),                # tri
            pl.BlockSpec((Ls, G * Ls), lambda b, c: (0, 0)),            # causal mask
            pl.BlockSpec((Cg, Cg), lambda b, c: (0, 0)),                # head mask (CC)
            pl.BlockSpec((G * Ls, Cg), lambda b, c: (0, 0)),            # head mask (LC)
            pl.BlockSpec((n_groups, Cg, Cg), lambda b, c: (0, 0, 0)),   # initial state
        ],
        out_specs=io_blk(),
        scratch_shapes=[pltpu.VMEM((n_groups, Cg, Cg), jnp.float32)],   # carried state
        compiler_params=pltpu.CompilerParams(
            dimension_semantics=("parallel", "arbitrary"),
            vmem_limit_bytes=vmem_limit),
        cost_estimate=cost,
    )(r, k, v, w, u2, tri, causal, hm_cc, hm_lc, s_bd)

    return y[:, :T, :] if T_pad != T else y


# Pure-JAX reference for the recurrence (correctness check of the kernel).
def run_wkv6_ref(r, k, v, w, u, s):
    B, T, C = r.shape
    H, N = u.shape
    r4 = r.reshape(B, T, H, N)
    k4 = k.reshape(B, T, H, N)
    v4 = v.reshape(B, T, H, N)
    d4 = jnp.exp(-jnp.exp(w.reshape(B, T, H, N)))
    S0 = jnp.broadcast_to(s[None], (B, H, N, N))

    def step(S, xs):
        r_t, k_t, v_t, d_t = xs                           # each (B,H,N)
        att = S + v_t[..., :, None] * (u[None] * k_t)[..., None, :]
        y_t = jnp.sum(att * r_t[..., None, :], axis=-1)
        S = S * d_t[..., None, :] + v_t[..., :, None] * k_t[..., None, :]
        return S, y_t

    xs = tuple(jnp.moveaxis(a, 1, 0) for a in (r4, k4, v4, d4))
    _, ys = lax.scan(step, S0, xs)
    return jnp.moveaxis(ys, 0, 1).reshape(B, T, C)


# --------------------------------------------------------------------------
# Plain-JAX glue reproducing the rest of RWKV_Tmix_x060.forward
# --------------------------------------------------------------------------
def _layer_norm(x, g, b, eps=1e-5):
    m = x.mean(-1, keepdims=True)
    v = x.var(-1, keepdims=True)
    return (x - m) / jnp.sqrt(v + eps) * g + b


def rwkv_tmix_x060_forward(p, x, wkv_fn):
    B, T, C = x.shape
    H, N = p["time_faaaa"].shape

    # ---- StateEncoder (bf16 params, compute in f32) ----
    es = p["encoded_state"].astype(jnp.float32)                      # (H, 64)
    h1 = es @ p["sp1_w"].astype(jnp.float32).T + p["sp1_b"].astype(jnp.float32)
    h1 = jnp.tanh(_layer_norm(h1, p["ln1_g"].astype(jnp.float32),
                              p["ln1_b"].astype(jnp.float32)))
    h2 = h1 @ p["sp2_w"].astype(jnp.float32).T + p["sp2_b"].astype(jnp.float32)
    h2 = _layer_norm(h2, p["ln2_g"].astype(jnp.float32),
                     p["ln2_b"].astype(jnp.float32))
    state = h2.reshape(H, N, N)                                      # (H,N,N)

    # ---- jit_func: token shift + data-dependent time mixing ----
    tss = jnp.broadcast_to(p["token_shift_state"].astype(jnp.float32)[None],
                           (B, 1, C))
    x_shift = jnp.concatenate([tss, x[:, :-1, :]], axis=1)
    xx = x_shift - x
    xxx = x + xx * p["time_maa_x"]
    tm = jnp.tanh(xxx @ p["time_maa_w1"])                            # (B,T,5E)
    E = p["time_maa_w2"].shape[1]
    tm = tm.reshape(B * T, 5, E).transpose(1, 0, 2)                  # (5,BT,E)
    tm = jnp.einsum("sbe,sec->sbc", tm, p["time_maa_w2"]).reshape(5, B, T, C)
    mw, mk, mv, mr, mg = tm[0], tm[1], tm[2], tm[3], tm[4]
    xw = x + xx * (p["time_maa_w"] + mw)
    xk = x + xx * (p["time_maa_k"] + mk)
    xv = x + xx * (p["time_maa_v"] + mv)
    xr = x + xx * (p["time_maa_r"] + mr)
    xg = x + xx * (p["time_maa_g"] + mg)

    r = xr @ p["Wr"].T
    k = xk @ p["Wk"].T
    v = xv @ p["Wv"].T
    g_lin = xg @ p["Wg"].T
    g = g_lin * jax.nn.sigmoid(g_lin)                                # SiLU
    ww = jnp.tanh(xw @ p["time_decay_w1"]) @ p["time_decay_w2"]
    w = p["time_decay"] + ww

    # ---- WKV recurrence (Pallas hot path) ----
    y = wkv_fn(r, k, v, w, p["time_faaaa"], state)                   # (B,T,A)

    # ---- jit_func_2: GroupNorm(H groups) + gate + output proj ----
    eps = 1e-5 * p["head_size_divisor"] ** 2
    yh = y.astype(jnp.float32).reshape(B * T, H, N)
    mean = yh.mean(-1, keepdims=True)
    var = yh.var(-1, keepdims=True)
    yn = (yh - mean) / jnp.sqrt(var + eps)
    yn = yn.reshape(B * T, C) * p["gn_w"] + p["gn_b"]
    out = (yn.reshape(B, T, C) * g) @ p["Wo"].T
    return out


# --------------------------------------------------------------------------
# Deterministic parameter construction (mirrors the module's __init__ shapes)
# --------------------------------------------------------------------------
def init_params(key, args):
    C = args["n_embd"]; A = args["dim_att"]; N = args["head_size_a"]
    H = A // N; L = args["n_layer"]; lid = args["layer_id"]
    TIME_MIX_EXTRA_DIM, TIME_DECAY_EXTRA_DIM = 32, 64
    ENC_DIM, DIM_FACTOR = 64, 8
    hid = ENC_DIM * DIM_FACTOR

    r0 = lid / (L - 1)
    r1 = 1.0 - lid / L
    ddd = (jnp.arange(C, dtype=jnp.float32) / C).reshape(1, 1, C)
    nA = jnp.arange(A, dtype=jnp.float32)
    decay_speed = -6.0 + 5.0 * (nA / (A - 1)) ** (0.7 + 1.3 * r0)
    zigzag = ((nA + 1) % 3 - 1) * 0.1
    faaaa = r0 * (1.0 - nA / (A - 1)) + zigzag

    ks = list(jax.random.split(key, 12))

    def unif(k, shape, b):
        return jax.random.uniform(k, shape, jnp.float32, -b, b)

    def lin_w(k, out_d, in_d):
        b = 1.0 / float(in_d) ** 0.5
        return jax.random.uniform(k, (out_d, in_d), jnp.float32, -b, b)

    return dict(
        head_size_divisor=float(args["head_size_divisor"]),
        time_maa_x=1.0 - ddd ** r1,
        time_maa_w=1.0 - ddd ** r1,
        time_maa_k=1.0 - ddd ** r1,
        time_maa_v=1.0 - (ddd ** r1 + 0.3 * r0),
        time_maa_r=1.0 - ddd ** (0.5 * r1),
        time_maa_g=1.0 - ddd ** (0.5 * r1),
        time_maa_w1=unif(ks[0], (C, TIME_MIX_EXTRA_DIM * 5), 1e-4),
        time_maa_w2=unif(ks[1], (5, TIME_MIX_EXTRA_DIM, C), 1e-4),
        time_decay=decay_speed.reshape(1, 1, A),
        time_decay_w1=unif(ks[2], (C, TIME_DECAY_EXTRA_DIM), 1e-4),
        time_decay_w2=unif(ks[3], (TIME_DECAY_EXTRA_DIM, A), 1e-4),
        time_faaaa=faaaa.reshape(H, N),
        token_shift_state=jnp.zeros((1, C), jnp.bfloat16),
        Wr=lin_w(ks[4], A, C),
        Wk=lin_w(ks[5], A, C),
        Wv=lin_w(ks[6], A, C),
        Wo=lin_w(ks[7], C, A),
        Wg=lin_w(ks[8], A, C),
        gn_w=jnp.ones((A,), jnp.float32),
        gn_b=jnp.zeros((A,), jnp.float32),
        # StateEncoder (bf16 parameters)
        encoded_state=(0.02 * jax.random.normal(ks[9], (H, ENC_DIM),
                                                jnp.float32)).astype(jnp.bfloat16),
        sp1_w=lin_w(ks[10], hid, ENC_DIM).astype(jnp.bfloat16),
        sp1_b=jnp.zeros((hid,), jnp.bfloat16),
        sp2_w=lin_w(ks[11], N * N, hid).astype(jnp.bfloat16),
        sp2_b=jnp.zeros((N * N,), jnp.bfloat16),
        ln1_g=jnp.ones((hid,), jnp.bfloat16),
        ln1_b=jnp.zeros((hid,), jnp.bfloat16),
        ln2_g=jnp.ones((N * N,), jnp.bfloat16),
        ln2_b=jnp.zeros((N * N,), jnp.bfloat16),
    )


if __name__ == "__main__":
    args = dict(n_embd=64, dim_att=64, head_size_a=16, n_layer=4, layer_id=1,
                head_size_divisor=8)
    # T=80 with chunk_size=64 / sub_block=16 exercises multiple outer chunks,
    # the in-kernel sub-block loop, cross-chunk state carry through the VMEM
    # scratch, head packing (4 heads of 16 -> one 64-wide group), and padding.
    B, T = 2, 80

    key = jax.random.PRNGKey(0)
    pkey, xkey = jax.random.split(key)
    params = init_params(pkey, args)
    x = jax.random.normal(xkey, (B, T, args["n_embd"]), jnp.float32)

    fwd_pallas = jax.jit(lambda p, xx: rwkv_tmix_x060_forward(p, xx, run_wkv6))
    fwd_ref = jax.jit(lambda p, xx: rwkv_tmix_x060_forward(p, xx, run_wkv6_ref))

    out = jax.block_until_ready(fwd_pallas(params, x))
    ref = jax.block_until_ready(fwd_ref(params, x))

    assert out.shape == (B, T, args["n_embd"])
    assert bool(jnp.all(jnp.isfinite(out)))
    assert bool(jnp.allclose(out, ref, rtol=2e-3, atol=3e-3)), "Pallas WKV mismatch"
    print("KERNEL_OK")
</pallas_src>

<mosaic_0001>
module attributes {stable_mosaic.version = 11 : i64} {
  func.func @kernel(%arg0: i32, %arg1: i32, %arg2: memref<1x64x64xf32, #tpu.memory_space<vmem>>, %arg3: memref<1x64x64xf32, #tpu.memory_space<vmem>>, %arg4: memref<1x64x64xf32, #tpu.memory_space<vmem>>, %arg5: memref<1x64x64xf32, #tpu.memory_space<vmem>>, %arg6: memref<1x64xf32, #tpu.memory_space<vmem>>, %arg7: memref<16x16xf32, #tpu.memory_space<vmem>>, %arg8: memref<16x64xf32, #tpu.memory_space<vmem>>, %arg9: memref<64x64xf32, #tpu.memory_space<vmem>>, %arg10: memref<64x64xf32, #tpu.memory_space<vmem>>, %arg11: memref<1x64x64xf32, #tpu.memory_space<vmem>>, %arg12: memref<1x64x64xf32, #tpu.memory_space<vmem>>, %arg13: memref<1x64x64xf32, #tpu.memory_space<vmem>>) attributes {dimension_semantics = [#tpu.dimension_semantics<parallel>, #tpu.dimension_semantics<arbitrary>], iteration_bounds = array<i64: 2, 2>, scalar_prefetch = 0 : i64, scratch_operands = 1 : i64, tpu.core_type = #tpu.core_type<tc>, window_params = [{transform_indices = @transform_0, window_bounds = array<i64: 1, 64, 64>}, {transform_indices = @transform_1, window_bounds = array<i64: 1, 64, 64>}, {transform_indices = @transform_2, window_bounds = array<i64: 1, 64, 64>}, {transform_indices = @transform_3, window_bounds = array<i64: 1, 64, 64>}, {pipeline_mode = #tpu.pipeline_mode<synchronous>, transform_indices = @transform_4, window_bounds = array<i64: 1, 64>}, {pipeline_mode = #tpu.pipeline_mode<synchronous>, transform_indices = @transform_5, window_bounds = array<i64: 16, 16>}, {pipeline_mode = #tpu.pipeline_mode<synchronous>, transform_indices = @transform_6, window_bounds = array<i64: 16, 64>}, {pipeline_mode = #tpu.pipeline_mode<synchronous>, transform_indices = @transform_7, window_bounds = array<i64: 64, 64>}, {pipeline_mode = #tpu.pipeline_mode<synchronous>, transform_indices = @transform_8, window_bounds = array<i64: 64, 64>}, {pipeline_mode = #tpu.pipeline_mode<synchronous>, transform_indices = @transform_9, window_bounds = array<i64: 1, 64, 64>}, {transform_indices = @transform_10, window_bounds = array<i64: 1, 64, 64>}]} {
    %c0 = arith.constant 0 : index
    %c0_0 = arith.constant 0 : index
    %0 = vector.load %arg7[%c0, %c0_0] : memref<16x16xf32, #tpu.memory_space<vmem>>, vector<16x16xf32>
    %c0_1 = arith.constant 0 : index
    %c0_2 = arith.constant 0 : index
    %1 = vector.load %arg8[%c0_1, %c0_2] : memref<16x64xf32, #tpu.memory_space<vmem>>, vector<16x64xf32>
    %cst = arith.constant 5.000000e-01 : f32
    %2 = vector.broadcast %cst : f32 to vector<16x64xf32>
    %3 = arith.cmpf ogt, %1, %2 : vector<16x64xf32>
    %c0_3 = arith.constant 0 : index
    %c0_4 = arith.constant 0 : index
    %4 = vector.load %arg9[%c0_3, %c0_4] : memref<64x64xf32, #tpu.memory_space<vmem>>, vector<64x64xf32>
    %c0_5 = arith.constant 0 : index
    %c0_6 = arith.constant 0 : index
    %5 = vector.load %arg10[%c0_5, %c0_6] : memref<64x64xf32, #tpu.memory_space<vmem>>, vector<64x64xf32>
    %c0_7 = arith.constant 0 : index
    %c0_8 = arith.constant 0 : index
    %6 = vector.load %arg6[%c0_7, %c0_8] : memref<1x64xf32, #tpu.memory_space<vmem>>, vector<1x64xf32>
    %c0_i32 = arith.constant 0 : i32
    %7 = arith.cmpi eq, %arg1, %c0_i32 : i32
    %8 = arith.extui %7 : i1 to i32
    %c0_i32_9 = arith.constant 0 : i32
    %9 = arith.cmpi ne, %8, %c0_i32_9 : i32
    scf.if %9 {
      %c0_127 = arith.constant 0 : index
      %c0_128 = arith.constant 0 : index
      %c0_129 = arith.constant 0 : index
      %250 = vector.load %arg11[%c0_127, %c0_128, %c0_129] : memref<1x64x64xf32, #tpu.memory_space<vmem>>, vector<1x64x64xf32>
      %c0_130 = arith.constant 0 : index
      %c0_131 = arith.constant 0 : index
      %c0_132 = arith.constant 0 : index
      %251 = vector.load %arg13[%c0_130, %c0_131, %c0_132] : memref<1x64x64xf32, #tpu.memory_space<vmem>>, vector<1x64x64xf32>
      tpu.vector_store %arg13[%c0_130, %c0_131, %c0_132], %250 {strides = array<i32>} : memref<1x64x64xf32, #tpu.memory_space<vmem>>, vector<1x64x64xf32>,
    } else {
    }
    %c0_10 = arith.constant 0 : index
    %c0_11 = arith.constant 0 : index
    %c0_12 = arith.constant 0 : index
    %10 = vector.load %arg2[%c0_10, %c0_11, %c0_12] : memref<1x64x64xf32, #tpu.memory_space<vmem>>, vector<1x16x64xf32>
    %11 = vector.shape_cast %10 : vector<1x16x64xf32> to vector<16x64xf32>
    %c0_13 = arith.constant 0 : index
    %c0_14 = arith.constant 0 : index
    %c0_15 = arith.constant 0 : index
    %12 = vector.load %arg3[%c0_13, %c0_14, %c0_15] : memref<1x64x64xf32, #tpu.memory_space<vmem>>, vector<1x16x64xf32>
    %13 = vector.shape_cast %12 : vector<1x16x64xf32> to vector<16x64xf32>
    %c0_16 = arith.constant 0 : index
    %c0_17 = arith.constant 0 : index
    %c0_18 = arith.constant 0 : index
    %14 = vector.load %arg4[%c0_16, %c0_17, %c0_18] : memref<1x64x64xf32, #tpu.memory_space<vmem>>, vector<1x16x64xf32>
    %15 = vector.shape_cast %14 : vector<1x16x64xf32> to vector<16x64xf32>
    %c0_19 = arith.constant 0 : index
    %c0_20 = arith.constant 0 : index
    %c0_21 = arith.constant 0 : index
    %16 = vector.load %arg5[%c0_19, %c0_20, %c0_21] : memref<1x64x64xf32, #tpu.memory_space<vmem>>, vector<1x16x64xf32>
    %17 = vector.shape_cast %16 : vector<1x16x64xf32> to vector<16x64xf32>
    %18 = math.exp %17 : vector<16x64xf32>
    %cst_22 = arith.constant 7.77777767 : f32
    %19 = vector.broadcast %cst_22 : f32 to vector<16x64xf32>
    %20 = arith.minimumf %18, %19 : vector<16x64xf32>
    %cst_23 = arith.constant dense<0.000000e+00> : vector<16x64xf32>
    %21 = tpu.matmul %0, %20, %cst_23 {dimension_numbers = #tpu.dot_dimension_numbers<[1], [0], [0], [1], [0, 0, 1, 1], [], []>} : vector<16x16xf32>, vector<16x64xf32>, vector<16x64xf32> -> vector<16x64xf32>
    %22 = vector.extract_strided_slice %21 {offsets = [15, 0], sizes = [1, 64], strides = [1, 1]} : vector<16x64xf32> to vector<1x64xf32>
    %23 = vector.extract_strided_slice %21 {offsets = [8, 0], sizes = [1, 64], strides = [1, 1]} : vector<16x64xf32> to vector<1x64xf32>
    %24 = arith.subf %20, %21 : vector<16x64xf32>
    %25 = math.exp %24 : vector<16x64xf32>
    %26 = vector.broadcast %23 : vector<1x64xf32> to vector<16x64xf32>
    %27 = arith.subf %21, %26 : vector<16x64xf32>
    %28 = math.exp %27 : vector<16x64xf32>
    %29 = arith.mulf %11, %25 : vector<16x64xf32>
    %30 = math.exp %23 : vector<1x64xf32>
    %31 = vector.broadcast %30 : vector<1x64xf32> to vector<16x64xf32>
    %32 = arith.mulf %29, %31 : vector<16x64xf32>
    %33 = arith.mulf %13, %28 : vector<16x64xf32>
    %34 = arith.subf %23, %22 : vector<1x64xf32>
    %35 = math.exp %34 : vector<1x64xf32>
    %36 = vector.broadcast %35 : vector<1x64xf32> to vector<16x64xf32>
    %37 = arith.mulf %33, %36 : vector<16x64xf32>
    %cst_24 = arith.constant 0.000000e+00 : f32
    %38 = vector.broadcast %cst_24 : f32 to vector<1x64xf32>
    %39 = arith.subf %38, %22 : vector<1x64xf32>
    %40 = math.exp %39 : vector<1x64xf32>
    %41 = vector.broadcast %6 : vector<1x64xf32> to vector<16x64xf32>
    %42 = arith.mulf %11, %41 : vector<16x64xf32>
    %43 = arith.mulf %42, %13 : vector<16x64xf32>
    %c0_25 = arith.constant 0 : index
    %c0_26 = arith.constant 0 : index
    %c0_27 = arith.constant 0 : index
    %44 = vector.load %arg13[%c0_25, %c0_26, %c0_27] : memref<1x64x64xf32, #tpu.memory_space<vmem>>, vector<1x64x64xf32>
    %45 = vector.shape_cast %44 : vector<1x64x64xf32> to vector<64x64xf32>
    %cst_28 = arith.constant dense<0.000000e+00> : vector<16x64xf32>
    %46 = tpu.matmul %29, %45, %cst_28 {dimension_numbers = #tpu.dot_dimension_numbers<[1], [1], [0], [0], [0, 0, 1, 0], [], []>} : vector<16x64xf32>, vector<64x64xf32>, vector<16x64xf32> -> vector<16x64xf32>
    %47 = tpu.concatenate %33, %33, %33, %33 in 0 : vector<16x64xf32>, vector<16x64xf32>, vector<16x64xf32>, vector<16x64xf32> -> vector<64x64xf32>
    %48 = arith.mulf %47, %5 : vector<64x64xf32>
    %49 = tpu.concatenate %15, %15, %15, %15 in 0 : vector<16x64xf32>, vector<16x64xf32>, vector<16x64xf32>, vector<16x64xf32> -> vector<64x64xf32>
    %50 = arith.mulf %49, %5 : vector<64x64xf32>
    %cst_29 = arith.constant dense<0.000000e+00> : vector<16x64xf32>
    %51 = tpu.matmul %32, %48, %cst_29 {dimension_numbers = #tpu.dot_dimension_numbers<[1], [1], [0], [0], [0, 0, 1, 0], [], []>} : vector<16x64xf32>, vector<64x64xf32>, vector<16x64xf32> -> vector<16x64xf32>
    %cst_30 = arith.constant 0.000000e+00 : f32
    %52 = vector.broadcast %cst_30 : f32 to vector<16x64xf32>
    %53 = arith.select %3, %51, %52 : vector<16x64xi1>, vector<16x64xf32>
    %cst_31 = arith.constant dense<0.000000e+00> : vector<16x64xf32>
    %54 = tpu.matmul %53, %50, %cst_31 {dimension_numbers = #tpu.dot_dimension_numbers<[1], [0], [0], [1], [0, 0, 1, 1], [], []>} : vector<16x64xf32>, vector<64x64xf32>, vector<16x64xf32> -> vector<16x64xf32>
    %55 = arith.addf %46, %54 : vector<16x64xf32>
    %cst_32 = arith.constant dense<0.000000e+00> : vector<16x64xf32>
    %56 = tpu.matmul %43, %4, %cst_32 {dimension_numbers = #tpu.dot_dimension_numbers<[1], [0], [0], [1], [0, 0, 1, 1], [], []>} : vector<16x64xf32>, vector<64x64xf32>, vector<16x64xf32> -> vector<16x64xf32>
    %57 = arith.mulf %56, %15 : vector<16x64xf32>
    %58 = arith.addf %55, %57 : vector<16x64xf32>
    %c0_33 = arith.constant 0 : index
    %c0_34 = arith.constant 0 : index
    %c0_35 = arith.constant 0 : index
    %59 = vector.load %arg12[%c0_33, %c0_34, %c0_35] : memref<1x64x64xf32, #tpu.memory_space<vmem>>, vector<1x16x64xf32>
    %60 = vector.shape_cast %59 : vector<1x16x64xf32> to vector<16x64xf32>
    %61 = vector.shape_cast %58 : vector<16x64xf32> to vector<1x16x64xf32>
    tpu.vector_store %arg12[%c0_33, %c0_34, %c0_35], %61 {strides = array<i32>} : memref<1x64x64xf32, #tpu.memory_space<vmem>>, vector<1x16x64xf32>,
    %cst_36 = arith.constant dense<0.000000e+00> : vector<64x64xf32>
    %62 = tpu.matmul %15, %37, %cst_36 {dimension_numbers = #tpu.dot_dimension_numbers<[0], [0], [1], [1], [0, 1, 1, 1], [], []>} : vector<16x64xf32>, vector<16x64xf32>, vector<64x64xf32> -> vector<64x64xf32>
    %63 = vector.broadcast %40 : vector<1x64xf32> to vector<64x64xf32>
    %64 = arith.mulf %45, %63 : vector<64x64xf32>
    %65 = arith.mulf %62, %4 : vector<64x64xf32>
    %66 = arith.addf %64, %65 : vector<64x64xf32>
    %c0_37 = arith.constant 0 : index
    %c0_38 = arith.constant 0 : index
    %c0_39 = arith.constant 0 : index
    %67 = vector.load %arg13[%c0_37, %c0_38, %c0_39] : memref<1x64x64xf32, #tpu.memory_space<vmem>>, vector<1x64x64xf32>
    %68 = vector.shape_cast %67 : vector<1x64x64xf32> to vector<64x64xf32>
    %69 = vector.shape_cast %66 : vector<64x64xf32> to vector<1x64x64xf32>
    tpu.vector_store %arg13[%c0_37, %c0_38, %c0_39], %69 {strides = array<i32>} : memref<1x64x64xf32, #tpu.memory_space<vmem>>, vector<1x64x64xf32>,
    %c0_40 = arith.constant 0 : index
    %c16 = arith.constant 16 : index
    %c0_41 = arith.constant 0 : index
    %70 = vector.load %arg2[%c0_40, %c16, %c0_41] : memref<1x64x64xf32, #tpu.memory_space<vmem>>, vector<1x16x64xf32>
    %71 = vector.shape_cast %70 : vector<1x16x64xf32> to vector<16x64xf32>
    %c0_42 = arith.constant 0 : index
    %c16_43 = arith.constant 16 : index
    %c0_44 = arith.constant 0 : index
    %72 = vector.load %arg3[%c0_42, %c16_43, %c0_44] : memref<1x64x64xf32, #tpu.memory_space<vmem>>, vector<1x16x64xf32>
    %73 = vector.shape_cast %72 : vector<1x16x64xf32> to vector<16x64xf32>
    %c0_45 = arith.constant 0 : index
    %c16_46 = arith.constant 16 : index
    %c0_47 = arith.constant 0 : index
    %74 = vector.load %arg4[%c0_45, %c16_46, %c0_47] : memref<1x64x64xf32, #tpu.memory_space<vmem>>, vector<1x16x64xf32>
    %75 = vector.shape_cast %74 : vector<1x16x64xf32> to vector<16x64xf32>
    %c0_48 = arith.constant 0 : index
    %c16_49 = arith.constant 16 : index
    %c0_50 = arith.constant 0 : index
    %76 = vector.load %arg5[%c0_48, %c16_49, %c0_50] : memref<1x64x64xf32, #tpu.memory_space<vmem>>, vector<1x16x64xf32>
    %77 = vector.shape_cast %76 : vector<1x16x64xf32> to vector<16x64xf32>
    %78 = math.exp %77 : vector<16x64xf32>
    %cst_51 = arith.constant 7.77777767 : f32
    %79 = vector.broadcast %cst_51 : f32 to vector<16x64xf32>
    %80 = arith.minimumf %78, %79 : vector<16x64xf32>
    %cst_52 = arith.constant dense<0.000000e+00> : vector<16x64xf32>
    %81 = tpu.matmul %0, %80, %cst_52 {dimension_numbers = #tpu.dot_dimension_numbers<[1], [0], [0], [1], [0, 0, 1, 1], [], []>} : vector<16x16xf32>, vector<16x64xf32>, vector<16x64xf32> -> vector<16x64xf32>
    %82 = vector.extract_strided_slice %81 {offsets = [15, 0], sizes = [1, 64], strides = [1, 1]} : vector<16x64xf32> to vector<1x64xf32>
    %83 = vector.extract_strided_slice %81 {offsets = [8, 0], sizes = [1, 64], strides = [1, 1]} : vector<16x64xf32> to vector<1x64xf32>
    %84 = arith.subf %80, %81 : vector<16x64xf32>
    %85 = math.exp %84 : vector<16x64xf32>
    %86 = vector.broadcast %83 : vector<1x64xf32> to vector<16x64xf32>
    %87 = arith.subf %81, %86 : vector<16x64xf32>
    %88 = math.exp %87 : vector<16x64xf32>
    %89 = arith.mulf %71, %85 : vector<16x64xf32>
    %90 = math.exp %83 : vector<1x64xf32>
    %91 = vector.broadcast %90 : vector<1x64xf32> to vector<16x64xf32>
    %92 = arith.mulf %89, %91 : vector<16x64xf32>
    %93 = arith.mulf %73, %88 : vector<16x64xf32>
    %94 = arith.subf %83, %82 : vector<1x64xf32>
    %95 = math.exp %94 : vector<1x64xf32>
    %96 = vector.broadcast %95 : vector<1x64xf32> to vector<16x64xf32>
    %97 = arith.mulf %93, %96 : vector<16x64xf32>
    %cst_53 = arith.constant 0.000000e+00 : f32
    %98 = vector.broadcast %cst_53 : f32 to vector<1x64xf32>
    %99 = arith.subf %98, %82 : vector<1x64xf32>
    %100 = math.exp %99 : vector<1x64xf32>
    %101 = vector.broadcast %6 : vector<1x64xf32> to vector<16x64xf32>
    %102 = arith.mulf %71, %101 : vector<16x64xf32>
    %103 = arith.mulf %102, %73 : vector<16x64xf32>
    %c0_54 = arith.constant 0 : index
    %c0_55 = arith.constant 0 : index
    %c0_56 = arith.constant 0 : index
    %104 = vector.load %arg13[%c0_54, %c0_55, %c0_56] : memref<1x64x64xf32, #tpu.memory_space<vmem>>, vector<1x64x64xf32>
    %105 = vector.shape_cast %104 : vector<1x64x64xf32> to vector<64x64xf32>
    %cst_57 = arith.constant dense<0.000000e+00> : vector<16x64xf32>
    %106 = tpu.matmul %89, %105, %cst_57 {dimension_numbers = #tpu.dot_dimension_numbers<[1], [1], [0], [0], [0, 0, 1, 0], [], []>} : vector<16x64xf32>, vector<64x64xf32>, vector<16x64xf32> -> vector<16x64xf32>
    %107 = tpu.concatenate %93, %93, %93, %93 in 0 : vector<16x64xf32>, vector<16x64xf32>, vector<16x64xf32>, vector<16x64xf32> -> vector<64x64xf32>
    %108 = arith.mulf %107, %5 : vector<64x64xf32>
    %109 = tpu.concatenate %75, %75, %75, %75 in 0 : vector<16x64xf32>, vector<16x64xf32>, vector<16x64xf32>, vector<16x64xf32> -> vector<64x64xf32>
    %110 = arith.mulf %109, %5 : vector<64x64xf32>
    %cst_58 = arith.constant dense<0.000000e+00> : vector<16x64xf32>
    %111 = tpu.matmul %92, %108, %cst_58 {dimension_numbers = #tpu.dot_dimension_numbers<[1], [1], [0], [0], [0, 0, 1, 0], [], []>} : vector<16x64xf32>, vector<64x64xf32>, vector<16x64xf32> -> vector<16x64xf32>
    %cst_59 = arith.constant 0.000000e+00 : f32
    %112 = vector.broadcast %cst_59 : f32 to vector<16x64xf32>
    %113 = arith.select %3, %111, %112 : vector<16x64xi1>, vector<16x64xf32>
    %cst_60 = arith.constant dense<0.000000e+00> : vector<16x64xf32>
    %114 = tpu.matmul %113, %110, %cst_60 {dimension_numbers = #tpu.dot_dimension_numbers<[1], [0], [0], [1], [0, 0, 1, 1], [], []>} : vector<16x64xf32>, vector<64x64xf32>, vector<16x64xf32> -> vector<16x64xf32>
    %115 = arith.addf %106, %114 : vector<16x64xf32>
    %cst_61 = arith.constant dense<0.000000e+00> : vector<16x64xf32>
    %116 = tpu.matmul %103, %4, %cst_61 {dimension_numbers = #tpu.dot_dimension_numbers<[1], [0], [0], [1], [0, 0, 1, 1], [], []>} : vector<16x64xf32>, vector<64x64xf32>, vector<16x64xf32> -> vector<16x64xf32>
    %117 = arith.mulf %116, %75 : vector<16x64xf32>
    %118 = arith.addf %115, %117 : vector<16x64xf32>
    %c0_62 = arith.constant 0 : index
    %c16_63 = arith.constant 16 : index
    %c0_64 = arith.constant 0 : index
    %119 = vector.load %arg12[%c0_62, %c16_63, %c0_64] : memref<1x64x64xf32, #tpu.memory_space<vmem>>, vector<1x16x64xf32>
    %120 = vector.shape_cast %119 : vector<1x16x64xf32> to vector<16x64xf32>
    %121 = vector.shape_cast %118 : vector<16x64xf32> to vector<1x16x64xf32>
    tpu.vector_store %arg12[%c0_62, %c16_63, %c0_64], %121 {strides = array<i32>} : memref<1x64x64xf32, #tpu.memory_space<vmem>>, vector<1x16x64xf32>,
    %cst_65 = arith.constant dense<0.000000e+00> : vector<64x64xf32>
    %122 = tpu.matmul %75, %97, %cst_65 {dimension_numbers = #tpu.dot_dimension_numbers<[0], [0], [1], [1], [0, 1, 1, 1], [], []>} : vector<16x64xf32>, vector<16x64xf32>, vector<64x64xf32> -> vector<64x64xf32>
    %123 = vector.broadcast %100 : vector<1x64xf32> to vector<64x64xf32>
    %124 = arith.mulf %105, %123 : vector<64x64xf32>
    %125 = arith.mulf %122, %4 : vector<64x64xf32>
    %126 = arith.addf %124, %125 : vector<64x64xf32>
    %c0_66 = arith.constant 0 : index
    %c0_67 = arith.constant 0 : index
    %c0_68 = arith.constant 0 : index
    %127 = vector.load %arg13[%c0_66, %c0_67, %c0_68] : memref<1x64x64xf32, #tpu.memory_space<vmem>>, vector<1x64x64xf32>
    %128 = vector.shape_cast %127 : vector<1x64x64xf32> to vector<64x64xf32>
    %129 = vector.shape_cast %126 : vector<64x64xf32> to vector<1x64x64xf32>
    tpu.vector_store %arg13[%c0_66, %c0_67, %c0_68], %129 {strides = array<i32>} : memref<1x64x64xf32, #tpu.memory_space<vmem>>, vector<1x64x64xf32>,
    %c0_69 = arith.constant 0 : index
    %c32 = arith.constant 32 : index
    %c0_70 = arith.constant 0 : index
    %130 = vector.load %arg2[%c0_69, %c32, %c0_70] : memref<1x64x64xf32, #tpu.memory_space<vmem>>, vector<1x16x64xf32>
    %131 = vector.shape_cast %130 : vector<1x16x64xf32> to vector<16x64xf32>
    %c0_71 = arith.constant 0 : index
    %c32_72 = arith.constant 32 : index
    %c0_73 = arith.constant 0 : index
    %132 = vector.load %arg3[%c0_71, %c32_72, %c0_73] : memref<1x64x64xf32, #tpu.memory_space<vmem>>, vector<1x16x64xf32>
    %133 = vector.shape_cast %132 : vector<1x16x64xf32> to vector<16x64xf32>
    %c0_74 = arith.constant 0 : index
    %c32_75 = arith.constant 32 : index
    %c0_76 = arith.constant 0 : index
    %134 = vector.load %arg4[%c0_74, %c32_75, %c0_76] : memref<1x64x64xf32, #tpu.memory_space<vmem>>, vector<1x16x64xf32>
    %135 = vector.shape_cast %134 : vector<1x16x64xf32> to vector<16x64xf32>
    %c0_77 = arith.constant 0 : index
    %c32_78 = arith.constant 32 : index
    %c0_79 = arith.constant 0 : index
    %136 = vector.load %arg5[%c0_77, %c32_78, %c0_79] : memref<1x64x64xf32, #tpu.memory_space<vmem>>, vector<1x16x64xf32>
    %137 = vector.shape_cast %136 : vector<1x16x64xf32> to vector<16x64xf32>
    %138 = math.exp %137 : vector<16x64xf32>
    %cst_80 = arith.constant 7.77777767 : f32
    %139 = vector.broadcast %cst_80 : f32 to vector<16x64xf32>
    %140 = arith.minimumf %138, %139 : vector<16x64xf32>
    %cst_81 = arith.constant dense<0.000000e+00> : vector<16x64xf32>
    %141 = tpu.matmul %0, %140, %cst_81 {dimension_numbers = #tpu.dot_dimension_numbers<[1], [0], [0], [1], [0, 0, 1, 1], [], []>} : vector<16x16xf32>, vector<16x64xf32>, vector<16x64xf32> -> vector<16x64xf32>
    %142 = vector.extract_strided_slice %141 {offsets = [15, 0], sizes = [1, 64], strides = [1, 1]} : vector<16x64xf32> to vector<1x64xf32>
    %143 = vector.extract_strided_slice %141 {offsets = [8, 0], sizes = [1, 64], strides = [1, 1]} : vector<16x64xf32> to vector<1x64xf32>
    %144 = arith.subf %140, %141 : vector<16x64xf32>
    %145 = math.exp %144 : vector<16x64xf32>
    %146 = vector.broadcast %143 : vector<1x64xf32> to vector<16x64xf32>
    %147 = arith.subf %141, %146 : vector<16x64xf32>
    %148 = math.exp %147 : vector<16x64xf32>
    %149 = arith.mulf %131, %145 : vector<16x64xf32>
    %150 = math.exp %143 : vector<1x64xf32>
    %151 = vector.broadcast %150 : vector<1x64xf32> to vector<16x64xf32>
    %152 = arith.mulf %149, %151 : vector<16x64xf32>
    %153 = arith.mulf %133, %148 : vector<16x64xf32>
    %154 = arith.subf %143, %142 : vector<1x64xf32>
    %155 = math.exp %154 : vector<1x64xf32>
    %156 = vector.broadcast %155 : vector<1x64xf32> to vector<16x64xf32>
    %157 = arith.mulf %153, %156 : vector<16x64xf32>
    %cst_82 = arith.constant 0.000000e+00 : f32
    %158 = vector.broadcast %cst_82 : f32 to vector<1x64xf32>
    %159 = arith.subf %158, %142 : vector<1x64xf32>
    %160 = math.exp %159 : vector<1x64xf32>
    %161 = vector.broadcast %6 : vector<1x64xf32> to vector<16x64xf32>
    %162 = arith.mulf %131, %161 : vector<16x64xf32>
    %163 = arith.mulf %162, %133 : vector<16x64xf32>
    %c0_83 = arith.constant 0 : index
    %c0_84 = arith.constant 0 : index
    %c0_85 = arith.constant 0 : index
    %164 = vector.load %arg13[%c0_83, %c0_84, %c0_85] : memref<1x64x64xf32, #tpu.memory_space<vmem>>, vector<1x64x64xf32>
    %165 = vector.shape_cast %164 : vector<1x64x64xf32> to vector<64x64xf32>
    %cst_86 = arith.constant dense<0.000000e+00> : vector<16x64xf32>
    %166 = tpu.matmul %149, %165, %cst_86 {dimension_numbers = #tpu.dot_dimension_numbers<[1], [1], [0], [0], [0, 0, 1, 0], [], []>} : vector<16x64xf32>, vector<64x64xf32>, vector<16x64xf32> -> vector<16x64xf32>
    %167 = tpu.concatenate %153, %153, %153, %153 in 0 : vector<16x64xf32>, vector<16x64xf32>, vector<16x64xf32>, vector<16x64xf32> -> vector<64x64xf32>
    %168 = arith.mulf %167, %5 : vector<64x64xf32>
    %169 = tpu.concatenate %135, %135, %135, %135 in 0 : vector<16x64xf32>, vector<16x64xf32>, vector<16x64xf32>, vector<16x64xf32> -> vector<64x64xf32>
    %170 = arith.mulf %169, %5 : vector<64x64xf32>
    %cst_87 = arith.constant dense<0.000000e+00> : vector<16x64xf32>
    %171 = tpu.matmul %152, %168, %cst_87 {dimension_numbers = #tpu.dot_dimension_numbers<[1], [1], [0], [0], [0, 0, 1, 0], [], []>} : vector<16x64xf32>, vector<64x64xf32>, vector<16x64xf32> -> vector<16x64xf32>
    %cst_88 = arith.constant 0.000000e+00 : f32
    %172 = vector.broadcast %cst_88 : f32 to vector<16x64xf32>
    %173 = arith.select %3, %171, %172 : vector<16x64xi1>, vector<16x64xf32>
    %cst_89 = arith.constant dense<0.000000e+00> : vector<16x64xf32>
    %174 = tpu.matmul %173, %170, %cst_89 {dimension_numbers = #tpu.dot_dimension_numbers<[1], [0], [0], [1], [0, 0, 1, 1], [], []>} : vector<16x64xf32>, vector<64x64xf32>, vector<16x64xf32> -> vector<16x64xf32>
    %175 = arith.addf %166, %174 : vector<16x64xf32>
    %cst_90 = arith.constant dense<0.000000e+00> : vector<16x64xf32>
    %176 = tpu.matmul %163, %4, %cst_90 {dimension_numbers = #tpu.dot_dimension_numbers<[1], [0], [0], [1], [0, 0, 1, 1], [], []>} : vector<16x64xf32>, vector<64x64xf32>, vector<16x64xf32> -> vector<16x64xf32>
    %177 = arith.mulf %176, %135 : vector<16x64xf32>
    %178 = arith.addf %175, %177 : vector<16x64xf32>
    %c0_91 = arith.constant 0 : index
    %c32_92 = arith.constant 32 : index
    %c0_93 = arith.constant 0 : index
    %179 = vector.load %arg12[%c0_91, %c32_92, %c0_93] : memref<1x64x64xf32, #tpu.memory_space<vmem>>, vector<1x16x64xf32>
    %180 = vector.shape_cast %179 : vector<1x16x64xf32> to vector<16x64xf32>
    %181 = vector.shape_cast %178 : vector<16x64xf32> to vector<1x16x64xf32>
    tpu.vector_store %arg12[%c0_91, %c32_92, %c0_93], %181 {strides = array<i32>} : memref<1x64x64xf32, #tpu.memory_space<vmem>>, vector<1x16x64xf32>,
    %cst_94 = arith.constant dense<0.000000e+00> : vector<64x64xf32>
    %182 = tpu.matmul %135, %157, %cst_94 {dimension_numbers = #tpu.dot_dimension_numbers<[0], [0], [1], [1], [0, 1, 1, 1], [], []>} : vector<16x64xf32>, vector<16x64xf32>, vector<64x64xf32> -> vector<64x64xf32>
    %183 = vector.broadcast %160 : vector<1x64xf32> to vector<64x64xf32>
    %184 = arith.mulf %165, %183 : vector<64x64xf32>
    %185 = arith.mulf %182, %4 : vector<64x64xf32>
    %186 = arith.addf %184, %185 : vector<64x64xf32>
    %c0_95 = arith.constant 0 : index
    %c0_96 = arith.constant 0 : index
    %c0_97 = arith.constant 0 : index
    %187 = vector.load %arg13[%c0_95, %c0_96, %c0_97] : memref<1x64x64xf32, #tpu.memory_space<vmem>>, vector<1x64x64xf32>
    %188 = vector.shape_cast %187 : vector<1x64x64xf32> to vector<64x64xf32>
    %189 = vector.shape_cast %186 : vector<64x64xf32> to vector<1x64x64xf32>
    tpu.vector_store %arg13[%c0_95, %c0_96, %c0_97], %189 {strides = array<i32>} : memref<1x64x64xf32, #tpu.memory_space<vmem>>, vector<1x64x64xf32>,
    %c0_98 = arith.constant 0 : index
    %c48 = arith.constant 48 : index
    %c0_99 = arith.constant 0 : index
    %190 = vector.load %arg2[%c0_98, %c48, %c0_99] : memref<1x64x64xf32, #tpu.memory_space<vmem>>, vector<1x16x64xf32>
    %191 = vector.shape_cast %190 : vector<1x16x64xf32> to vector<16x64xf32>
    %c0_100 = arith.constant 0 : index
    %c48_101 = arith.constant 48 : index
    %c0_102 = arith.constant 0 : index
    %192 = vector.load %arg3[%c0_100, %c48_101, %c0_102] : memref<1x64x64xf32, #tpu.memory_space<vmem>>, vector<1x16x64xf32>
    %193 = vector.shape_cast %192 : vector<1x16x64xf32> to vector<16x64xf32>
    %c0_103 = arith.constant 0 : index
    %c48_104 = arith.constant 48 : index
    %c0_105 = arith.constant 0 : index
    %194 = vector.load %arg4[%c0_103, %c48_104, %c0_105] : memref<1x64x64xf32, #tpu.memory_space<vmem>>, vector<1x16x64xf32>
    %195 = vector.shape_cast %194 : vector<1x16x64xf32> to vector<16x64xf32>
    %c0_106 = arith.constant 0 : index
    %c48_107 = arith.constant 48 : index
    %c0_108 = arith.constant 0 : index
    %196 = vector.load %arg5[%c0_106, %c48_107, %c0_108] : memref<1x64x64xf32, #tpu.memory_space<vmem>>, vector<1x16x64xf32>
    %197 = vector.shape_cast %196 : vector<1x16x64xf32> to vector<16x64xf32>
    %198 = math.exp %197 : vector<16x64xf32>
    %cst_109 = arith.constant 7.77777767 : f32
    %199 = vector.broadcast %cst_109 : f32 to vector<16x64xf32>
    %200 = arith.minimumf %198, %199 : vector<16x64xf32>
    %cst_110 = arith.constant dense<0.000000e+00> : vector<16x64xf32>
    %201 = tpu.matmul %0, %200, %cst_110 {dimension_numbers = #tpu.dot_dimension_numbers<[1], [0], [0], [1], [0, 0, 1, 1], [], []>} : vector<16x16xf32>, vector<16x64xf32>, vector<16x64xf32> -> vector<16x64xf32>
    %202 = vector.extract_strided_slice %201 {offsets = [15, 0], sizes = [1, 64], strides = [1, 1]} : vector<16x64xf32> to vector<1x64xf32>
    %203 = vector.extract_strided_slice %201 {offsets = [8, 0], sizes = [1, 64], strides = [1, 1]} : vector<16x64xf32> to vector<1x64xf32>
    %204 = arith.subf %200, %201 : vector<16x64xf32>
    %205 = math.exp %204 : vector<16x64xf32>
    %206 = vector.broadcast %203 : vector<1x64xf32> to vector<16x64xf32>
    %207 = arith.subf %201, %206 : vector<16x64xf32>
    %208 = math.exp %207 : vector<16x64xf32>
    %209 = arith.mulf %191, %205 : vector<16x64xf32>
    %210 = math.exp %203 : vector<1x64xf32>
    %211 = vector.broadcast %210 : vector<1x64xf32> to vector<16x64xf32>
    %212 = arith.mulf %209, %211 : vector<16x64xf32>
    %213 = arith.mulf %193, %208 : vector<16x64xf32>
    %214 = arith.subf %203, %202 : vector<1x64xf32>
    %215 = math.exp %214 : vector<1x64xf32>
    %216 = vector.broadcast %215 : vector<1x64xf32> to vector<16x64xf32>
    %217 = arith.mulf %213, %216 : vector<16x64xf32>
    %cst_111 = arith.constant 0.000000e+00 : f32
    %218 = vector.broadcast %cst_111 : f32 to vector<1x64xf32>
    %219 = arith.subf %218, %202 : vector<1x64xf32>
    %220 = math.exp %219 : vector<1x64xf32>
    %221 = vector.broadcast %6 : vector<1x64xf32> to vector<16x64xf32>
    %222 = arith.mulf %191, %221 : vector<16x64xf32>
    %223 = arith.mulf %222, %193 : vector<16x64xf32>
    %c0_112 = arith.constant 0 : index
    %c0_113 = arith.constant 0 : index
    %c0_114 = arith.constant 0 : index
    %224 = vector.load %arg13[%c0_112, %c0_113, %c0_114] : memref<1x64x64xf32, #tpu.memory_space<vmem>>, vector<1x64x64xf32>
    %225 = vector.shape_cast %224 : vector<1x64x64xf32> to vector<64x64xf32>
    %cst_115 = arith.constant dense<0.000000e+00> : vector<16x64xf32>
    %226 = tpu.matmul %209, %225, %cst_115 {dimension_numbers = #tpu.dot_dimension_numbers<[1], [1], [0], [0], [0, 0, 1, 0], [], []>} : vector<16x64xf32>, vector<64x64xf32>, vector<16x64xf32> -> vector<16x64xf32>
    %227 = tpu.concatenate %213, %213, %213, %213 in 0 : vector<16x64xf32>, vector<16x64xf32>, vector<16x64xf32>, vector<16x64xf32> -> vector<64x64xf32>
    %228 = arith.mulf %227, %5 : vector<64x64xf32>
    %229 = tpu.concatenate %195, %195, %195, %195 in 0 : vector<16x64xf32>, vector<16x64xf32>, vector<16x64xf32>, vector<16x64xf32> -> vector<64x64xf32>
    %230 = arith.mulf %229, %5 : vector<64x64xf32>
    %cst_116 = arith.constant dense<0.000000e+00> : vector<16x64xf32>
    %231 = tpu.matmul %212, %228, %cst_116 {dimension_numbers = #tpu.dot_dimension_numbers<[1], [1], [0], [0], [0, 0, 1, 0], [], []>} : vector<16x64xf32>, vector<64x64xf32>, vector<16x64xf32> -> vector<16x64xf32>
    %cst_117 = arith.constant 0.000000e+00 : f32
    %232 = vector.broadcast %cst_117 : f32 to vector<16x64xf32>
    %233 = arith.select %3, %231, %232 : vector<16x64xi1>, vector<16x64xf32>
    %cst_118 = arith.constant dense<0.000000e+00> : vector<16x64xf32>
    %234 = tpu.matmul %233, %230, %cst_118 {dimension_numbers = #tpu.dot_dimension_numbers<[1], [0], [0], [1], [0, 0, 1, 1], [], []>} : vector<16x64xf32>, vector<64x64xf32>, vector<16x64xf32> -> vector<16x64xf32>
    %235 = arith.addf %226, %234 : vector<16x64xf32>
    %cst_119 = arith.constant dense<0.000000e+00> : vector<16x64xf32>
    %236 = tpu.matmul %223, %4, %cst_119 {dimension_numbers = #tpu.dot_dimension_numbers<[1], [0], [0], [1], [0, 0, 1, 1], [], []>} : vector<16x64xf32>, vector<64x64xf32>, vector<16x64xf32> -> vector<16x64xf32>
    %237 = arith.mulf %236, %195 : vector<16x64xf32>
    %238 = arith.addf %235, %237 : vector<16x64xf32>
    %c0_120 = arith.constant 0 : index
    %c48_121 = arith.constant 48 : index
    %c0_122 = arith.constant 0 : index
    %239 = vector.load %arg12[%c0_120, %c48_121, %c0_122] : memref<1x64x64xf32, #tpu.memory_space<vmem>>, vector<1x16x64xf32>
    %240 = vector.shape_cast %239 : vector<1x16x64xf32> to vector<16x64xf32>
    %241 = vector.shape_cast %238 : vector<16x64xf32> to vector<1x16x64xf32>
    tpu.vector_store %arg12[%c0_120, %c48_121, %c0_122], %241 {strides = array<i32>} : memref<1x64x64xf32, #tpu.memory_space<vmem>>, vector<1x16x64xf32>,
    %cst_123 = arith.constant dense<0.000000e+00> : vector<64x64xf32>
    %242 = tpu.matmul %195, %217, %cst_123 {dimension_numbers = #tpu.dot_dimension_numbers<[0], [0], [1], [1], [0, 1, 1, 1], [], []>} : vector<16x64xf32>, vector<16x64xf32>, vector<64x64xf32> -> vector<64x64xf32>
    %243 = vector.broadcast %220 : vector<1x64xf32> to vector<64x64xf32>
    %244 = arith.mulf %225, %243 : vector<64x64xf32>
    %245 = arith.mulf %242, %4 : vector<64x64xf32>
    %246 = arith.addf %244, %245 : vector<64x64xf32>
    %c0_124 = arith.constant 0 : index
    %c0_125 = arith.constant 0 : index
    %c0_126 = arith.constant 0 : index
    %247 = vector.load %arg13[%c0_124, %c0_125, %c0_126] : memref<1x64x64xf32, #tpu.memory_space<vmem>>, vector<1x64x64xf32>
    %248 = vector.shape_cast %247 : vector<1x64x64xf32> to vector<64x64xf32>
    %249 = vector.shape_cast %246 : vector<64x64xf32> to vector<1x64x64xf32>
    tpu.vector_store %arg13[%c0_124, %c0_125, %c0_126], %249 {strides = array<i32>} : memref<1x64x64xf32, #tpu.memory_space<vmem>>, vector<1x64x64xf32>,
    return
  }
  func.func @transform_0(%arg0: i32, %arg1: i32) -> (i32, i32, i32) {
    %c0_i32 = arith.constant 0 : i32
    %c0_i32_0 = arith.constant 0 : i32
    return %arg0, %arg1, %c0_i32 : i32, i32, i32
  }
  func.func @transform_1(%arg0: i32, %arg1: i32) -> (i32, i32, i32) {
    %c0_i32 = arith.constant 0 : i32
    %c0_i32_0 = arith.constant 0 : i32
    return %arg0, %arg1, %c0_i32 : i32, i32, i32
  }
  func.func @transform_2(%arg0: i32, %arg1: i32) -> (i32, i32, i32) {
    %c0_i32 = arith.constant 0 : i32
    %c0_i32_0 = arith.constant 0 : i32
    return %arg0, %arg1, %c0_i32 : i32, i32, i32
  }
  func.func @transform_3(%arg0: i32, %arg1: i32) -> (i32, i32, i32) {
    %c0_i32 = arith.constant 0 : i32
    %c0_i32_0 = arith.constant 0 : i32
    return %arg0, %arg1, %c0_i32 : i32, i32, i32
  }
  func.func @transform_4(%arg0: i32, %arg1: i32) -> (i32, i32) {
    %c0_i32 = arith.constant 0 : i32
    %c0_i32_0 = arith.constant 0 : i32
    %c0_i32_1 = arith.constant 0 : i32
    return %c0_i32, %c0_i32_0 : i32, i32
  }
  func.func @transform_5(%arg0: i32, %arg1: i32) -> (i32, i32) {
    %c0_i32 = arith.constant 0 : i32
    %c0_i32_0 = arith.constant 0 : i32
    %c0_i32_1 = arith.constant 0 : i32
    return %c0_i32, %c0_i32_0 : i32, i32
  }
  func.func @transform_6(%arg0: i32, %arg1: i32) -> (i32, i32) {
    %c0_i32 = arith.constant 0 : i32
    %c0_i32_0 = arith.constant 0 : i32
    %c0_i32_1 = arith.constant 0 : i32
    return %c0_i32, %c0_i32_0 : i32, i32
  }
  func.func @transform_7(%arg0: i32, %arg1: i32) -> (i32, i32) {
    %c0_i32 = arith.constant 0 : i32
    %c0_i32_0 = arith.constant 0 : i32
    %c0_i32_1 = arith.constant 0 : i32
    return %c0_i32, %c0_i32_0 : i32, i32
  }
  func.func @transform_8(%arg0: i32, %arg1: i32) -> (i32, i32) {
    %c0_i32 = arith.constant 0 : i32
    %c0_i32_0 = arith.constant 0 : i32
    %c0_i32_1 = arith.constant 0 : i32
    return %c0_i32, %c0_i32_0 : i32, i32
  }
  func.func @transform_9(%arg0: i32, %arg1: i32) -> (i32, i32, i32) {
    %c0_i32 = arith.constant 0 : i32
    %c0_i32_0 = arith.constant 0 : i32
    %c0_i32_1 = arith.constant 0 : i32
    %c0_i32_2 = arith.constant 0 : i32
    return %c0_i32, %c0_i32_0, %c0_i32_1 : i32, i32, i32
  }
  func.func @transform_10(%arg0: i32, %arg1: i32) -> (i32, i32, i32) {
    %c0_i32 = arith.constant 0 : i32
    %c0_i32_0 = arith.constant 0 : i32
    return %arg0, %arg1, %c0_i32 : i32, i32, i32
  }
}

</mosaic_0001>

<llo_original>
// kernel: eq.22
$region0: #{eq.22}
  %s0 = inlined_call_operand.vmem [shape: s32[4,16], index: 0, kind: input, shape index: {}]
  %s1 = inlined_call_operand.vmem [shape: s32[64], index: 1, kind: output, shape index: {}]
  $region1: #{eq.22} parent=0
    #allocation0 [shape = 'u8[4096]{0}', space=vmem, size = 0x1000, scoped, tag = 'scoped mem for output reshape']
    #allocation1 [shape = 'u8[4096]{0}', space=vmem, size = 0x1000, scoped, tag = 'scoped mem for input reshape']
    %s3 = sshllo.u32 0, 4
    %v4 = vld [vmem:[%s0] sm:%s3]
    %5 = vst [vmem:[#allocation1] sm:%s3] %v4
    %v6 = vld [vmem:[#allocation1] sm:$0x1]
    %vm7 = vcmask 130048
    %8 = vst.msk [vmem:[#allocation0] sm:$0x1] %vm7, %v6
    %s9 = scalar_lea.vmem [#allocation1], 3
    %v10 = vld [vmem:[%s9] sm:$0x1]
    %11 = vrot.lane.b32.xlu0 %v10, 48
    %v12 = vpop.permute.xlu0 %11
    %vm13 = vcmask 523648
    %14 = vst.msk [vmem:[#allocation0] sm:$0x1] %vm13, %v12
    %s15 = scalar_lea.vmem [#allocation1], 2
    %v16 = vld [vmem:[%s15] sm:$0x1]
    %17 = vrot.lane.b32.xlu0 %v16, 32
    %v18 = vpop.permute.xlu0 %17
    %vm19 = vcmask 392448
    %20 = vst.msk [vmem:[#allocation0] sm:$0x1] %vm19, %v18
    %s21 = scalar_lea.vmem [#allocation1], 1
    %v22 = vld [vmem:[%s21] sm:$0x1]
    %23 = vrot.lane.b32.xlu0 %v22, 16
    %v24 = vpop.permute.xlu0 %23
    %vm25 = vcmask 261248
    %26 = vst.msk [vmem:[#allocation0] sm:$0x1] %vm25, %v24
    %s28 = sshllo.u32 0, 1
    %v30 = vld [vmem:[#allocation0] sm:%s28]
    %s31 = sshllo.u32 0, 1
    %32 = vst [vmem:[%s1] sm:%s31] %v30

// kernel: tile.9
$region0: #{tile.9}
  %s0 = inlined_call_operand.vmem [shape: f32[16,4,16], index: 0, kind: input, shape index: {}]
  %s1 = inlined_call_operand.vmem [shape: f32[16,64], index: 1, kind: output, shape index: {}]
  $region1: #{tile.9} parent=0
    #allocation0 [shape = 'u8[65536]{0}', space=vmem, size = 0x10000, scoped, tag = 'scoped mem for input reshape']
    %s3 = sshllo.u32 0, 4
    %s4 = smul.addr 4, 15
    %s5 = scalar_lea.vmem %s0, %s4
    %v6 = vld [vmem:[%s5] sm:%s3]
    %s7 = scalar_lea.vmem [#allocation0], 120
    %8 = vst [vmem:[%s7] sm:%s3] %v6
    %s9 = smul.addr 4, 14
    %s10 = scalar_lea.vmem %s0, %s9
    %v11 = vld [vmem:[%s10] sm:%s3]
    %s12 = scalar_lea.vmem [#allocation0], 112
    %13 = vst [vmem:[%s12] sm:%s3] %v11
    %s14 = smul.addr 4, 13
    %s15 = scalar_lea.vmem %s0, %s14
    %v16 = vld [vmem:[%s15] sm:%s3]
    %s17 = scalar_lea.vmem [#allocation0], 104
    %18 = vst [vmem:[%s17] sm:%s3] %v16
    %s19 = smul.addr 4, 12
    %s20 = scalar_lea.vmem %s0, %s19
    %v21 = vld [vmem:[%s20] sm:%s3]
    %s22 = scalar_lea.vmem [#allocation0], 96
    %23 = vst [vmem:[%s22] sm:%s3] %v21
    %s24 = smul.addr 4, 11
    %s25 = scalar_lea.vmem %s0, %s24
    %v26 = vld [vmem:[%s25] sm:%s3]
    %s27 = scalar_lea.vmem [#allocation0], 88
    %28 = vst [vmem:[%s27] sm:%s3] %v26
    %s29 = smul.addr 4, 10
    %s30 = scalar_lea.vmem %s0, %s29
    %v31 = vld [vmem:[%s30] sm:%s3]
    %s32 = scalar_lea.vmem [#allocation0], 80
    %33 = vst [vmem:[%s32] sm:%s3] %v31
    %s34 = smul.addr 4, 9
    %s35 = scalar_lea.vmem %s0, %s34
    %v36 = vld [vmem:[%s35] sm:%s3]
    %s37 = scalar_lea.vmem [#allocation0], 72
    %38 = vst [vmem:[%s37] sm:%s3] %v36
    %s39 = smul.addr 4, 8
    %s40 = scalar_lea.vmem %s0, %s39
    %v41 = vld [vmem:[%s40] sm:%s3]
    %s42 = scalar_lea.vmem [#allocation0], 64
    %43 = vst [vmem:[%s42] sm:%s3] %v41
    %s44 = smul.addr 4, 7
    %s45 = scalar_lea.vmem %s0, %s44
    %v46 = vld [vmem:[%s45] sm:%s3]
    %s47 = scalar_lea.vmem [#allocation0], 56
    %48 = vst [vmem:[%s47] sm:%s3] %v46
    %s49 = smul.addr 4, 6
    %s50 = scalar_lea.vmem %s0, %s49
    %v51 = vld [vmem:[%s50] sm:%s3]
    %s52 = scalar_lea.vmem [#allocation0], 48
    %53 = vst [vmem:[%s52] sm:%s3] %v51
    %s54 = smul.addr 4, 5
    %s55 = scalar_lea.vmem %s0, %s54
    %v56 = vld [vmem:[%s55] sm:%s3]
    %s57 = scalar_lea.vmem [#allocation0], 40
    %58 = vst [vmem:[%s57] sm:%s3] %v56
    %s59 = smul.addr 4, 4
    %s60 = scalar_lea.vmem %s0, %s59
    %v61 = vld [vmem:[%s60] sm:%s3]
    %s62 = scalar_lea.vmem [#allocation0], 32
    %63 = vst [vmem:[%s62] sm:%s3] %v61
    %s64 = smul.addr 4, 3
    %s65 = scalar_lea.vmem %s0, %s64
    %v66 = vld [vmem:[%s65] sm:%s3]
    %s67 = scalar_lea.vmem [#allocation0], 24
    %68 = vst [vmem:[%s67] sm:%s3] %v66
    %s69 = smul.addr 4, 2
    %s70 = scalar_lea.vmem %s0, %s69
    %v71 = vld [vmem:[%s70] sm:%s3]
    %s72 = scalar_lea.vmem [#allocation0], 16
    %73 = vst [vmem:[%s72] sm:%s3] %v71
    %s74 = scalar_lea.vmem %s0, 4
    %v75 = vld [vmem:[%s74] sm:%s3]
    %s76 = scalar_lea.vmem [#allocation0], 8
    %77 = vst [vmem:[%s76] sm:%s3] %v75
    %v78 = vld [vmem:[%s0] sm:%s3]
    %79 = vst [vmem:[#allocation0] sm:%s3] %v78
    %v80 = vld [vmem:[#allocation0] ss:$8 sm:$0xf]
    %v81 = vld [vmem:[#allocation0] ss:$8 sm:$0xf0]
    %vm82 = vcmask 1047556
    %v83 = vsel %vm82, %v81, %v80
    %vm84 = vcmask 130048
    %85 = vst.msk [vmem:[%s1] sm:$0xff] %vm84, %v83
    %s86 = scalar_lea.vmem [#allocation0], 64
    %v87 = vld [vmem:[%s86] ss:$8 sm:$0xf]
    %s88 = scalar_lea.vmem [#allocation0], 64
    %v89 = vld [vmem:[%s88] ss:$8 sm:$0xf0]
    %vm90 = vcmask 1047556
    %v91 = vsel %vm90, %v89, %v87
    %vm92 = vcmask 130048
    %s93 = scalar_lea.vmem %s1, 8
    %94 = vst.msk [vmem:[%s93] sm:$0xff] %vm92, %v91
    %s95 = scalar_lea.vmem [#allocation0], 3
    %v96 = vld [vmem:[%s95] ss:$8 sm:$0xf]
    %s97 = scalar_lea.vmem [#allocation0], 3
    %v98 = vld [vmem:[%s97] ss:$8 sm:$0xf0]
    %vm99 = vcmask 1047556
    %v100 = vsel %vm99, %v98, %v96
    %101 = vrot.lane.b32.xlu0 %v100, 48
    %v102 = vpop.permute.xlu0 %101
    %vm103 = vcmask 523648
    %104 = vst.msk [vmem:[%s1] sm:$0xff] %vm103, %v102
    %s105 = scalar_lea.vmem [#allocation0], 67
    %v106 = vld [vmem:[%s105] ss:$8 sm:$0xf]
    %s107 = scalar_lea.vmem [#allocation0], 67
    %v108 = vld [vmem:[%s107] ss:$8 sm:$0xf0]
    %vm109 = vcmask 1047556
    %v110 = vsel %vm109, %v108, %v106
    %111 = vrot.lane.b32.xlu0 %v110, 48
    %v112 = vpop.permute.xlu0 %111
    %vm113 = vcmask 523648
    %s114 = scalar_lea.vmem %s1, 8
    %115 = vst.msk [vmem:[%s114] sm:$0xff] %vm113, %v112
    %s116 = scalar_lea.vmem [#allocation0], 2
    %v117 = vld [vmem:[%s116] ss:$8 sm:$0xf]
    %s118 = scalar_lea.vmem [#allocation0], 2
    %v119 = vld [vmem:[%s118] ss:$8 sm:$0xf0]
    %vm120 = vcmask 1047556
    %v121 = vsel %vm120, %v119, %v117
    %122 = vrot.lane.b32.xlu0 %v121, 32
    %v123 = vpop.permute.xlu0 %122
    %vm124 = vcmask 392448
    %125 = vst.msk [vmem:[%s1] sm:$0xff] %vm124, %v123
    %s126 = scalar_lea.vmem [#allocation0], 66
    %v127 = vld [vmem:[%s126] ss:$8 sm:$0xf]
    %s128 = scalar_lea.vmem [#allocation0], 66
    %v129 = vld [vmem:[%s128] ss:$8 sm:$0xf0]
    %vm130 = vcmask 1047556
    %v131 = vsel %vm130, %v129, %v127
    %132 = vrot.lane.b32.xlu0 %v131, 32
    %v133 = vpop.permute.xlu0 %132
    %vm134 = vcmask 392448
    %s135 = scalar_lea.vmem %s1, 8
    %136 = vst.msk [vmem:[%s135] sm:$0xff] %vm134, %v133
    %s137 = scalar_lea.vmem [#allocation0], 1
    %v138 = vld [vmem:[%s137] ss:$8 sm:$0xf]
    %s139 = scalar_lea.vmem [#allocation0], 1
    %v140 = vld [vmem:[%s139] ss:$8 sm:$0xf0]
    %vm141 = vcmask 1047556
    %v142 = vsel %vm141, %v140, %v138
    %143 = vrot.lane.b32.xlu0 %v142, 16
    %v144 = vpop.permute.xlu0 %143
    %vm145 = vcmask 261248
    %146 = vst.msk [vmem:[%s1] sm:$0xff] %vm145, %v144
    %s147 = scalar_lea.vmem [#allocation0], 65
    %v148 = vld [vmem:[%s147] ss:$8 sm:$0xf]
    %s149 = scalar_lea.vmem [#allocation0], 65
    %v150 = vld [vmem:[%s149] ss:$8 sm:$0xf0]
    %vm151 = vcmask 1047556
    %v152 = vsel %vm151, %v150, %v148
    %153 = vrot.lane.b32.xlu0 %v152, 16
    %v154 = vpop.permute.xlu0 %153
    %vm155 = vcmask 261248
    %s156 = scalar_lea.vmem %s1, 8
    %157 = vst.msk [vmem:[%s156] sm:$0xff] %vm155, %v154

// kernel: squeeze.9
$region0: #{squeeze.9}
  %s0 = inlined_call_operand.vmem [shape: f32[1,160,64], index: 0, kind: input, shape index: {}]
  %s1 = inlined_call_operand.vmem [shape: f32[2,80,64], index: 1, kind: output, shape index: {}]
  $region1: #{squeeze.9} parent=0
    #allocation0 [shape = 'u8[262144]{0}', space=vmem, size = 0x40000, scoped, tag = 'scoped mem for output reshape']
    %v2 = vld [vmem:[%s0] sm:$0xff]
    %vm3 = vcmask 654336
    %4 = vst.msk [vmem:[#allocation0] ss:$8 sm:$0xf] %vm3, %v2
    %5 = vst.msk [vmem:[#allocation0] ss:$8 sm:$0xf0] %vm3, %v2
    %s6 = scalar_lea.vmem %s0, 16
    %v7 = vld [vmem:[%s6] sm:$0xff]
    %vm8 = vcmask 654336
    %s9 = scalar_lea.vmem [#allocation0], 64
    %10 = vst.msk [vmem:[%s9] ss:$8 sm:$0xf] %vm8, %v7
    %s11 = scalar_lea.vmem [#allocation0], 64
    %12 = vst.msk [vmem:[%s11] ss:$8 sm:$0xf0] %vm8, %v7
    %s13 = scalar_lea.vmem %s0, 32
    %v14 = vld [vmem:[%s13] sm:$0xff]
    %vm15 = vcmask 654336
    %s16 = scalar_lea.vmem [#allocation0], 128
    %17 = vst.msk [vmem:[%s16] ss:$8 sm:$0xf] %vm15, %v14
    %s18 = scalar_lea.vmem [#allocation0], 128
    %19 = vst.msk [vmem:[%s18] ss:$8 sm:$0xf0] %vm15, %v14
    %s20 = scalar_lea.vmem %s0, 48
    %v21 = vld [vmem:[%s20] sm:$0xff]
    %vm22 = vcmask 654336
    %s23 = scalar_lea.vmem [#allocation0], 192
    %24 = vst.msk [vmem:[%s23] ss:$8 sm:$0xf] %vm22, %v21
    %s25 = scalar_lea.vmem [#allocation0], 192
    %26 = vst.msk [vmem:[%s25] ss:$8 sm:$0xf0] %vm22, %v21
    %s27 = scalar_lea.vmem %s0, 64
    %v28 = vld [vmem:[%s27] sm:$0xff]
    %vm29 = vcmask 654336
    %s30 = scalar_lea.vmem [#allocation0], 256
    %31 = vst.msk [vmem:[%s30] ss:$8 sm:$0xf] %vm29, %v28
    %s32 = scalar_lea.vmem [#allocation0], 256
    %33 = vst.msk [vmem:[%s32] ss:$8 sm:$0xf0] %vm29, %v28
    %s34 = scalar_lea.vmem %s0, 80
    %v35 = vld [vmem:[%s34] sm:$0xff]
    %vm36 = vcmask 654336
    %s37 = scalar_lea.vmem [#allocation0], 320
    %38 = vst.msk [vmem:[%s37] ss:$8 sm:$0xf] %vm36, %v35
    %s39 = scalar_lea.vmem [#allocation0], 320
    %40 = vst.msk [vmem:[%s39] ss:$8 sm:$0xf0] %vm36, %v35
    %s41 = scalar_lea.vmem %s0, 96
    %v42 = vld [vmem:[%s41] sm:$0xff]
    %vm43 = vcmask 654336
    %s44 = scalar_lea.vmem [#allocation0], 384
    %45 = vst.msk [vmem:[%s44] ss:$8 sm:$0xf] %vm43, %v42
    %s46 = scalar_lea.vmem [#allocation0], 384
    %47 = vst.msk [vmem:[%s46] ss:$8 sm:$0xf0] %vm43, %v42
    %s48 = scalar_lea.vmem %s0, 112
    %v49 = vld [vmem:[%s48] sm:$0xff]
    %vm50 = vcmask 654336
    %s51 = scalar_lea.vmem [#allocation0], 448
    %52 = vst.msk [vmem:[%s51] ss:$8 sm:$0xf] %vm50, %v49
    %s53 = scalar_lea.vmem [#allocation0], 448
    %54 = vst.msk [vmem:[%s53] ss:$8 sm:$0xf0] %vm50, %v49
    %v55 = vld [vmem:[%s0] sm:$0xff]
    %s56 = scalar_lea.vmem %s0, 8
    %v57 = vld [vmem:[%s56] sm:$0xff]
    %vm58 = vcmask 654336
    %v59 = vsel %vm58, %v57, %v55
    %60 = vrot.lane.b32.xlu0 %v59, 48
    %v61 = vpop.permute.xlu0 %60
    %vm62 = vcmask 392192
    %s63 = scalar_lea.vmem [#allocation0], 1
    %64 = vst.msk [vmem:[%s63] ss:$8 sm:$0xf] %vm62, %v61
    %s65 = scalar_lea.vmem [#allocation0], 1
    %66 = vst.msk [vmem:[%s65] ss:$8 sm:$0xf0] %vm62, %v61
    %vm67 = vcmask 654720
    %s68 = scalar_lea.vmem [#allocation0], 1
    %69 = vst.msk [vmem:[%s68] ss:$8 sm:$0xf] %vm67, %v61
    %s70 = scalar_lea.vmem [#allocation0], 1
    %71 = vst.msk [vmem:[%s70] ss:$8 sm:$0xf0] %vm67, %v61
    %s72 = scalar_lea.vmem %s0, 16
    %v73 = vld [vmem:[%s72] sm:$0xff]
    %s74 = scalar_lea.vmem %s0, 24
    %v75 = vld [vmem:[%s74] sm:$0xff]
    %vm76 = vcmask 654336
    %v77 = vsel %vm76, %v75, %v73
    %78 = vrot.lane.b32.xlu0 %v77, 48
    %v79 = vpop.permute.xlu0 %78
    %vm80 = vcmask 392192
    %s81 = scalar_lea.vmem [#allocation0], 65
    %82 = vst.msk [vmem:[%s81] ss:$8 sm:$0xf] %vm80, %v79
    %s83 = scalar_lea.vmem [#allocation0], 65
    %84 = vst.msk [vmem:[%s83] ss:$8 sm:$0xf0] %vm80, %v79
    %vm85 = vcmask 654720
    %s86 = scalar_lea.vmem [#allocation0], 65
    %87 = vst.msk [vmem:[%s86] ss:$8 sm:$0xf] %vm85, %v79
    %s88 = scalar_lea.vmem [#allocation0], 65
    %89 = vst.msk [vmem:[%s88] ss:$8 sm:$0xf0] %vm85, %v79
    %s90 = scalar_lea.vmem %s0, 32
    %v91 = vld [vmem:[%s90] sm:$0xff]
    %s92 = scalar_lea.vmem %s0, 40
    %v93 = vld [vmem:[%s92] sm:$0xff]
    %vm94 = vcmask 654336
    %v95 = vsel %vm94, %v93, %v91
    %96 = vrot.lane.b32.xlu0 %v95, 48
    %v97 = vpop.permute.xlu0 %96
    %vm98 = vcmask 392192
    %s99 = scalar_lea.vmem [#allocation0], 129
    %100 = vst.msk [vmem:[%s99] ss:$8 sm:$0xf] %vm98, %v97
    %s101 = scalar_lea.vmem [#allocation0], 129
    %102 = vst.msk [vmem:[%s101] ss:$8 sm:$0xf0] %vm98, %v97
    %vm103 = vcmask 654720
    %s104 = scalar_lea.vmem [#allocation0], 129
    %105 = vst.msk [vmem:[%s104] ss:$8 sm:$0xf] %vm103, %v97
    %s106 = scalar_lea.vmem [#allocation0], 129
    %107 = vst.msk [vmem:[%s106] ss:$8 sm:$0xf0] %vm103, %v97
    %s108 = scalar_lea.vmem %s0, 48
    %v109 = vld [vmem:[%s108] sm:$0xff]
    %s110 = scalar_lea.vmem %s0, 56
    %v111 = vld [vmem:[%s110] sm:$0xff]
    %vm112 = vcmask 654336
    %v113 = vsel %vm112, %v111, %v109
    %114 = vrot.lane.b32.xlu0 %v113, 48
    %v115 = vpop.permute.xlu0 %114
    %vm116 = vcmask 392192
    %s117 = scalar_lea.vmem [#allocation0], 193
    %118 = vst.msk [vmem:[%s117] ss:$8 sm:$0xf] %vm116, %v115
    %s119 = scalar_lea.vmem [#allocation0], 193
    %120 = vst.msk [vmem:[%s119] ss:$8 sm:$0xf0] %vm116, %v115
    %vm121 = vcmask 654720
    %s122 = scalar_lea.vmem [#allocation0], 193
    %123 = vst.msk [vmem:[%s122] ss:$8 sm:$0xf] %vm121, %v115
    %s124 = scalar_lea.vmem [#allocation0], 193
    %125 = vst.msk [vmem:[%s124] ss:$8 sm:$0xf0] %vm121, %v115
    %s126 = scalar_lea.vmem %s0, 64
    %v127 = vld [vmem:[%s126] sm:$0xff]
    %s128 = scalar_lea.vmem %s0, 72
    %v129 = vld [vmem:[%s128] sm:$0xff]
    %vm130 = vcmask 654336
    %v131 = vsel %vm130, %v129, %v127
    %132 = vrot.lane.b32.xlu0 %v131, 48
    %v133 = vpop.permute.xlu0 %132
    %vm134 = vcmask 392192
    %s135 = scalar_lea.vmem [#allocation0], 257
    %136 = vst.msk [vmem:[%s135] ss:$8 sm:$0xf] %vm134, %v133
    %s137 = scalar_lea.vmem [#allocation0], 257
    %138 = vst.msk [vmem:[%s137] ss:$8 sm:$0xf0] %vm134, %v133
    %vm139 = vcmask 654720
    %s140 = scalar_lea.vmem [#allocation0], 257
    %141 = vst.msk [vmem:[%s140] ss:$8 sm:$0xf] %vm139, %v133
    %s142 = scalar_lea.vmem [#allocation0], 257
    %143 = vst.msk [vmem:[%s142] ss:$8 sm:$0xf0] %vm139, %v133
    %s144 = scalar_lea.vmem %s0, 80
    %v145 = vld [vmem:[%s144] sm:$0xff]
    %s146 = scalar_lea.vmem %s0, 88
    %v147 = vld [vmem:[%s146] sm:$0xff]
    %vm148 = vcmask 654336
    %v149 = vsel %vm148, %v147, %v145
    %150 = vrot.lane.b32.xlu0 %v149, 48
    %v151 = vpop.permute.xlu0 %150
    %vm152 = vcmask 392192
    %s153 = scalar_lea.vmem [#allocation0], 321
    %154 = vst.msk [vmem:[%s153] ss:$8 sm:$0xf] %vm152, %v151
    %s155 = scalar_lea.vmem [#allocation0], 321
    %156 = vst.msk [vmem:[%s155] ss:$8 sm:$0xf0] %vm152, %v151
    %vm157 = vcmask 654720
    %s158 = scalar_lea.vmem [#allocation0], 321
    %159 = vst.msk [vmem:[%s158] ss:$8 sm:$0xf] %vm157, %v151
    %s160 = scalar_lea.vmem [#allocation0], 321
    %161 = vst.msk [vmem:[%s160] ss:$8 sm:$0xf0] %vm157, %v151
    %s162 = scalar_lea.vmem %s0, 96
    %v163 = vld [vmem:[%s162] sm:$0xff]
    %s164 = scalar_lea.vmem %s0, 104
    %v165 = vld [vmem:[%s164] sm:$0xff]
    %vm166 = vcmask 654336
    %v167 = vsel %vm166, %v165, %v163
    %168 = vrot.lane.b32.xlu0 %v167, 48
    %v169 = vpop.permute.xlu0 %168
    %vm170 = vcmask 392192
    %s171 = scalar_lea.vmem [#allocation0], 385
    %172 = vst.msk [vmem:[%s171] ss:$8 sm:$0xf] %vm170, %v169
    %s173 = scalar_lea.vmem [#allocation0], 385
    %174 = vst.msk [vmem:[%s173] ss:$8 sm:$0xf0] %vm170, %v169
    %vm175 = vcmask 654720
    %s176 = scalar_lea.vmem [#allocation0], 385
    %177 = vst.msk [vmem:[%s176] ss:$8 sm:$0xf] %vm175, %v169
    %s178 = scalar_lea.vmem [#allocation0], 385
    %179 = vst.msk [vmem:[%s178] ss:$8 sm:$0xf0] %vm175, %v169
    %s180 = scalar_lea.vmem %s0, 112
    %v181 = vld [vmem:[%s180] sm:$0xff]
    %s182 = scalar_lea.vmem %s0, 120
    %v183 = vld [vmem:[%s182] sm:$0xff]
    %vm184 = vcmask 654336
    %v185 = vsel %vm184, %v183, %v181
    %186 = vrot.lane.b32.xlu0 %v185, 48
    %v187 = vpop.permute.xlu0 %186
    %vm188 = vcmask 392192
    %s189 = scalar_lea.vmem [#allocation0], 449
    %190 = vst.msk [vmem:[%s189] ss:$8 sm:$0xf] %vm188, %v187
    %s191 = scalar_lea.vmem [#allocation0], 449
    %192 = vst.msk [vmem:[%s191] ss:$8 sm:$0xf0] %vm188, %v187
    %vm193 = vcmask 654720
    %s194 = scalar_lea.vmem [#allocation0], 449
    %195 = vst.msk [vmem:[%s194] ss:$8 sm:$0xf] %vm193, %v187
    %s196 = scalar_lea.vmem [#allocation0], 449
    %197 = vst.msk [vmem:[%s196] ss:$8 sm:$0xf0] %vm193, %v187
    %s199 = sshllo.u32 0, 2
    %v201 = vld [vmem:[#allocation0] sm:%s199]
    %s202 = sshllo.u32 0, 2
    %203 = vst [vmem:[%s1] sm:%s202] %v201
    %s204 = scalar_lea.vmem [#allocation0], 8
    %v205 = vld [vmem:[%s204] sm:%s199]
    %s206 = sshllo.u32 0, 2
    %s207 = scalar_lea.vmem %s1, 2
    %208 = vst [vmem:[%s207] sm:%s206] %v205
    %s209 = scalar_lea.vmem [#allocation0], 16
    %v210 = vld [vmem:[%s209] sm:%s199]
    %s211 = sshllo.u32 0, 2
    %s212 = smul.addr 2, 2
    %s213 = scalar_lea.vmem %s1, %s212
    %214 = vst [vmem:[%s213] sm:%s211] %v210
    %s215 = scalar_lea.vmem [#allocation0], 24
    %v216 = vld [vmem:[%s215] sm:%s199]
    %s217 = sshllo.u32 0, 2
    %s218 = smul.addr 2, 3
    %s219 = scalar_lea.vmem %s1, %s218
    %220 = vst [vmem:[%s219] sm:%s217] %v216
    %s221 = scalar_lea.vmem [#allocation0], 32
    %v222 = vld [vmem:[%s221] sm:%s199]
    %s223 = sshllo.u32 0, 2
    %s224 = smul.addr 2, 4
    %s225 = scalar_lea.vmem %s1, %s224
    %226 = vst [vmem:[%s225] sm:%s223] %v222
    %s227 = scalar_lea.vmem [#allocation0], 40
    %v228 = vld [vmem:[%s227] sm:%s199]
    %s229 = sshllo.u32 0, 2
    %s230 = smul.addr 2, 5
    %s231 = scalar_lea.vmem %s1, %s230
    %232 = vst [vmem:[%s231] sm:%s229] %v228
    %s233 = scalar_lea.vmem [#allocation0], 48
    %v234 = vld [vmem:[%s233] sm:%s199]
    %s235 = sshllo.u32 0, 2
    %s236 = smul.addr 2, 6
    %s237 = scalar_lea.vmem %s1, %s236
    %238 = vst [vmem:[%s237] sm:%s235] %v234
    %s239 = scalar_lea.vmem [#allocation0], 56
    %v240 = vld [vmem:[%s239] sm:%s199]
    %s241 = sshllo.u32 0, 2
    %s242 = smul.addr 2, 7
    %s243 = scalar_lea.vmem %s1, %s242
    %244 = vst [vmem:[%s243] sm:%s241] %v240
    %s245 = scalar_lea.vmem [#allocation0], 64
    %v246 = vld [vmem:[%s245] sm:%s199]
    %s247 = sshllo.u32 0, 2
    %s248 = smul.addr 2, 8
    %s249 = scalar_lea.vmem %s1, %s248
    %250 = vst [vmem:[%s249] sm:%s247] %v246
    %s251 = scalar_lea.vmem [#allocation0], 72
    %v252 = vld [vmem:[%s251] sm:%s199]
    %s253 = sshllo.u32 0, 2
    %s254 = smul.addr 2, 9
    %s255 = scalar_lea.vmem %s1, %s254
    %256 = vst [vmem:[%s255] sm:%s253] %v252
    %s257 = scalar_lea.vmem [#allocation0], 80
    %v258 = vld [vmem:[%s257] sm:%s199]
    %s259 = sshllo.u32 0, 2
    %s260 = smul.addr 2, 10
    %s261 = scalar_lea.vmem %s1, %s260
    %262 = vst [vmem:[%s261] sm:%s259] %v258
    %s263 = scalar_lea.vmem [#allocation0], 88
    %v264 = vld [vmem:[%s263] sm:%s199]
    %s265 = sshllo.u32 0, 2
    %s266 = smul.addr 2, 11
    %s267 = scalar_lea.vmem %s1, %s266
    %268 = vst [vmem:[%s267] sm:%s265] %v264
    %s269 = scalar_lea.vmem [#allocation0], 96
    %v270 = vld [vmem:[%s269] sm:%s199]
    %s271 = sshllo.u32 0, 2
    %s272 = smul.addr 2, 12
    %s273 = scalar_lea.vmem %s1, %s272
    %274 = vst [vmem:[%s273] sm:%s271] %v270
    %s275 = scalar_lea.vmem [#allocation0], 104
    %v276 = vld [vmem:[%s275] sm:%s199]
    %s277 = sshllo.u32 0, 2
    %s278 = smul.addr 2, 13
    %s279 = scalar_lea.vmem %s1, %s278
    %280 = vst [vmem:[%s279] sm:%s277] %v276
    %s281 = scalar_lea.vmem [#allocation0], 112
    %v282 = vld [vmem:[%s281] sm:%s199]
    %s283 = sshllo.u32 0, 2
    %s284 = smul.addr 2, 14
    %s285 = scalar_lea.vmem %s1, %s284
    %286 = vst [vmem:[%s285] sm:%s283] %v282
    %s287 = scalar_lea.vmem [#allocation0], 120
    %v288 = vld [vmem:[%s287] sm:%s199]
    %s289 = sshllo.u32 0, 2
    %s290 = smul.addr 2, 15
    %s291 = scalar_lea.vmem %s1, %s290
    %292 = vst [vmem:[%s291] sm:%s289] %v288
    %s293 = scalar_lea.vmem [#allocation0], 128
    %v294 = vld [vmem:[%s293] sm:%s199]
    %s295 = sshllo.u32 0, 2
    %s296 = smul.addr 2, 16
    %s297 = scalar_lea.vmem %s1, %s296
    %298 = vst [vmem:[%s297] sm:%s295] %v294
    %s299 = scalar_lea.vmem [#allocation0], 136
    %v300 = vld [vmem:[%s299] sm:%s199]
    %s301 = sshllo.u32 0, 2
    %s302 = smul.addr 2, 17
    %s303 = scalar_lea.vmem %s1, %s302
    %304 = vst [vmem:[%s303] sm:%s301] %v300
    %s305 = scalar_lea.vmem [#allocation0], 144
    %v306 = vld [vmem:[%s305] sm:%s199]
    %s307 = sshllo.u32 0, 2
    %s308 = smul.addr 2, 18
    %s309 = scalar_lea.vmem %s1, %s308
    %310 = vst [vmem:[%s309] sm:%s307] %v306
    %s311 = scalar_lea.vmem [#allocation0], 152
    %v312 = vld [vmem:[%s311] sm:%s199]
    %s313 = sshllo.u32 0, 2
    %s314 = smul.addr 2, 19
    %s315 = scalar_lea.vmem %s1, %s314
    %316 = vst [vmem:[%s315] sm:%s313] %v312
    %s317 = scalar_lea.vmem [#allocation0], 160
    %v318 = vld [vmem:[%s317] sm:%s199]
    %s319 = sshllo.u32 0, 2
    %s320 = smul.addr 2, 20
    %s321 = scalar_lea.vmem %s1, %s320
    %322 = vst [vmem:[%s321] sm:%s319] %v318
    %s323 = scalar_lea.vmem [#allocation0], 168
    %v324 = vld [vmem:[%s323] sm:%s199]
    %s325 = sshllo.u32 0, 2
    %s326 = smul.addr 2, 21
    %s327 = scalar_lea.vmem %s1, %s326
    %328 = vst [vmem:[%s327] sm:%s325] %v324
    %s329 = scalar_lea.vmem [#allocation0], 176
    %v330 = vld [vmem:[%s329] sm:%s199]
    %s331 = sshllo.u32 0, 2
    %s332 = smul.addr 2, 22
    %s333 = scalar_lea.vmem %s1, %s332
    %334 = vst [vmem:[%s333] sm:%s331] %v330
    %s335 = scalar_lea.vmem [#allocation0], 184
    %v336 = vld [vmem:[%s335] sm:%s199]
    %s337 = sshllo.u32 0, 2
    %s338 = smul.addr 2, 23
    %s339 = scalar_lea.vmem %s1, %s338
    %340 = vst [vmem:[%s339] sm:%s337] %v336
    %s341 = scalar_lea.vmem [#allocation0], 192
    %v342 = vld [vmem:[%s341] sm:%s199]
    %s343 = sshllo.u32 0, 2
    %s344 = smul.addr 2, 24
    %s345 = scalar_lea.vmem %s1, %s344
    %346 = vst [vmem:[%s345] sm:%s343] %v342
    %s347 = scalar_lea.vmem [#allocation0], 200
    %v348 = vld [vmem:[%s347] sm:%s199]
    %s349 = sshllo.u32 0, 2
    %s350 = smul.addr 2, 25
    %s351 = scalar_lea.vmem %s1, %s350
    %352 = vst [vmem:[%s351] sm:%s349] %v348
    %s353 = scalar_lea.vmem [#allocation0], 208
    %v354 = vld [vmem:[%s353] sm:%s199]
    %s355 = sshllo.u32 0, 2
    %s356 = smul.addr 2, 26
    %s357 = scalar_lea.vmem %s1, %s356
    %358 = vst [vmem:[%s357] sm:%s355] %v354
    %s359 = scalar_lea.vmem [#allocation0], 216
    %v360 = vld [vmem:[%s359] sm:%s199]
    %s361 = sshllo.u32 0, 2
    %s362 = smul.addr 2, 27
    %s363 = scalar_lea.vmem %s1, %s362
    %364 = vst [vmem:[%s363] sm:%s361] %v360
    %s365 = scalar_lea.vmem [#allocation0], 224
    %v366 = vld [vmem:[%s365] sm:%s199]
    %s367 = sshllo.u32 0, 2
    %s368 = smul.addr 2, 28
    %s369 = scalar_lea.vmem %s1, %s368
    %370 = vst [vmem:[%s369] sm:%s367] %v366
    %s371 = scalar_lea.vmem [#allocation0], 232
    %v372 = vld [vmem:[%s371] sm:%s199]
    %s373 = sshllo.u32 0, 2
    %s374 = smul.addr 2, 29
    %s375 = scalar_lea.vmem %s1, %s374
    %376 = vst [vmem:[%s375] sm:%s373] %v372
    %s377 = scalar_lea.vmem [#allocation0], 240
    %v378 = vld [vmem:[%s377] sm:%s199]
    %s379 = sshllo.u32 0, 2
    %s380 = smul.addr 2, 30
    %s381 = scalar_lea.vmem %s1, %s380
    %382 = vst [vmem:[%s381] sm:%s379] %v378
    %s383 = scalar_lea.vmem [#allocation0], 248
    %v384 = vld [vmem:[%s383] sm:%s199]
    %s385 = sshllo.u32 0, 2
    %s386 = smul.addr 2, 31
    %s387 = scalar_lea.vmem %s1, %s386
    %388 = vst [vmem:[%s387] sm:%s385] %v384
    %s389 = scalar_lea.vmem [#allocation0], 256
    %v390 = vld [vmem:[%s389] sm:%s199]
    %s391 = sshllo.u32 0, 2
    %s392 = smul.addr 2, 32
    %s393 = scalar_lea.vmem %s1, %s392
    %394 = vst [vmem:[%s393] sm:%s391] %v390
    %s395 = scalar_lea.vmem [#allocation0], 264
    %v396 = vld [vmem:[%s395] sm:%s199]
    %s397 = sshllo.u32 0, 2
    %s398 = smul.addr 2, 33
    %s399 = scalar_lea.vmem %s1, %s398
    %400 = vst [vmem:[%s399] sm:%s397] %v396
    %s401 = scalar_lea.vmem [#allocation0], 272
    %v402 = vld [vmem:[%s401] sm:%s199]
    %s403 = sshllo.u32 0, 2
    %s404 = smul.addr 2, 34
    %s405 = scalar_lea.vmem %s1, %s404
    %406 = vst [vmem:[%s405] sm:%s403] %v402
    %s407 = scalar_lea.vmem [#allocation0], 280
    %v408 = vld [vmem:[%s407] sm:%s199]
    %s409 = sshllo.u32 0, 2
    %s410 = smul.addr 2, 35
    %s411 = scalar_lea.vmem %s1, %s410
    %412 = vst [vmem:[%s411] sm:%s409] %v408
    %s413 = scalar_lea.vmem [#allocation0], 288
    %v414 = vld [vmem:[%s413] sm:%s199]
    %s415 = sshllo.u32 0, 2
    %s416 = smul.addr 2, 36
    %s417 = scalar_lea.vmem %s1, %s416
    %418 = vst [vmem:[%s417] sm:%s415] %v414
    %s419 = scalar_lea.vmem [#allocation0], 296
    %v420 = vld [vmem:[%s419] sm:%s199]
    %s421 = sshllo.u32 0, 2
    %s422 = smul.addr 2, 37
    %s423 = scalar_lea.vmem %s1, %s422
    %424 = vst [vmem:[%s423] sm:%s421] %v420
    %s425 = scalar_lea.vmem [#allocation0], 304
    %v426 = vld [vmem:[%s425] sm:%s199]
    %s427 = sshllo.u32 0, 2
    %s428 = smul.addr 2, 38
    %s429 = scalar_lea.vmem %s1, %s428
    %430 = vst [vmem:[%s429] sm:%s427] %v426
    %s431 = scalar_lea.vmem [#allocation0], 312
    %v432 = vld [vmem:[%s431] sm:%s199]
    %s433 = sshllo.u32 0, 2
    %s434 = smul.addr 2, 39
    %s435 = scalar_lea.vmem %s1, %s434
    %436 = vst [vmem:[%s435] sm:%s433] %v432
    %s437 = scalar_lea.vmem [#allocation0], 320
    %v438 = vld [vmem:[%s437] sm:%s199]
    %s439 = sshllo.u32 0, 2
    %s440 = smul.addr 2, 40
    %s441 = scalar_lea.vmem %s1, %s440
    %442 = vst [vmem:[%s441] sm:%s439] %v438
    %s443 = scalar_lea.vmem [#allocation0], 328
    %v444 = vld [vmem:[%s443] sm:%s199]
    %s445 = sshllo.u32 0, 2
    %s446 = smul.addr 2, 41
    %s447 = scalar_lea.vmem %s1, %s446
    %448 = vst [vmem:[%s447] sm:%s445] %v444
    %s449 = scalar_lea.vmem [#allocation0], 336
    %v450 = vld [vmem:[%s449] sm:%s199]
    %s451 = sshllo.u32 0, 2
    %s452 = smul.addr 2, 42
    %s453 = scalar_lea.vmem %s1, %s452
    %454 = vst [vmem:[%s453] sm:%s451] %v450
    %s455 = scalar_lea.vmem [#allocation0], 344
    %v456 = vld [vmem:[%s455] sm:%s199]
    %s457 = sshllo.u32 0, 2
    %s458 = smul.addr 2, 43
    %s459 = scalar_lea.vmem %s1, %s458
    %460 = vst [vmem:[%s459] sm:%s457] %v456
    %s461 = scalar_lea.vmem [#allocation0], 352
    %v462 = vld [vmem:[%s461] sm:%s199]
    %s463 = sshllo.u32 0, 2
    %s464 = smul.addr 2, 44
    %s465 = scalar_lea.vmem %s1, %s464
    %466 = vst [vmem:[%s465] sm:%s463] %v462
    %s467 = scalar_lea.vmem [#allocation0], 360
    %v468 = vld [vmem:[%s467] sm:%s199]
    %s469 = sshllo.u32 0, 2
    %s470 = smul.addr 2, 45
    %s471 = scalar_lea.vmem %s1, %s470
    %472 = vst [vmem:[%s471] sm:%s469] %v468
    %s473 = scalar_lea.vmem [#allocation0], 368
    %v474 = vld [vmem:[%s473] sm:%s199]
    %s475 = sshllo.u32 0, 2
    %s476 = smul.addr 2, 46
    %s477 = scalar_lea.vmem %s1, %s476
    %478 = vst [vmem:[%s477] sm:%s475] %v474
    %s479 = scalar_lea.vmem [#allocation0], 376
    %v480 = vld [vmem:[%s479] sm:%s199]
    %s481 = sshllo.u32 0, 2
    %s482 = smul.addr 2, 47
    %s483 = scalar_lea.vmem %s1, %s482
    %484 = vst [vmem:[%s483] sm:%s481] %v480
    %s485 = scalar_lea.vmem [#allocation0], 384
    %v486 = vld [vmem:[%s485] sm:%s199]
    %s487 = sshllo.u32 0, 2
    %s488 = smul.addr 2, 48
    %s489 = scalar_lea.vmem %s1, %s488
    %490 = vst [vmem:[%s489] sm:%s487] %v486
    %s491 = scalar_lea.vmem [#allocation0], 392
    %v492 = vld [vmem:[%s491] sm:%s199]
    %s493 = sshllo.u32 0, 2
    %s494 = smul.addr 2, 49
    %s495 = scalar_lea.vmem %s1, %s494
    %496 = vst [vmem:[%s495] sm:%s493] %v492
    %s497 = scalar_lea.vmem [#allocation0], 400
    %v498 = vld [vmem:[%s497] sm:%s199]
    %s499 = sshllo.u32 0, 2
    %s500 = smul.addr 2, 50
    %s501 = scalar_lea.vmem %s1, %s500
    %502 = vst [vmem:[%s501] sm:%s499] %v498
    %s503 = scalar_lea.vmem [#allocation0], 408
    %v504 = vld [vmem:[%s503] sm:%s199]
    %s505 = sshllo.u32 0, 2
    %s506 = smul.addr 2, 51
    %s507 = scalar_lea.vmem %s1, %s506
    %508 = vst [vmem:[%s507] sm:%s505] %v504
    %s509 = scalar_lea.vmem [#allocation0], 416
    %v510 = vld [vmem:[%s509] sm:%s199]
    %s511 = sshllo.u32 0, 2
    %s512 = smul.addr 2, 52
    %s513 = scalar_lea.vmem %s1, %s512
    %514 = vst [vmem:[%s513] sm:%s511] %v510
    %s515 = scalar_lea.vmem [#allocation0], 424
    %v516 = vld [vmem:[%s515] sm:%s199]
    %s517 = sshllo.u32 0, 2
    %s518 = smul.addr 2, 53
    %s519 = scalar_lea.vmem %s1, %s518
    %520 = vst [vmem:[%s519] sm:%s517] %v516
    %s521 = scalar_lea.vmem [#allocation0], 432
    %v522 = vld [vmem:[%s521] sm:%s199]
    %s523 = sshllo.u32 0, 2
    %s524 = smul.addr 2, 54
    %s525 = scalar_lea.vmem %s1, %s524
    %526 = vst [vmem:[%s525] sm:%s523] %v522
    %s527 = scalar_lea.vmem [#allocation0], 440
    %v528 = vld [vmem:[%s527] sm:%s199]
    %s529 = sshllo.u32 0, 2
    %s530 = smul.addr 2, 55
    %s531 = scalar_lea.vmem %s1, %s530
    %532 = vst [vmem:[%s531] sm:%s529] %v528
    %s533 = scalar_lea.vmem [#allocation0], 448
    %v534 = vld [vmem:[%s533] sm:%s199]
    %s535 = sshllo.u32 0, 2
    %s536 = smul.addr 2, 56
    %s537 = scalar_lea.vmem %s1, %s536
    %538 = vst [vmem:[%s537] sm:%s535] %v534
    %s539 = scalar_lea.vmem [#allocation0], 456
    %v540 = vld [vmem:[%s539] sm:%s199]
    %s541 = sshllo.u32 0, 2
    %s542 = smul.addr 2, 57
    %s543 = scalar_lea.vmem %s1, %s542
    %544 = vst [vmem:[%s543] sm:%s541] %v540
    %s545 = scalar_lea.vmem [#allocation0], 464
    %v546 = vld [vmem:[%s545] sm:%s199]
    %s547 = sshllo.u32 0, 2
    %s548 = smul.addr 2, 58
    %s549 = scalar_lea.vmem %s1, %s548
    %550 = vst [vmem:[%s549] sm:%s547] %v546
    %s551 = scalar_lea.vmem [#allocation0], 472
    %v552 = vld [vmem:[%s551] sm:%s199]
    %s553 = sshllo.u32 0, 2
    %s554 = smul.addr 2, 59
    %s555 = scalar_lea.vmem %s1, %s554
    %556 = vst [vmem:[%s555] sm:%s553] %v552
    %s557 = scalar_lea.vmem [#allocation0], 480
    %v558 = vld [vmem:[%s557] sm:%s199]
    %s559 = sshllo.u32 0, 2
    %s560 = smul.addr 2, 60
    %s561 = scalar_lea.vmem %s1, %s560
    %562 = vst [vmem:[%s561] sm:%s559] %v558
    %s563 = scalar_lea.vmem [#allocation0], 488
    %v564 = vld [vmem:[%s563] sm:%s199]
    %s565 = sshllo.u32 0, 2
    %s566 = smul.addr 2, 61
    %s567 = scalar_lea.vmem %s1, %s566
    %568 = vst [vmem:[%s567] sm:%s565] %v564
    %s569 = scalar_lea.vmem [#allocation0], 496
    %v570 = vld [vmem:[%s569] sm:%s199]
    %s571 = sshllo.u32 0, 2
    %s572 = smul.addr 2, 62
    %s573 = scalar_lea.vmem %s1, %s572
    %574 = vst [vmem:[%s573] sm:%s571] %v570
    %s575 = scalar_lea.vmem [#allocation0], 504
    %v576 = vld [vmem:[%s575] sm:%s199]
    %s577 = sshllo.u32 0, 2
    %s578 = smul.addr 2, 63
    %s579 = scalar_lea.vmem %s1, %s578
    %580 = vst [vmem:[%s579] sm:%s577] %v576

// kernel: _lambda_.1
$region0: #{_lambda_.1}
  #allocation0 [shape = 'u32[]', space=smem, size = 0x4, offset = 0x4, fixed_abs, tag = 'smem constant byte address 0x4 - core index']
  #allocation1 [shape = 'u32[144,128]{1,0:T(1,128)}', space=vmem, size = 0x12000, scoped, tag = 'internal scratch']
  #allocation2 [shape = 'f32[1,64,64]{2,1,0:T(8,128)}', space=vmem, size = 0x8000, scoped, tag = 'scratch operand']
  %s0 = inlined_call_operand.vmem [shape: f32[2,128,64], index: 0, kind: input, shape index: {}]
  %s1 = inlined_call_operand.vmem [shape: f32[2,128,64], index: 1, kind: input, shape index: {}]
  %s2 = inlined_call_operand.vmem [shape: f32[2,128,64], index: 2, kind: input, shape index: {}]
  %s3 = inlined_call_operand.vmem [shape: f32[2,128,64], index: 3, kind: input, shape index: {}]
  %s4 = inlined_call_operand.vmem [shape: f32[1,64], index: 4, kind: input, shape index: {}]
  %s5 = inlined_call_operand.vmem [shape: f32[16,16], index: 5, kind: input, shape index: {}]
  %s6 = inlined_call_operand.vmem [shape: f32[16,64], index: 6, kind: input, shape index: {}]
  %s7 = inlined_call_operand.vmem [shape: f32[64,64], index: 7, kind: input, shape index: {}]
  %s8 = inlined_call_operand.vmem [shape: f32[64,64], index: 8, kind: input, shape index: {}]
  %s9 = inlined_call_operand.vmem [shape: f32[1,64,64], index: 9, kind: input, shape index: {}]
  %s10 = inlined_call_operand.vmem [shape: f32[2,128,64], index: 10, kind: output, shape index: {}]
  %s11 = sld [smem:[#allocation0]]
  $region77: #{_lambda_.1} parent=0
    _
  %s13 = ssub.s32 1, %s11
  %s14 = scalar_select 0, %s13, %s11
  loop: start=0, step=1, limit=6
  $region2: #{_lambda_.1} parent=0 // loop_pre_header
    _
  $region3: #{_lambda_.1} parent=0 // loop_header
    %s16 = sphi 0, %s20
    %p17 = scmp.ge.s32.totalorder %s16, 6
    %s23 = sphi 0, %s35
    %s24 = sphi 0, %s31
    %s25 = sphi 0, %s23
    %s26 = sphi 0, %s24
    %s27 = sphi 0, %s25
    %s28 = sphi 0, %s26
    %s40 = sphi 0, %s42
    %s43 = sphi 0, %s40
    %s44 = sphi 0, %s43
    %s60 = sphi 0, %s44
    %s68 = sphi 0, %s70
    %s71 = sphi 0, %s68
    %s72 = sphi 0, %s71
    %s88 = sphi 0, %s72
    %s96 = sphi 0, %s98
    %s99 = sphi 0, %s96
    %s100 = sphi 0, %s99
    %s116 = sphi 0, %s100
    %s124 = sphi 0, %s126
    %s127 = sphi 0, %s124
    %s128 = sphi 0, %s127
    %s144 = sphi 0, %s128
    %s148 = sphi 0, %s148
    %s150 = sphi 0, %s148
    %s151 = sphi 0, %s150
    %s165 = sphi 0, %s151
    %s169 = sphi 0, %s169
    %s171 = sphi 0, %s169
    %s172 = sphi 0, %s171
    %s186 = sphi 0, %s172
    %s190 = sphi 0, %s190
    %s192 = sphi 0, %s190
    %s193 = sphi 0, %s192
    %s207 = sphi 0, %s193
    %s211 = sphi 0, %s211
    %s213 = sphi 0, %s211
    %s214 = sphi 0, %s213
    %s228 = sphi 0, %s214
    %s232 = sphi 0, %s232
    %s234 = sphi 0, %s232
    %s235 = sphi 0, %s234
    %s249 = sphi 0, %s235
    %s253 = sphi 0, %s253
    %s255 = sphi 0, %s253
    %s256 = sphi 0, %s255
    %s270 = sphi 0, %s256
    %s278 = sphi 0, %s280
    %s281 = sphi 0, %s278
    %s282 = sphi 0, %s281
    %s298 = sphi 0, %s282
  $region4: #{_lambda_.1} parent=0 // loop_header_branch
    %19 = sbr.rel (%p17) target = $region8
  $region5: #{_lambda_.1} parent=0 // loop_body
    %s21 = ssub.s32 %s16, 1
    %s22 = ssub.s32 %s16, 2
    %s29 = sadd.s32 1, %s24
    %p30 = scmp.ge.s32.totalorder %s29, 2
    %s31 = scalar_select %p30, 0, %s29
    %s32 = sadd.s32 1, %s23
    %s33 = scalar_select %p30, %s32, %s23
    %p34 = scmp.ge.s32.totalorder %s33, 2
    %s35 = scalar_select %p34, 0, %s33
    %s36 = ssub.s32 %s23, %s35
    %s37 = ssub.s32 %s24, %s31
    %s38 = sor.u32 %s36, %s37
    %p39 = scmp.eq.s32.totalorder %s38, 0
    %s41 = sadd.s32 %s40, 1
    %s42 = scalar_select %p39, %s40, %s41
    %p45 = pneg %p39
    %p46 = scmp.eq.s32.totalorder %s16, 3
    %p47 = por %p45, %p46
    %p48 = scmp.ne.s32.totalorder %s40, %s43
    %p49 = scmp.eq.s32.totalorder %s16, 0
    %p50 = por %p48, %p49
    %p51 = scmp.ne.s32.totalorder %s40, %s43
    %p52 = scmp.eq.s32.totalorder %s21, 3
    %p53 = por %p51, %p52
    %p54 = scmp.ne.s32.totalorder %s43, %s44
    %p55 = scmp.eq.s32.totalorder %s21, 0
    %p56 = por %p54, %p55
    %p57 = scmp.ne.s32.totalorder %s43, %s44
    %p58 = scmp.eq.s32.totalorder %s22, 3
    %p59 = por %p57, %p58
    %p61 = scmp.ne.s32.totalorder %s44, %s60
    %p62 = scmp.eq.s32.totalorder %s22, 0
    %p63 = por %p61, %p62
    %s64 = ssub.s32 %s23, %s35
    %s65 = ssub.s32 %s24, %s31
    %s66 = sor.u32 %s64, %s65
    %p67 = scmp.eq.s32.totalorder %s66, 0
    %s69 = sadd.s32 %s68, 1
    %s70 = scalar_select %p67, %s68, %s69
    %p73 = pneg %p67
    %p74 = scmp.eq.s32.totalorder %s16, 3
    %p75 = por %p73, %p74
    %p76 = scmp.ne.s32.totalorder %s68, %s71
    %p77 = scmp.eq.s32.totalorder %s16, 0
    %p78 = por %p76, %p77
    %p79 = scmp.ne.s32.totalorder %s68, %s71
    %p80 = scmp.eq.s32.totalorder %s21, 3
    %p81 = por %p79, %p80
    %p82 = scmp.ne.s32.totalorder %s71, %s72
    %p83 = scmp.eq.s32.totalorder %s21, 0
    %p84 = por %p82, %p83
    %p85 = scmp.ne.s32.totalorder %s71, %s72
    %p86 = scmp.eq.s32.totalorder %s22, 3
    %p87 = por %p85, %p86
    %p89 = scmp.ne.s32.totalorder %s72, %s88
    %p90 = scmp.eq.s32.totalorder %s22, 0
    %p91 = por %p89, %p90
    %s92 = ssub.s32 %s23, %s35
    %s93 = ssub.s32 %s24, %s31
    %s94 = sor.u32 %s92, %s93
    %p95 = scmp.eq.s32.totalorder %s94, 0
    %s97 = sadd.s32 %s96, 1
    %s98 = scalar_select %p95, %s96, %s97
    %p101 = pneg %p95
    %p102 = scmp.eq.s32.totalorder %s16, 3
    %p103 = por %p101, %p102
    %p104 = scmp.ne.s32.totalorder %s96, %s99
    %p105 = scmp.eq.s32.totalorder %s16, 0
    %p106 = por %p104, %p105
    %p107 = scmp.ne.s32.totalorder %s96, %s99
    %p108 = scmp.eq.s32.totalorder %s21, 3
    %p109 = por %p107, %p108
    %p110 = scmp.ne.s32.totalorder %s99, %s100
    %p111 = scmp.eq.s32.totalorder %s21, 0
    %p112 = por %p110, %p111
    %p113 = scmp.ne.s32.totalorder %s99, %s100
    %p114 = scmp.eq.s32.totalorder %s22, 3
    %p115 = por %p113, %p114
    %p117 = scmp.ne.s32.totalorder %s100, %s116
    %p118 = scmp.eq.s32.totalorder %s22, 0
    %p119 = por %p117, %p118
    %s120 = ssub.s32 %s23, %s35
    %s121 = ssub.s32 %s24, %s31
    %s122 = sor.u32 %s120, %s121
    %p123 = scmp.eq.s32.totalorder %s122, 0
    %s125 = sadd.s32 %s124, 1
    %s126 = scalar_select %p123, %s124, %s125
    %p129 = pneg %p123
    %p130 = scmp.eq.s32.totalorder %s16, 3
    %p131 = por %p129, %p130
    %p132 = scmp.ne.s32.totalorder %s124, %s127
    %p133 = scmp.eq.s32.totalorder %s16, 0
    %p134 = por %p132, %p133
    %p135 = scmp.ne.s32.totalorder %s124, %s127
    %p136 = scmp.eq.s32.totalorder %s21, 3
    %p137 = por %p135, %p136
    %p138 = scmp.ne.s32.totalorder %s127, %s128
    %p139 = scmp.eq.s32.totalorder %s21, 0
    %p140 = por %p138, %p139
    %p141 = scmp.ne.s32.totalorder %s127, %s128
    %p142 = scmp.eq.s32.totalorder %s22, 3
    %p143 = por %p141, %p142
    %p145 = scmp.ne.s32.totalorder %s128, %s144
    %p146 = scmp.eq.s32.totalorder %s22, 0
    %p147 = por %p145, %p146
    %s149 = sadd.s32 %s148, 1
    %p152 = scmp.eq.s32.totalorder %s16, 3
    %p153 = scmp.ne.s32.totalorder %s148, %s150
    %p154 = scmp.eq.s32.totalorder %s16, 0
    %p155 = por %p153, %p154
    %p156 = scmp.ne.s32.totalorder %s148, %s150
    %p157 = scmp.eq.s32.totalorder %s21, 3
    %p158 = por %p156, %p157
    %p159 = scmp.ne.s32.totalorder %s150, %s151
    %p160 = scmp.eq.s32.totalorder %s21, 0
    %p161 = por %p159, %p160
    %p162 = scmp.ne.s32.totalorder %s150, %s151
    %p163 = scmp.eq.s32.totalorder %s22, 3
    %p164 = por %p162, %p163
    %p166 = scmp.ne.s32.totalorder %s151, %s165
    %p167 = scmp.eq.s32.totalorder %s22, 0
    %p168 = por %p166, %p167
    %s170 = sadd.s32 %s169, 1
    %p173 = scmp.eq.s32.totalorder %s16, 3
    %p174 = scmp.ne.s32.totalorder %s169, %s171
    %p175 = scmp.eq.s32.totalorder %s16, 0
    %p176 = por %p174, %p175
    %p177 = scmp.ne.s32.totalorder %s169, %s171
    %p178 = scmp.eq.s32.totalorder %s21, 3
    %p179 = por %p177, %p178
    %p180 = scmp.ne.s32.totalorder %s171, %s172
    %p181 = scmp.eq.s32.totalorder %s21, 0
    %p182 = por %p180, %p181
    %p183 = scmp.ne.s32.totalorder %s171, %s172
    %p184 = scmp.eq.s32.totalorder %s22, 3
    %p185 = por %p183, %p184
    %p187 = scmp.ne.s32.totalorder %s172, %s186
    %p188 = scmp.eq.s32.totalorder %s22, 0
    %p189 = por %p187, %p188
    %s191 = sadd.s32 %s190, 1
    %p194 = scmp.eq.s32.totalorder %s16, 3
    %p195 = scmp.ne.s32.totalorder %s190, %s192
    %p196 = scmp.eq.s32.totalorder %s16, 0
    %p197 = por %p195, %p196
    %p198 = scmp.ne.s32.totalorder %s190, %s192
    %p199 = scmp.eq.s32.totalorder %s21, 3
    %p200 = por %p198, %p199
    %p201 = scmp.ne.s32.totalorder %s192, %s193
    %p202 = scmp.eq.s32.totalorder %s21, 0
    %p203 = por %p201, %p202
    %p204 = scmp.ne.s32.totalorder %s192, %s193
    %p205 = scmp.eq.s32.totalorder %s22, 3
    %p206 = por %p204, %p205
    %p208 = scmp.ne.s32.totalorder %s193, %s207
    %p209 = scmp.eq.s32.totalorder %s22, 0
    %p210 = por %p208, %p209
    %s212 = sadd.s32 %s211, 1
    %p215 = scmp.eq.s32.totalorder %s16, 3
    %p216 = scmp.ne.s32.totalorder %s211, %s213
    %p217 = scmp.eq.s32.totalorder %s16, 0
    %p218 = por %p216, %p217
    %p219 = scmp.ne.s32.totalorder %s211, %s213
    %p220 = scmp.eq.s32.totalorder %s21, 3
    %p221 = por %p219, %p220
    %p222 = scmp.ne.s32.totalorder %s213, %s214
    %p223 = scmp.eq.s32.totalorder %s21, 0
    %p224 = por %p222, %p223
    %p225 = scmp.ne.s32.totalorder %s213, %s214
    %p226 = scmp.eq.s32.totalorder %s22, 3
    %p227 = por %p225, %p226
    %p229 = scmp.ne.s32.totalorder %s214, %s228
    %p230 = scmp.eq.s32.totalorder %s22, 0
    %p231 = por %p229, %p230
    %s233 = sadd.s32 %s232, 1
    %p236 = scmp.eq.s32.totalorder %s16, 3
    %p237 = scmp.ne.s32.totalorder %s232, %s234
    %p238 = scmp.eq.s32.totalorder %s16, 0
    %p239 = por %p237, %p238
    %p240 = scmp.ne.s32.totalorder %s232, %s234
    %p241 = scmp.eq.s32.totalorder %s21, 3
    %p242 = por %p240, %p241
    %p243 = scmp.ne.s32.totalorder %s234, %s235
    %p244 = scmp.eq.s32.totalorder %s21, 0
    %p245 = por %p243, %p244
    %p246 = scmp.ne.s32.totalorder %s234, %s235
    %p247 = scmp.eq.s32.totalorder %s22, 3
    %p248 = por %p246, %p247
    %p250 = scmp.ne.s32.totalorder %s235, %s249
    %p251 = scmp.eq.s32.totalorder %s22, 0
    %p252 = por %p250, %p251
    %s254 = sadd.s32 %s253, 1
    %p257 = scmp.eq.s32.totalorder %s16, 3
    %p258 = scmp.ne.s32.totalorder %s253, %s255
    %p259 = scmp.eq.s32.totalorder %s16, 0
    %p260 = por %p258, %p259
    %p261 = scmp.ne.s32.totalorder %s253, %s255
    %p262 = scmp.eq.s32.totalorder %s21, 3
    %p263 = por %p261, %p262
    %p264 = scmp.ne.s32.totalorder %s255, %s256
    %p265 = scmp.eq.s32.totalorder %s21, 0
    %p266 = por %p264, %p265
    %p267 = scmp.ne.s32.totalorder %s255, %s256
    %p268 = scmp.eq.s32.totalorder %s22, 3
    %p269 = por %p267, %p268
    %p271 = scmp.ne.s32.totalorder %s256, %s270
    %p272 = scmp.eq.s32.totalorder %s22, 0
    %p273 = por %p271, %p272
    %s274 = ssub.s32 %s23, %s35
    %s275 = ssub.s32 %s24, %s31
    %s276 = sor.u32 %s274, %s275
    %p277 = scmp.eq.s32.totalorder %s276, 0
    %s279 = sadd.s32 %s278, 1
    %s280 = scalar_select %p277, %s278, %s279
    %p283 = pneg %p277
    %p284 = scmp.eq.s32.totalorder %s16, 3
    %p285 = por %p283, %p284
    %p286 = scmp.ne.s32.totalorder %s278, %s281
    %p287 = scmp.eq.s32.totalorder %s16, 0
    %p288 = por %p286, %p287
    %p289 = scmp.ne.s32.totalorder %s278, %s281
    %p290 = scmp.eq.s32.totalorder %s21, 3
    %p291 = por %p289, %p290
    %p292 = scmp.ne.s32.totalorder %s281, %s282
    %p293 = scmp.eq.s32.totalorder %s21, 0
    %p294 = por %p292, %p293
    %p295 = scmp.ne.s32.totalorder %s281, %s282
    %p296 = scmp.eq.s32.totalorder %s22, 3
    %p297 = por %p295, %p296
    %p299 = scmp.ne.s32.totalorder %s282, %s298
    %p300 = scmp.eq.s32.totalorder %s22, 0
    %p301 = por %p299, %p300
    %p302 = scmp.le.s32.totalorder 1, %s16
    %p303 = scmp.lt.s32.totalorder %s16, 5
    %p304 = pnand %p302, %p303
    %p305 = pneg %p304
    // Predicated region
    $region9: #{_lambda_.1} parent=5 // pred_check
      _
    $region10: #{_lambda_.1} parent=5 // pred_check_branch
      %307 = sbr.rel (%p304) target = $region12
    $region11: #{_lambda_.1} parent=5 // pred_region
      %s308 = ssub.s32 %s16, 1
      // Predicated region
      $region13: #{_lambda_.1} parent=11 // pred_check
        %p309 = pneg %p161
      $region14: #{_lambda_.1} parent=11 // pred_check_branch
        %311 = sbr.rel (%p309) target = $region16
      $region15: #{_lambda_.1} parent=11 // pred_region
        _
      $region16: #{_lambda_.1} parent=11 // pred_fallthru
        _
      // Predicated region
      $region17: #{_lambda_.1} parent=11 // pred_check
        %p312 = pneg %p182
      $region18: #{_lambda_.1} parent=11 // pred_check_branch
        %314 = sbr.rel (%p312) target = $region20
      $region19: #{_lambda_.1} parent=11 // pred_region
        _
      $region20: #{_lambda_.1} parent=11 // pred_fallthru
        _
      // Predicated region
      $region21: #{_lambda_.1} parent=11 // pred_check
        %p315 = pneg %p203
      $region22: #{_lambda_.1} parent=11 // pred_check_branch
        %317 = sbr.rel (%p315) target = $region24
      $region23: #{_lambda_.1} parent=11 // pred_region
        _
      $region24: #{_lambda_.1} parent=11 // pred_fallthru
        _
      // Predicated region
      $region25: #{_lambda_.1} parent=11 // pred_check
        %p318 = pneg %p224
      $region26: #{_lambda_.1} parent=11 // pred_check_branch
        %320 = sbr.rel (%p318) target = $region28
      $region27: #{_lambda_.1} parent=11 // pred_region
        _
      $region28: #{_lambda_.1} parent=11 // pred_fallthru
        _
      // Predicated region
      $region29: #{_lambda_.1} parent=11 // pred_check
        %p321 = pneg %p245
      $region30: #{_lambda_.1} parent=11 // pred_check_branch
        %323 = sbr.rel (%p321) target = $region32
      $region31: #{_lambda_.1} parent=11 // pred_region
        _
      $region32: #{_lambda_.1} parent=11 // pred_fallthru
        _
      // Predicated region
      $region33: #{_lambda_.1} parent=11 // pred_check
        %p324 = pneg %p266
      $region34: #{_lambda_.1} parent=11 // pred_check_branch
        %326 = sbr.rel (%p324) target = $region36
      $region35: #{_lambda_.1} parent=11 // pred_region
        _
      $region36: #{_lambda_.1} parent=11 // pred_fallthru
        _
    $region12: #{_lambda_.1} parent=5 // pred_fallthru
      _
    %p327 = scmp.lt.s32.totalorder %s16, 4
    // Predicated region
    $region37: #{_lambda_.1} parent=5 // pred_check
      %p328 = pneg %p327
    $region38: #{_lambda_.1} parent=5 // pred_check_branch
      %330 = sbr.rel (%p328) target = $region40
    $region39: #{_lambda_.1} parent=5 // pred_region
      // Predicated region
      $region41: #{_lambda_.1} parent=39 // pred_check
        %p331 = pneg %p50
      $region42: #{_lambda_.1} parent=39 // pred_check_branch
        %333 = sbr.rel (%p331) target = $region44
      $region43: #{_lambda_.1} parent=39 // pred_region
        %s334 = smul.u32 8, %s24
        %p335 = scmp.lt.s32.totalorder %s23, 1
        %s336 = scalar_select %p335, %s23, 1
        %p337 = scmp.lt.s32.totalorder %s334, 15
        %s338 = scalar_select %p337, %s334, 15
        %s339 = smul.addr %s336, 16
        %s340 = sadd.s32 %s338, %s339
        %s341 = smul.addr %s340, 8
        %s342 = scalar_lea.vmem %s0, %s341
        %s343 = smul.u32 8, %s24
      $region44: #{_lambda_.1} parent=39 // pred_fallthru
        _
      // Predicated region
      $region45: #{_lambda_.1} parent=39 // pred_check
        %p344 = pneg %p78
      $region46: #{_lambda_.1} parent=39 // pred_check_branch
        %346 = sbr.rel (%p344) target = $region48
      $region47: #{_lambda_.1} parent=39 // pred_region
        %s347 = smul.u32 8, %s24
        %p348 = scmp.lt.s32.totalorder %s23, 1
        %s349 = scalar_select %p348, %s23, 1
        %p350 = scmp.lt.s32.totalorder %s347, 15
        %s351 = scalar_select %p350, %s347, 15
        %s352 = smul.addr %s349, 16
        %s353 = sadd.s32 %s351, %s352
        %s354 = smul.addr %s353, 8
        %s355 = scalar_lea.vmem %s1, %s354
        %s356 = smul.u32 8, %s24
      $region48: #{_lambda_.1} parent=39 // pred_fallthru
        _
      // Predicated region
      $region49: #{_lambda_.1} parent=39 // pred_check
        %p357 = pneg %p106
      $region50: #{_lambda_.1} parent=39 // pred_check_branch
        %359 = sbr.rel (%p357) target = $region52
      $region51: #{_lambda_.1} parent=39 // pred_region
        %s360 = smul.u32 8, %s24
        %p361 = scmp.lt.s32.totalorder %s23, 1
        %s362 = scalar_select %p361, %s23, 1
        %p363 = scmp.lt.s32.totalorder %s360, 15
        %s364 = scalar_select %p363, %s360, 15
        %s365 = smul.addr %s362, 16
        %s366 = sadd.s32 %s364, %s365
        %s367 = smul.addr %s366, 8
        %s368 = scalar_lea.vmem %s2, %s367
        %s369 = smul.u32 8, %s24
      $region52: #{_lambda_.1} parent=39 // pred_fallthru
        _
      // Predicated region
      $region53: #{_lambda_.1} parent=39 // pred_check
        %p370 = pneg %p134
      $region54: #{_lambda_.1} parent=39 // pred_check_branch
        %372 = sbr.rel (%p370) target = $region56
      $region55: #{_lambda_.1} parent=39 // pred_region
        %s373 = smul.u32 8, %s24
        %p374 = scmp.lt.s32.totalorder %s23, 1
        %s375 = scalar_select %p374, %s23, 1
        %p376 = scmp.lt.s32.totalorder %s373, 15
        %s377 = scalar_select %p376, %s373, 15
        %s378 = smul.addr %s375, 16
        %s379 = sadd.s32 %s377, %s378
        %s380 = smul.addr %s379, 8
        %s381 = scalar_lea.vmem %s3, %s380
        %s382 = smul.u32 8, %s24
      $region56: #{_lambda_.1} parent=39 // pred_fallthru
        _
    $region40: #{_lambda_.1} parent=5 // pred_fallthru
      _
    %p383 = scmp.le.s32.totalorder 1, %s16
    %p384 = scmp.lt.s32.totalorder %s16, 5
    %p385 = pnand %p383, %p384
    %p386 = pneg %p385
    // Predicated region
    $region57: #{_lambda_.1} parent=5 // pred_check
      _
    $region58: #{_lambda_.1} parent=5 // pred_check_branch
      %388 = sbr.rel (%p385) target = $region60
    $region59: #{_lambda_.1} parent=5 // pred_region
      %s389 = ssub.s32 %s16, 1
      %s390 = smul.u32 8, %s26
      %p391 = scmp.lt.s32.totalorder %s25, 1
      %s392 = scalar_select %p391, %s25, 1
      %p393 = scmp.lt.s32.totalorder %s390, 15
      %s394 = scalar_select %p393, %s390, 15
      %s395 = smul.addr %s392, 16
      %s396 = sadd.s32 %s394, %s395
      %s397 = smul.addr %s396, 8
      %s398 = scalar_lea.vmem %s0, %s397
      %p399 = pneg %p56
      %p400 = pneg %p53
      %s401 = smul.u32 8, %s26
      %p402 = scmp.lt.s32.totalorder %s25, 1
      %s403 = scalar_select %p402, %s25, 1
      %p404 = scmp.lt.s32.totalorder %s401, 15
      %s405 = scalar_select %p404, %s401, 15
      %s406 = smul.addr %s403, 16
      %s407 = sadd.s32 %s405, %s406
      %s408 = smul.addr %s407, 8
      %s409 = scalar_lea.vmem %s1, %s408
      %p410 = pneg %p84
      %p411 = pneg %p81
      %s412 = smul.u32 8, %s26
      %p413 = scmp.lt.s32.totalorder %s25, 1
      %s414 = scalar_select %p413, %s25, 1
      %p415 = scmp.lt.s32.totalorder %s412, 15
      %s416 = scalar_select %p415, %s412, 15
      %s417 = smul.addr %s414, 16
      %s418 = sadd.s32 %s416, %s417
      %s419 = smul.addr %s418, 8
      %s420 = scalar_lea.vmem %s2, %s419
      %p421 = pneg %p112
      %p422 = pneg %p109
      %s423 = smul.u32 8, %s26
      %p424 = scmp.lt.s32.totalorder %s25, 1
      %s425 = scalar_select %p424, %s25, 1
      %p426 = scmp.lt.s32.totalorder %s423, 15
      %s427 = scalar_select %p426, %s423, 15
      %s428 = smul.addr %s425, 16
      %s429 = sadd.s32 %s427, %s428
      %s430 = smul.addr %s429, 8
      %s431 = scalar_lea.vmem %s3, %s430
      %p432 = pneg %p140
      %p433 = pneg %p137
      %p434 = pneg %p161
      %p435 = pneg %p158
      %p436 = pneg %p182
      %p437 = pneg %p179
      %p438 = pneg %p203
      %p439 = pneg %p200
      %p440 = pneg %p224
      %p441 = pneg %p221
      %p442 = pneg %p245
      %p443 = pneg %p242
      %p444 = pneg %p266
      %p445 = pneg %p263
      %p446 = pneg %p294
      %p447 = pneg %p291
      %s448 = smul.u32 8, %s26
      %p449 = scmp.lt.s32.totalorder %s25, 1
      %s450 = scalar_select %p449, %s25, 1
      %p451 = scmp.lt.s32.totalorder %s448, 15
      %s452 = scalar_select %p451, %s448, 15
      %s453 = smul.addr %s450, 16
      %s454 = sadd.s32 %s452, %s453
      %s455 = smul.addr %s454, 8
      %s456 = scalar_lea.vmem %s10, %s455
      %s457 = smul.u32 8, %s26
      %p458 = scmp.lt.s32.totalorder %s25, 1
      %s459 = scalar_select %p458, %s25, 1
      %p460 = scmp.lt.s32.totalorder %s457, 15
      %s461 = scalar_select %p460, %s457, 15
      %s462 = smul.addr %s459, 16
      %s463 = sadd.s32 %s461, %s462
      %s464 = smul.addr %s463, 8
      %s465 = scalar_lea.vmem %s0, %s464
      %s466 = smul.u32 8, %s26
      %s467 = smul.u32 8, %s26
      %p468 = scmp.lt.s32.totalorder %s25, 1
      %s469 = scalar_select %p468, %s25, 1
      %p470 = scmp.lt.s32.totalorder %s467, 15
      %s471 = scalar_select %p470, %s467, 15
      %s472 = smul.addr %s469, 16
      %s473 = sadd.s32 %s471, %s472
      %s474 = smul.addr %s473, 8
      %s475 = scalar_lea.vmem %s1, %s474
      %s476 = smul.u32 8, %s26
      %s477 = smul.u32 8, %s26
      %p478 = scmp.lt.s32.totalorder %s25, 1
      %s479 = scalar_select %p478, %s25, 1
      %p480 = scmp.lt.s32.totalorder %s477, 15
      %s481 = scalar_select %p480, %s477, 15
      %s482 = smul.addr %s479, 16
      %s483 = sadd.s32 %s481, %s482
      %s484 = smul.addr %s483, 8
      %s485 = scalar_lea.vmem %s2, %s484
      %s486 = smul.u32 8, %s26
      %s487 = smul.u32 8, %s26
      %p488 = scmp.lt.s32.totalorder %s25, 1
      %s489 = scalar_select %p488, %s25, 1
      %p490 = scmp.lt.s32.totalorder %s487, 15
      %s491 = scalar_select %p490, %s487, 15
      %s492 = smul.addr %s489, 16
      %s493 = sadd.s32 %s491, %s492
      %s494 = smul.addr %s493, 8
      %s495 = scalar_lea.vmem %s3, %s494
      %s496 = smul.u32 8, %s26
      %s497 = smul.u32 8, %s26
      %p498 = scmp.lt.s32.totalorder %s25, 1
      %s499 = scalar_select %p498, %s25, 1
      %p500 = scmp.lt.s32.totalorder %s497, 15
      %s501 = scalar_select %p500, %s497, 15
      %s502 = smul.addr %s499, 16
      %s503 = sadd.s32 %s501, %s502
      %s504 = smul.addr %s503, 8
      %s505 = scalar_lea.vmem %s10, %s504
      %s506 = smul.u32 8, %s26
      %v507 = vld [vmem:[%s5] sm:$0xff]
      %v508 = vld [vmem:[%s5 + $0x8] sm:$0xff]
      %v509 = vld [vmem:[%s6] sm:$0xff]
      %v510 = vld [vmem:[%s6 + $0x8] sm:$0xff]
      %vm511 = vcmp.gt.f32.partialorder %v509, 0.5
      %vm512 = vcmp.gt.f32.partialorder %v510, 0.5
      %v513 = vld [vmem:[%s7] sm:$0xff]
      %v514 = vld [vmem:[%s7 + $0x8] sm:$0xff]
      %v515 = vld [vmem:[%s7 + $0x10] sm:$0xff]
      %v516 = vld [vmem:[%s7 + $0x18] sm:$0xff]
      %v517 = vld [vmem:[%s7 + $0x20] sm:$0xff]
      %v518 = vld [vmem:[%s7 + $0x28] sm:$0xff]
      %v519 = vld [vmem:[%s7 + $0x30] sm:$0xff]
      %v520 = vld [vmem:[%s7 + $0x38] sm:$0xff]
      %v521 = vld [vmem:[%s8] sm:$0xff]
      %v522 = vld [vmem:[%s8 + $0x8] sm:$0xff]
      %v523 = vld [vmem:[%s8 + $0x10] sm:$0xff]
      %v524 = vld [vmem:[%s8 + $0x18] sm:$0xff]
      %v525 = vld [vmem:[%s8 + $0x20] sm:$0xff]
      %v526 = vld [vmem:[%s8 + $0x28] sm:$0xff]
      %v527 = vld [vmem:[%s8 + $0x30] sm:$0xff]
      %v528 = vld [vmem:[%s8 + $0x38] sm:$0xff]
      %v529 = vld [vmem:[%s4] sm:$0x1]
      %p530 = scmp.eq.s32.totalorder %s26, 0
      // Predicated region
      $region61: #{_lambda_.1} parent=59 // pred_check
        %p531 = pneg %p530
      $region62: #{_lambda_.1} parent=59 // pred_check_branch
        %533 = sbr.rel (%p531) target = $region64
      $region63: #{_lambda_.1} parent=59 // pred_region
        %v534 = vld [vmem:[%s9] sm:$0xff]
        %v535 = vld [vmem:[%s9 + $0x8] sm:$0xff]
        %v536 = vld [vmem:[%s9 + $0x10] sm:$0xff]
        %v537 = vld [vmem:[%s9 + $0x18] sm:$0xff]
        %v538 = vld [vmem:[%s9 + $0x20] sm:$0xff]
        %v539 = vld [vmem:[%s9 + $0x28] sm:$0xff]
        %v540 = vld [vmem:[%s9 + $0x30] sm:$0xff]
        %v541 = vld [vmem:[%s9 + $0x38] sm:$0xff]
        %vm542 = vcmask 523264
        %543 = vst.msk [vmem:[#allocation2] sm:$0xff] %vm542, %v534
        %544 = vst.msk [vmem:[#allocation2 + $0x8] sm:$0xff] %vm542, %v535
        %545 = vst.msk [vmem:[#allocation2 + $0x10] sm:$0xff] %vm542, %v536
        %546 = vst.msk [vmem:[#allocation2 + $0x18] sm:$0xff] %vm542, %v537
        %547 = vst.msk [vmem:[#allocation2 + $0x20] sm:$0xff] %vm542, %v538
        %548 = vst.msk [vmem:[#allocation2 + $0x28] sm:$0xff] %vm542, %v539
        %549 = vst.msk [vmem:[#allocation2 + $0x30] sm:$0xff] %vm542, %v540
        %550 = vst.msk [vmem:[#allocation2 + $0x38] sm:$0xff] %vm542, %v541
      $region64: #{_lambda_.1} parent=59 // pred_fallthru
        _
      %v551 = vld [vmem:[%s465] sm:$0xff]
      %v552 = vld [vmem:[%s465 + $0x8] sm:$0xff]
      %v553 = vld [vmem:[%s475] sm:$0xff]
      %v554 = vld [vmem:[%s475 + $0x8] sm:$0xff]
      %v555 = vld [vmem:[%s485] sm:$0xff]
      %v556 = vld [vmem:[%s485 + $0x8] sm:$0xff]
      %v557 = vld [vmem:[%s495] sm:$0xff]
      %v558 = vld [vmem:[%s495 + $0x8] sm:$0xff]
      %v559 = vmul.f32 %v557, 1.442695
      %v560 = vpow.pop %v559
      %v561 = vmul.f32 %v558, 1.442695
      %v562 = vpow.pop %v561
      %v563 = vmin.f32 %v560, 7.7777777
      %v564 = vmin.f32 %v562, 7.7777777
      %vm565 = vcmask 130048
      %v567 = vsel %vm565, %v507, 0
      %v570 = vsel %vm565, %v508, 0
      %572 = vmatprep.subr.mxu0 0.0
      %573 = vmatpush1.msra.mxu0 %v563
      %574 = vmatprep.subr.mxu0 0.0
      %575 = vmatpush1.msra.mxu0 %v564
      %576 = vmatprep.subr.mxu0 0.0
      %577 = vmatpush1.msra.mxu0 0.0
      %578 = vmatprep.subr.mxu0 0.0
      %579 = vmatpush1.msra.mxu0 0.0
      %580 = vmatprep.subr.mxu0 0.0
      %581 = vmatpush1.msra.mxu0 0.0
      %582 = vmatprep.subr.mxu0 0.0
      %583 = vmatpush1.msra.mxu0 0.0
      %584 = vmatprep.subr.mxu0 0.0
      %585 = vmatpush1.msra.mxu0 0.0
      %586 = vmatprep.subr.mxu0 0.0
      %587 = vmatpush1.msra.mxu0 0.0
      %588 = vmatprep.subr.mxu0 0.0
      %589 = vmatpush1.msra.mxu0 0.0
      %590 = vmatprep.subr.mxu0 0.0
      %591 = vmatpush1.msra.mxu0 0.0
      %592 = vmatprep.subr.mxu0 0.0
      %593 = vmatpush1.msra.mxu0 0.0
      %594 = vmatprep.subr.mxu0 0.0
      %595 = vmatpush1.msra.mxu0 0.0
      %596 = vmatprep.subr.mxu0 0.0
      %597 = vmatpush1.msra.mxu0 0.0
      %598 = vmatprep.subr.mxu0 0.0
      %599 = vmatpush1.msra.mxu0 0.0
      %600 = vmatprep.subr.mxu0 0.0
      %601 = vmatpush1.msra.mxu0 0.0
      %602 = vmatprep.subr.mxu0 0.0
      %603 = vmatpush1.msra.mxu0 0.0
      %604 = vmatprep.subr.mxu0 0.0
      %605 = vmatpush1.msra.mxu0 0.0
      %606 = vmatprep.subr.mxu0 0.0
      %607 = vmatpush1.msra.mxu0 0.0
      %608 = vmatprep.subr.mxu0 0.0
      %609 = vmatpush1.msra.mxu0 0.0
      %610 = vmatprep.subr.mxu0 0.0
      %611 = vmatpush1.msra.mxu0 0.0
      %612 = vmatprep.subr.mxu0 0.0
      %613 = vmatpush1.msra.mxu0 0.0
      %614 = vmatprep.subr.mxu0 0.0
      %615 = vmatpush1.msra.mxu0 0.0
      %616 = vmatprep.subr.mxu0 0.0
      %617 = vmatpush1.msra.mxu0 0.0
      %618 = vmatprep.subr.mxu0 0.0
      %619 = vmatpush1.msra.mxu0 0.0
      %620 = vmatprep.subr.mxu0 0.0
      %621 = vmatpush1.msra.mxu0 0.0
      %622 = vmatprep.subr.mxu0 0.0
      %623 = vmatpush1.msra.mxu0 0.0
      %624 = vmatprep.subr.mxu0 0.0
      %625 = vmatpush1.msra.mxu0 0.0
      %626 = vmatprep.subr.mxu0 0.0
      %627 = vmatpush1.msra.mxu0 0.0
      %628 = vmatprep.subr.mxu0 0.0
      %629 = vmatpush1.msra.mxu0 0.0
      %630 = vmatprep.subr.mxu0 0.0
      %631 = vmatpush1.msra.mxu0 0.0
      %632 = vmatprep.subr.mxu0 0.0
      %633 = vmatpush1.msra.mxu0 0.0
      %634 = vmatprep.subr.mxu0 0.0
      %635 = vmatpush1.msra.mxu0 0.0
      %636 = vmatprep.mubr.f32.mxu0 0.0
      %637 = vmatmul.mubr.f32.gmra.mrb[0].mxu0 %v567
      %v638 = vpop.f32.mrb[0].mxu0
      %v639 = vadd.f32 0.0, %v638
      %v640 = vpop.f32.mrb[0].mxu0
      %641 = vmatprep.mubr.f32.mxu0 0.0
      %642 = vmatmul.mubr.f32.gmra.mrb[0].mxu0 %v570
      %v643 = vpop.f32.mrb[0].mxu0
      %v644 = vadd.f32 0.0, %v643
      %v645 = vpop.f32.mrb[0].mxu0
      %646 = vdwg.mxu0
      %v647 = vsub.f32 %v563, %v639
      %v648 = vsub.f32 %v564, %v644
      %v649 = vmul.f32 %v647, 1.442695
      %v650 = vpow.pop %v649
      %v651 = vmul.f32 %v648, 1.442695
      %v652 = vpow.pop %v651
      %v653 = vlaneseq
      %v654 = vshrl.u32 %v653, 7
      %v655 = vsub.s32 0, %v654
      %v656 = vrot.slane %v644, %v655
      %v657 = vsub.f32 %v639, %v656
      %v658 = vsub.f32 %v644, %v656
      %v659 = vmul.f32 %v657, 1.442695
      %v660 = vpow.pop %v659
      %v661 = vmul.f32 %v658, 1.442695
      %v662 = vpow.pop %v661
      %v663 = vmul.f32 %v551, %v650
      %v664 = vmul.f32 %v552, %v652
      %v665 = vmul.f32 %v644, 1.442695
      %v666 = vpow.pop %v665
      %v667 = vlaneseq
      %v668 = vshrl.u32 %v667, 7
      %v669 = vsub.s32 0, %v668
      %v670 = vrot.slane %v666, %v669
      %v671 = vmul.f32 %v663, %v670
      %v672 = vmul.f32 %v664, %v670
      %v673 = vmul.f32 %v553, %v660
      %v674 = vmul.f32 %v554, %v662
      %v676 = vrot.slane %v644, 7
      %v678 = vsub.f32 %v644, %v676
      %v679 = vmul.f32 %v678, 1.442695
      %v680 = vpow.pop %v679
      %v681 = vlaneseq
      %v682 = vshrl.u32 %v681, 7
      %v683 = vsub.s32 0, %v682
      %v684 = vrot.slane %v680, %v683
      %v685 = vmul.f32 %v673, %v684
      %v686 = vmul.f32 %v674, %v684
      %v687 = vsub.f32 0.0, %v644
      %v688 = vmul.f32 %v687, 1.442695
      %v689 = vpow.pop %v688
      %v691 = vlaneseq
      %v692 = vshrl.u32 %v691, 7
      %v693 = vsub.s32 0, %v692
      %v694 = vrot.slane %v529, %v693
      %v696 = vmul.f32 %v551, %v694
      %v697 = vmul.f32 %v552, %v694
      %v698 = vmul.f32 %v696, %v553
      %v699 = vmul.f32 %v697, %v554
      %v700 = vld [vmem:[#allocation2] sm:$0xff]
      %v701 = vld [vmem:[#allocation2 + $0x8] sm:$0xff]
      %v702 = vld [vmem:[#allocation2 + $0x10] sm:$0xff]
      %v703 = vld [vmem:[#allocation2 + $0x18] sm:$0xff]
      %v704 = vld [vmem:[#allocation2 + $0x20] sm:$0xff]
      %v705 = vld [vmem:[#allocation2 + $0x28] sm:$0xff]
      %v706 = vld [vmem:[#allocation2 + $0x30] sm:$0xff]
      %v707 = vld [vmem:[#allocation2 + $0x38] sm:$0xff]
      %v708 = vmul.f32 %v673, %v521
      %v709 = vmul.f32 %v674, %v522
      %v710 = vmul.f32 %v673, %v523
      %v711 = vmul.f32 %v674, %v524
      %v712 = vmul.f32 %v673, %v525
      %v713 = vmul.f32 %v674, %v526
      %v714 = vmul.f32 %v673, %v527
      %v715 = vmul.f32 %v674, %v528
      %v716 = vmul.f32 %v555, %v521
      %v717 = vmul.f32 %v556, %v522
      %v718 = vmul.f32 %v555, %v523
      %v719 = vmul.f32 %v556, %v524
      %v720 = vmul.f32 %v555, %v525
      %v721 = vmul.f32 %v556, %v526
      %v722 = vmul.f32 %v555, %v527
      %v723 = vmul.f32 %v556, %v528
      %vm724 = vcmask 523264
      %v726 = vsel %vm724, %v671, 0
      %v729 = vsel %vm724, %v672, 0
      %v732 = vsel %vm724, %v708, 0
      %v735 = vsel %vm724, %v709, 0
      %v738 = vsel %vm724, %v710, 0
      %v741 = vsel %vm724, %v711, 0
      %v744 = vsel %vm724, %v712, 0
      %v747 = vsel %vm724, %v713, 0
      %v750 = vsel %vm724, %v714, 0
      %v753 = vsel %vm724, %v715, 0
      %755 = vmatprep.subr.mxu0 0.0
      %756 = vmatpush1.xpose.msra.mxu0 %v732
      %757 = vmatprep.subr.mxu0 0.0
      %758 = vmatpush1.xpose.msra.mxu0 %v735
      %759 = vmatprep.subr.mxu0 0.0
      %760 = vmatpush1.xpose.msra.mxu0 %v738
      %761 = vmatprep.subr.mxu0 0.0
      %762 = vmatpush1.xpose.msra.mxu0 %v741
      %763 = vmatprep.subr.mxu0 0.0
      %764 = vmatpush1.xpose.msra.mxu0 %v744
      %765 = vmatprep.subr.mxu0 0.0
      %766 = vmatpush1.xpose.msra.mxu0 %v747
      %767 = vmatprep.subr.mxu0 0.0
      %768 = vmatpush1.xpose.msra.mxu0 %v750
      %769 = vmatprep.subr.mxu0 0.0
      %770 = vmatpush1.xpose.msra.mxu0 %v753
      %771 = vmatprep.subr.mxu0 0.0
      %772 = vmatpush1.xpose.msra.mxu0 0.0
      %773 = vmatprep.subr.mxu0 0.0
      %774 = vmatpush1.xpose.msra.mxu0 0.0
      %775 = vmatprep.subr.mxu0 0.0
      %776 = vmatpush1.xpose.msra.mxu0 0.0
      %777 = vmatprep.subr.mxu0 0.0
      %778 = vmatpush1.xpose.msra.mxu0 0.0
      %779 = vmatprep.subr.mxu0 0.0
      %780 = vmatpush1.xpose.msra.mxu0 0.0
      %781 = vmatprep.subr.mxu0 0.0
      %782 = vmatpush1.xpose.msra.mxu0 0.0
      %783 = vmatprep.subr.mxu0 0.0
      %784 = vmatpush1.xpose.msra.mxu0 0.0
      %785 = vmatprep.subr.mxu0 0.0
      %786 = vmatpush1.xpose.msra.mxu0 0.0
      %787 = vmatprep.subr.mxu0 0.0
      %788 = vmatpush1.xpose.msra.mxu0 0.0
      %789 = vmatprep.subr.mxu0 0.0
      %790 = vmatpush1.xpose.msra.mxu0 0.0
      %791 = vmatprep.subr.mxu0 0.0
      %792 = vmatpush1.xpose.msra.mxu0 0.0
      %793 = vmatprep.subr.mxu0 0.0
      %794 = vmatpush1.xpose.msra.mxu0 0.0
      %795 = vmatprep.subr.mxu0 0.0
      %796 = vmatpush1.xpose.msra.mxu0 0.0
      %797 = vmatprep.subr.mxu0 0.0
      %798 = vmatpush1.xpose.msra.mxu0 0.0
      %799 = vmatprep.subr.mxu0 0.0
      %800 = vmatpush1.xpose.msra.mxu0 0.0
      %801 = vmatprep.subr.mxu0 0.0
      %802 = vmatpush1.xpose.msra.mxu0 0.0
      %803 = vmatprep.subr.mxu0 0.0
      %804 = vmatpush1.xpose.msra.mxu0 0.0
      %805 = vmatprep.subr.mxu0 0.0
      %806 = vmatpush1.xpose.msra.mxu0 0.0
      %807 = vmatprep.subr.mxu0 0.0
      %808 = vmatpush1.xpose.msra.mxu0 0.0
      %809 = vmatprep.subr.mxu0 0.0
      %810 = vmatpush1.xpose.msra.mxu0 0.0
      %811 = vmatprep.subr.mxu0 0.0
      %812 = vmatpush1.xpose.msra.mxu0 0.0
      %813 = vmatprep.subr.mxu0 0.0
      %814 = vmatpush1.xpose.msra.mxu0 0.0
      %815 = vmatprep.subr.mxu0 0.0
      %816 = vmatpush1.xpose.msra.mxu0 0.0
      %817 = vmatprep.subr.mxu0 0.0
      %818 = vmatpush1.xpose.msra.mxu0 0.0
      %819 = vmatprep.mubr.f32.mxu0 0.0
      %820 = vmatmul.mubr.f32.gmra.mrb[0].mxu0 %v726
      %v821 = vpop.f32.mrb[0].mxu0
      %v822 = vadd.f32 0.0, %v821
      %v823 = vpop.f32.mrb[0].mxu0
      %824 = vmatprep.mubr.f32.mxu0 0.0
      %825 = vmatmul.mubr.f32.gmra.mrb[0].mxu0 %v729
      %v826 = vpop.f32.mrb[0].mxu0
      %v827 = vadd.f32 0.0, %v826
      %v828 = vpop.f32.mrb[0].mxu0
      %829 = vdwg.mxu0
      %v830 = vsel %vm511, %v822, 0.0
      %v831 = vsel %vm512, %v827, 0.0
      %v833 = vsel %vm724, %v830, 0
      %v836 = vsel %vm724, %v831, 0
      %838 = vmatprep.subr.mxu0 0.0
      %839 = vmatpush1.msra.mxu0 %v716
      %840 = vmatprep.subr.mxu0 0.0
      %841 = vmatpush1.msra.mxu0 %v717
      %842 = vmatprep.subr.mxu0 0.0
      %843 = vmatpush1.msra.mxu0 %v718
      %844 = vmatprep.subr.mxu0 0.0
      %845 = vmatpush1.msra.mxu0 %v719
      %846 = vmatprep.subr.mxu0 0.0
      %847 = vmatpush1.msra.mxu0 %v720
      %848 = vmatprep.subr.mxu0 0.0
      %849 = vmatpush1.msra.mxu0 %v721
      %850 = vmatprep.subr.mxu0 0.0
      %851 = vmatpush1.msra.mxu0 %v722
      %852 = vmatprep.subr.mxu0 0.0
      %853 = vmatpush1.msra.mxu0 %v723
      %854 = vmatprep.subr.mxu0 0.0
      %855 = vmatpush1.msra.mxu0 0.0
      %856 = vmatprep.subr.mxu0 0.0
      %857 = vmatpush1.msra.mxu0 0.0
      %858 = vmatprep.subr.mxu0 0.0
      %859 = vmatpush1.msra.mxu0 0.0
      %860 = vmatprep.subr.mxu0 0.0
      %861 = vmatpush1.msra.mxu0 0.0
      %862 = vmatprep.subr.mxu0 0.0
      %863 = vmatpush1.msra.mxu0 0.0
      %864 = vmatprep.subr.mxu0 0.0
      %865 = vmatpush1.msra.mxu0 0.0
      %866 = vmatprep.subr.mxu0 0.0
      %867 = vmatpush1.msra.mxu0 0.0
      %868 = vmatprep.subr.mxu0 0.0
      %869 = vmatpush1.msra.mxu0 0.0
      %870 = vmatprep.subr.mxu0 0.0
      %871 = vmatpush1.msra.mxu0 0.0
      %872 = vmatprep.subr.mxu0 0.0
      %873 = vmatpush1.msra.mxu0 0.0
      %874 = vmatprep.subr.mxu0 0.0
      %875 = vmatpush1.msra.mxu0 0.0
      %876 = vmatprep.subr.mxu0 0.0
      %877 = vmatpush1.msra.mxu0 0.0
      %878 = vmatprep.subr.mxu0 0.0
      %879 = vmatpush1.msra.mxu0 0.0
      %880 = vmatprep.subr.mxu0 0.0
      %881 = vmatpush1.msra.mxu0 0.0
      %882 = vmatprep.subr.mxu0 0.0
      %883 = vmatpush1.msra.mxu0 0.0
      %884 = vmatprep.subr.mxu0 0.0
      %885 = vmatpush1.msra.mxu0 0.0
      %886 = vmatprep.subr.mxu0 0.0
      %887 = vmatpush1.msra.mxu0 0.0
      %888 = vmatprep.subr.mxu0 0.0
      %889 = vmatpush1.msra.mxu0 0.0
      %890 = vmatprep.subr.mxu0 0.0
      %891 = vmatpush1.msra.mxu0 0.0
      %892 = vmatprep.subr.mxu0 0.0
      %893 = vmatpush1.msra.mxu0 0.0
      %894 = vmatprep.subr.mxu0 0.0
      %895 = vmatpush1.msra.mxu0 0.0
      %896 = vmatprep.subr.mxu0 0.0
      %897 = vmatpush1.msra.mxu0 0.0
      %898 = vmatprep.subr.mxu0 0.0
      %899 = vmatpush1.msra.mxu0 0.0
      %900 = vmatprep.subr.mxu0 0.0
      %901 = vmatpush1.msra.mxu0 0.0
      %902 = vmatprep.mubr.f32.mxu0 0.0
      %903 = vmatmul.mubr.f32.gmra.mrb[0].mxu0 %v833
      %v904 = vpop.f32.mrb[0].mxu0
      %v905 = vadd.f32 0.0, %v904
      %v906 = vpop.f32.mrb[0].mxu0
      %907 = vmatprep.mubr.f32.mxu0 0.0
      %908 = vmatmul.mubr.f32.gmra.mrb[0].mxu0 %v836
      %v909 = vpop.f32.mrb[0].mxu0
      %v910 = vadd.f32 0.0, %v909
      %v911 = vpop.f32.mrb[0].mxu0
      %912 = vdwg.mxu0
      %v914 = vsel %vm724, %v663, 0
      %v917 = vsel %vm724, %v664, 0
      %v920 = vsel %vm724, %v700, 0
      %v923 = vsel %vm724, %v701, 0
      %v926 = vsel %vm724, %v702, 0
      %v929 = vsel %vm724, %v703, 0
      %v932 = vsel %vm724, %v704, 0
      %v935 = vsel %vm724, %v705, 0
      %v938 = vsel %vm724, %v706, 0
      %v941 = vsel %vm724, %v707, 0
      %943 = vmatprep.subr.mxu0 0.0
      %944 = vmatpush1.xpose.msra.mxu0 %v920
      %945 = vmatprep.subr.mxu0 0.0
      %946 = vmatpush1.xpose.msra.mxu0 %v923
      %947 = vmatprep.subr.mxu0 0.0
      %948 = vmatpush1.xpose.msra.mxu0 %v926
      %949 = vmatprep.subr.mxu0 0.0
      %950 = vmatpush1.xpose.msra.mxu0 %v929
      %951 = vmatprep.subr.mxu0 0.0
      %952 = vmatpush1.xpose.msra.mxu0 %v932
      %953 = vmatprep.subr.mxu0 0.0
      %954 = vmatpush1.xpose.msra.mxu0 %v935
      %955 = vmatprep.subr.mxu0 0.0
      %956 = vmatpush1.xpose.msra.mxu0 %v938
      %957 = vmatprep.subr.mxu0 0.0
      %958 = vmatpush1.xpose.msra.mxu0 %v941
      %959 = vmatprep.subr.mxu0 0.0
      %960 = vmatpush1.xpose.msra.mxu0 0.0
      %961 = vmatprep.subr.mxu0 0.0
      %962 = vmatpush1.xpose.msra.mxu0 0.0
      %963 = vmatprep.subr.mxu0 0.0
      %964 = vmatpush1.xpose.msra.mxu0 0.0
      %965 = vmatprep.subr.mxu0 0.0
      %966 = vmatpush1.xpose.msra.mxu0 0.0
      %967 = vmatprep.subr.mxu0 0.0
      %968 = vmatpush1.xpose.msra.mxu0 0.0
      %969 = vmatprep.subr.mxu0 0.0
      %970 = vmatpush1.xpose.msra.mxu0 0.0
      %971 = vmatprep.subr.mxu0 0.0
      %972 = vmatpush1.xpose.msra.mxu0 0.0
      %973 = vmatprep.subr.mxu0 0.0
      %974 = vmatpush1.xpose.msra.mxu0 0.0
      %975 = vmatprep.subr.mxu0 0.0
      %976 = vmatpush1.xpose.msra.mxu0 0.0
      %977 = vmatprep.subr.mxu0 0.0
      %978 = vmatpush1.xpose.msra.mxu0 0.0
      %979 = vmatprep.subr.mxu0 0.0
      %980 = vmatpush1.xpose.msra.mxu0 0.0
      %981 = vmatprep.subr.mxu0 0.0
      %982 = vmatpush1.xpose.msra.mxu0 0.0
      %983 = vmatprep.subr.mxu0 0.0
      %984 = vmatpush1.xpose.msra.mxu0 0.0
      %985 = vmatprep.subr.mxu0 0.0
      %986 = vmatpush1.xpose.msra.mxu0 0.0
      %987 = vmatprep.subr.mxu0 0.0
      %988 = vmatpush1.xpose.msra.mxu0 0.0
      %989 = vmatprep.subr.mxu0 0.0
      %990 = vmatpush1.xpose.msra.mxu0 0.0
      %991 = vmatprep.subr.mxu0 0.0
      %992 = vmatpush1.xpose.msra.mxu0 0.0
      %993 = vmatprep.subr.mxu0 0.0
      %994 = vmatpush1.xpose.msra.mxu0 0.0
      %995 = vmatprep.subr.mxu0 0.0
      %996 = vmatpush1.xpose.msra.mxu0 0.0
      %997 = vmatprep.subr.mxu0 0.0
      %998 = vmatpush1.xpose.msra.mxu0 0.0
      %999 = vmatprep.subr.mxu0 0.0
      %1000 = vmatpush1.xpose.msra.mxu0 0.0
      %1001 = vmatprep.subr.mxu0 0.0
      %1002 = vmatpush1.xpose.msra.mxu0 0.0
      %1003 = vmatprep.subr.mxu0 0.0
      %1004 = vmatpush1.xpose.msra.mxu0 0.0
      %1005 = vmatprep.subr.mxu0 0.0
      %1006 = vmatpush1.xpose.msra.mxu0 0.0
      %1007 = vmatprep.mubr.f32.mxu0 0.0
      %1008 = vmatmul.mubr.f32.gmra.mrb[0].mxu0 %v914
      %v1009 = vpop.f32.mrb[0].mxu0
      %v1010 = vadd.f32 %v905, %v1009
      %v1011 = vpop.f32.mrb[0].mxu0
      %1012 = vmatprep.mubr.f32.mxu0 0.0
      %1013 = vmatmul.mubr.f32.gmra.mrb[0].mxu0 %v917
      %v1014 = vpop.f32.mrb[0].mxu0
      %v1015 = vadd.f32 %v910, %v1014
      %v1016 = vpop.f32.mrb[0].mxu0
      %1017 = vdwg.mxu0
      %v1019 = vsel %vm724, %v698, 0
      %v1022 = vsel %vm724, %v699, 0
      %1024 = vmatprep.subr.mxu0 0.0
      %1025 = vmatpush1.msra.mxu0 %v513
      %1026 = vmatprep.subr.mxu0 0.0
      %1027 = vmatpush1.msra.mxu0 %v514
      %1028 = vmatprep.subr.mxu0 0.0
      %1029 = vmatpush1.msra.mxu0 %v515
      %1030 = vmatprep.subr.mxu0 0.0
      %1031 = vmatpush1.msra.mxu0 %v516
      %1032 = vmatprep.subr.mxu0 0.0
      %1033 = vmatpush1.msra.mxu0 %v517
      %1034 = vmatprep.subr.mxu0 0.0
      %1035 = vmatpush1.msra.mxu0 %v518
      %1036 = vmatprep.subr.mxu0 0.0
      %1037 = vmatpush1.msra.mxu0 %v519
      %1038 = vmatprep.subr.mxu0 0.0
      %1039 = vmatpush1.msra.mxu0 %v520
      %1040 = vmatprep.subr.mxu0 0.0
      %1041 = vmatpush1.msra.mxu0 0.0
      %1042 = vmatprep.subr.mxu0 0.0
      %1043 = vmatpush1.msra.mxu0 0.0
      %1044 = vmatprep.subr.mxu0 0.0
      %1045 = vmatpush1.msra.mxu0 0.0
      %1046 = vmatprep.subr.mxu0 0.0
      %1047 = vmatpush1.msra.mxu0 0.0
      %1048 = vmatprep.subr.mxu0 0.0
      %1049 = vmatpush1.msra.mxu0 0.0
      %1050 = vmatprep.subr.mxu0 0.0
      %1051 = vmatpush1.msra.mxu0 0.0
      %1052 = vmatprep.subr.mxu0 0.0
      %1053 = vmatpush1.msra.mxu0 0.0
      %1054 = vmatprep.subr.mxu0 0.0
      %1055 = vmatpush1.msra.mxu0 0.0
      %1056 = vmatprep.subr.mxu0 0.0
      %1057 = vmatpush1.msra.mxu0 0.0
      %1058 = vmatprep.subr.mxu0 0.0
      %1059 = vmatpush1.msra.mxu0 0.0
      %1060 = vmatprep.subr.mxu0 0.0
      %1061 = vmatpush1.msra.mxu0 0.0
      %1062 = vmatprep.subr.mxu0 0.0
      %1063 = vmatpush1.msra.mxu0 0.0
      %1064 = vmatprep.subr.mxu0 0.0
      %1065 = vmatpush1.msra.mxu0 0.0
      %1066 = vmatprep.subr.mxu0 0.0
      %1067 = vmatpush1.msra.mxu0 0.0
      %1068 = vmatprep.subr.mxu0 0.0
      %1069 = vmatpush1.msra.mxu0 0.0
      %1070 = vmatprep.subr.mxu0 0.0
      %1071 = vmatpush1.msra.mxu0 0.0
      %1072 = vmatprep.subr.mxu0 0.0
      %1073 = vmatpush1.msra.mxu0 0.0
      %1074 = vmatprep.subr.mxu0 0.0
      %1075 = vmatpush1.msra.mxu0 0.0
      %1076 = vmatprep.subr.mxu0 0.0
      %1077 = vmatpush1.msra.mxu0 0.0
      %1078 = vmatprep.subr.mxu0 0.0
      %1079 = vmatpush1.msra.mxu0 0.0
      %1080 = vmatprep.subr.mxu0 0.0
      %1081 = vmatpush1.msra.mxu0 0.0
      %1082 = vmatprep.subr.mxu0 0.0
      %1083 = vmatpush1.msra.mxu0 0.0
      %1084 = vmatprep.subr.mxu0 0.0
      %1085 = vmatpush1.msra.mxu0 0.0
      %1086 = vmatprep.subr.mxu0 0.0
      %1087 = vmatpush1.msra.mxu0 0.0
      %1088 = vmatprep.mubr.f32.mxu0 0.0
      %1089 = vmatmul.mubr.f32.gmra.mrb[0].mxu0 %v1019
      %v1090 = vpop.f32.mrb[0].mxu0
      %v1091 = vadd.f32 0.0, %v1090
      %v1092 = vpop.f32.mrb[0].mxu0
      %1093 = vmatprep.mubr.f32.mxu0 0.0
      %1094 = vmatmul.mubr.f32.gmra.mrb[0].mxu0 %v1022
      %v1095 = vpop.f32.mrb[0].mxu0
      %v1096 = vadd.f32 0.0, %v1095
      %v1097 = vpop.f32.mrb[0].mxu0
      %1098 = vdwg.mxu0
      %v1099 = vmul.f32 %v1091, %v555
      %v1100 = vmul.f32 %v1096, %v556
      %v1101 = vadd.f32 %v1010, %v1099
      %v1102 = vadd.f32 %v1015, %v1100
      %1103 = vst.msk [vmem:[%s505] sm:$0xff] %vm724, %v1101
      %1104 = vst.msk [vmem:[%s505 + $0x8] sm:$0xff] %vm724, %v1102
      %1105 = vxpose.xlu0.b32.start [1/16] %v555, 128
      %1106 = vxpose.xlu0.b32.cont [2/16] %v556, 128
      %1107 = vxpose.xlu0.b32.cont [3/16] 0.0, 128
      %1108 = vxpose.xlu0.b32.cont [4/16] 0.0, 128
      %1109 = vxpose.xlu0.b32.cont [5/16] 0.0, 128
      %1110 = vxpose.xlu0.b32.cont [6/16] 0.0, 128
      %1111 = vxpose.xlu0.b32.cont [7/16] 0.0, 128
      %1112 = vxpose.xlu0.b32.cont [8/16] 0.0, 128
      %1113 = vxpose.xlu0.b32.cont [9/16] 0.0, 128
      %1114 = vxpose.xlu0.b32.cont [10/16] 0.0, 128
      %1115 = vxpose.xlu0.b32.cont [11/16] 0.0, 128
      %1116 = vxpose.xlu0.b32.cont [12/16] 0.0, 128
      %1117 = vxpose.xlu0.b32.cont [13/16] 0.0, 128
      %1118 = vxpose.xlu0.b32.cont [14/16] 0.0, 128
      %1119 = vxpose.xlu0.b32.cont [15/16] 0.0, 128
      %1120 = vxpose.xlu0.b32.end [16/16] 0.0, 128
      %v1121 = vpop.trf.xlu0
      %v1122 = vpop.trf.xlu0
      %v1123 = vpop.trf.xlu0
      %v1124 = vpop.trf.xlu0
      %v1125 = vpop.trf.xlu0
      %v1126 = vpop.trf.xlu0
      %v1127 = vpop.trf.xlu0
      %v1128 = vpop.trf.xlu0
      %v1129 = vpop.trf.xlu0
      %v1130 = vpop.trf.xlu0
      %v1131 = vpop.trf.xlu0
      %v1132 = vpop.trf.xlu0
      %v1133 = vpop.trf.xlu0
      %v1134 = vpop.trf.xlu0
      %v1135 = vpop.trf.xlu0
      %v1136 = vpop.trf.xlu0
      %v1138 = vsel %vm565, %v1121, 0
      %v1141 = vsel %vm565, %v1122, 0
      %v1144 = vsel %vm565, %v1123, 0
      %v1147 = vsel %vm565, %v1124, 0
      %v1150 = vsel %vm565, %v1125, 0
      %v1153 = vsel %vm565, %v1126, 0
      %v1156 = vsel %vm565, %v1127, 0
      %v1159 = vsel %vm565, %v1128, 0
      %1161 = vmatprep.subr.mxu0 0.0
      %1162 = vmatpush1.msra.mxu0 %v685
      %1163 = vmatprep.subr.mxu0 0.0
      %1164 = vmatpush1.msra.mxu0 %v686
      %1165 = vmatprep.subr.mxu0 0.0
      %1166 = vmatpush1.msra.mxu0 0.0
      %1167 = vmatprep.subr.mxu0 0.0
      %1168 = vmatpush1.msra.mxu0 0.0
      %1169 = vmatprep.subr.mxu0 0.0
      %1170 = vmatpush1.msra.mxu0 0.0
      %1171 = vmatprep.subr.mxu0 0.0
      %1172 = vmatpush1.msra.mxu0 0.0
      %1173 = vmatprep.subr.mxu0 0.0
      %1174 = vmatpush1.msra.mxu0 0.0
      %1175 = vmatprep.subr.mxu0 0.0
      %1176 = vmatpush1.msra.mxu0 0.0
      %1177 = vmatprep.subr.mxu0 0.0
      %1178 = vmatpush1.msra.mxu0 0.0
      %1179 = vmatprep.subr.mxu0 0.0
      %1180 = vmatpush1.msra.mxu0 0.0
      %1181 = vmatprep.subr.mxu0 0.0
      %1182 = vmatpush1.msra.mxu0 0.0
      %1183 = vmatprep.subr.mxu0 0.0
      %1184 = vmatpush1.msra.mxu0 0.0
      %1185 = vmatprep.subr.mxu0 0.0
      %1186 = vmatpush1.msra.mxu0 0.0
      %1187 = vmatprep.subr.mxu0 0.0
      %1188 = vmatpush1.msra.mxu0 0.0
      %1189 = vmatprep.subr.mxu0 0.0
      %1190 = vmatpush1.msra.mxu0 0.0
      %1191 = vmatprep.subr.mxu0 0.0
      %1192 = vmatpush1.msra.mxu0 0.0
      %1193 = vmatprep.subr.mxu0 0.0
      %1194 = vmatpush1.msra.mxu0 0.0
      %1195 = vmatprep.subr.mxu0 0.0
      %1196 = vmatpush1.msra.mxu0 0.0
      %1197 = vmatprep.subr.mxu0 0.0
      %1198 = vmatpush1.msra.mxu0 0.0
      %1199 = vmatprep.subr.mxu0 0.0
      %1200 = vmatpush1.msra.mxu0 0.0
      %1201 = vmatprep.subr.mxu0 0.0
      %1202 = vmatpush1.msra.mxu0 0.0
      %1203 = vmatprep.subr.mxu0 0.0
      %1204 = vmatpush1.msra.mxu0 0.0
      %1205 = vmatprep.subr.mxu0 0.0
      %1206 = vmatpush1.msra.mxu0 0.0
      %1207 = vmatprep.subr.mxu0 0.0
      %1208 = vmatpush1.msra.mxu0 0.0
      %1209 = vmatprep.subr.mxu0 0.0
      %1210 = vmatpush1.msra.mxu0 0.0
      %1211 = vmatprep.subr.mxu0 0.0
      %1212 = vmatpush1.msra.mxu0 0.0
      %1213 = vmatprep.subr.mxu0 0.0
      %1214 = vmatpush1.msra.mxu0 0.0
      %1215 = vmatprep.subr.mxu0 0.0
      %1216 = vmatpush1.msra.mxu0 0.0
      %1217 = vmatprep.subr.mxu0 0.0
      %1218 = vmatpush1.msra.mxu0 0.0
      %1219 = vmatprep.subr.mxu0 0.0
      %1220 = vmatpush1.msra.mxu0 0.0
      %1221 = vmatprep.subr.mxu0 0.0
      %1222 = vmatpush1.msra.mxu0 0.0
      %1223 = vmatprep.subr.mxu0 0.0
      %1224 = vmatpush1.msra.mxu0 0.0
      %1225 = vmatprep.mubr.f32.mxu0 0.0
      %1226 = vmatmul.mubr.f32.gmra.mrb[0].mxu0 %v1138
      %v1227 = vpop.f32.mrb[0].mxu0
      %v1228 = vadd.f32 0.0, %v1227
      %v1229 = vpop.f32.mrb[0].mxu0
      %1230 = vmatprep.mubr.f32.mxu0 0.0
      %1231 = vmatmul.mubr.f32.gmra.mrb[0].mxu0 %v1141
      %v1232 = vpop.f32.mrb[0].mxu0
      %v1233 = vadd.f32 0.0, %v1232
      %v1234 = vpop.f32.mrb[0].mxu0
      %1235 = vmatprep.mubr.f32.mxu0 0.0
      %1236 = vmatmul.mubr.f32.gmra.mrb[0].mxu0 %v1144
      %v1237 = vpop.f32.mrb[0].mxu0
      %v1238 = vadd.f32 0.0, %v1237
      %v1239 = vpop.f32.mrb[0].mxu0
      %1240 = vmatprep.mubr.f32.mxu0 0.0
      %1241 = vmatmul.mubr.f32.gmra.mrb[0].mxu0 %v1147
      %v1242 = vpop.f32.mrb[0].mxu0
      %v1243 = vadd.f32 0.0, %v1242
      %v1244 = vpop.f32.mrb[0].mxu0
      %1245 = vmatprep.mubr.f32.mxu0 0.0
      %1246 = vmatmul.mubr.f32.gmra.mrb[0].mxu0 %v1150
      %v1247 = vpop.f32.mrb[0].mxu0
      %v1248 = vadd.f32 0.0, %v1247
      %v1249 = vpop.f32.mrb[0].mxu0
      %1250 = vmatprep.mubr.f32.mxu0 0.0
      %1251 = vmatmul.mubr.f32.gmra.mrb[0].mxu0 %v1153
      %v1252 = vpop.f32.mrb[0].mxu0
      %v1253 = vadd.f32 0.0, %v1252
      %v1254 = vpop.f32.mrb[0].mxu0
      %1255 = vmatprep.mubr.f32.mxu0 0.0
      %1256 = vmatmul.mubr.f32.gmra.mrb[0].mxu0 %v1156
      %v1257 = vpop.f32.mrb[0].mxu0
      %v1258 = vadd.f32 0.0, %v1257
      %v1259 = vpop.f32.mrb[0].mxu0
      %1260 = vmatprep.mubr.f32.mxu0 0.0
      %1261 = vmatmul.mubr.f32.gmra.mrb[0].mxu0 %v1159
      %v1262 = vpop.f32.mrb[0].mxu0
      %v1263 = vadd.f32 0.0, %v1262
      %v1264 = vpop.f32.mrb[0].mxu0
      %1265 = vdwg.mxu0
      %v1266 = vlaneseq
      %v1267 = vshrl.u32 %v1266, 7
      %v1268 = vsub.s32 7, %v1267
      %v1269 = vrot.slane %v689, %v1268
      %v1270 = vmul.f32 %v700, %v1269
      %v1271 = vmul.f32 %v701, %v1269
      %v1272 = vmul.f32 %v702, %v1269
      %v1273 = vmul.f32 %v703, %v1269
      %v1274 = vmul.f32 %v704, %v1269
      %v1275 = vmul.f32 %v705, %v1269
      %v1276 = vmul.f32 %v706, %v1269
      %v1277 = vmul.f32 %v707, %v1269
      %v1278 = vmul.f32 %v1228, %v513
      %v1279 = vmul.f32 %v1233, %v514
      %v1280 = vmul.f32 %v1238, %v515
      %v1281 = vmul.f32 %v1243, %v516
      %v1282 = vmul.f32 %v1248, %v517
      %v1283 = vmul.f32 %v1253, %v518
      %v1284 = vmul.f32 %v1258, %v519
      %v1285 = vmul.f32 %v1263, %v520
      %v1286 = vadd.f32 %v1270, %v1278
      %v1287 = vadd.f32 %v1271, %v1279
      %v1288 = vadd.f32 %v1272, %v1280
      %v1289 = vadd.f32 %v1273, %v1281
      %v1290 = vadd.f32 %v1274, %v1282
      %v1291 = vadd.f32 %v1275, %v1283
      %v1292 = vadd.f32 %v1276, %v1284
      %v1293 = vadd.f32 %v1277, %v1285
      %1294 = vst.msk [vmem:[#allocation2] sm:$0xff] %vm724, %v1286
      %1295 = vst.msk [vmem:[#allocation2 + $0x8] sm:$0xff] %vm724, %v1287
      %1296 = vst.msk [vmem:[#allocation2 + $0x10] sm:$0xff] %vm724, %v1288
      %1297 = vst.msk [vmem:[#allocation2 + $0x18] sm:$0xff] %vm724, %v1289
      %1298 = vst.msk [vmem:[#allocation2 + $0x20] sm:$0xff] %vm724, %v1290
      %1299 = vst.msk [vmem:[#allocation2 + $0x28] sm:$0xff] %vm724, %v1291
      %1300 = vst.msk [vmem:[#allocation2 + $0x30] sm:$0xff] %vm724, %v1292
      %1301 = vst.msk [vmem:[#allocation2 + $0x38] sm:$0xff] %vm724, %v1293
      %v1302 = vld [vmem:[%s465 + $0x10] sm:$0xff]
      %v1303 = vld [vmem:[%s465 + $0x18] sm:$0xff]
      %v1304 = vld [vmem:[%s475 + $0x10] sm:$0xff]
      %v1305 = vld [vmem:[%s475 + $0x18] sm:$0xff]
      %v1306 = vld [vmem:[%s485 + $0x10] sm:$0xff]
      %v1307 = vld [vmem:[%s485 + $0x18] sm:$0xff]
      %v1308 = vld [vmem:[%s495 + $0x10] sm:$0xff]
      %v1309 = vld [vmem:[%s495 + $0x18] sm:$0xff]
      %v1310 = vmul.f32 %v1308, 1.442695
      %v1311 = vpow.pop %v1310
      %v1312 = vmul.f32 %v1309, 1.442695
      %v1313 = vpow.pop %v1312
      %v1314 = vmin.f32 %v1311, 7.7777777
      %v1315 = vmin.f32 %v1313, 7.7777777
      %1316 = vmatprep.subr.mxu0 0.0
      %1317 = vmatpush1.msra.mxu0 %v1314
      %1318 = vmatprep.subr.mxu0 0.0
      %1319 = vmatpush1.msra.mxu0 %v1315
      %1320 = vmatprep.subr.mxu0 0.0
      %1321 = vmatpush1.msra.mxu0 0.0
      %1322 = vmatprep.subr.mxu0 0.0
      %1323 = vmatpush1.msra.mxu0 0.0
      %1324 = vmatprep.subr.mxu0 0.0
      %1325 = vmatpush1.msra.mxu0 0.0
      %1326 = vmatprep.subr.mxu0 0.0
      %1327 = vmatpush1.msra.mxu0 0.0
      %1328 = vmatprep.subr.mxu0 0.0
      %1329 = vmatpush1.msra.mxu0 0.0
      %1330 = vmatprep.subr.mxu0 0.0
      %1331 = vmatpush1.msra.mxu0 0.0
      %1332 = vmatprep.subr.mxu0 0.0
      %1333 = vmatpush1.msra.mxu0 0.0
      %1334 = vmatprep.subr.mxu0 0.0
      %1335 = vmatpush1.msra.mxu0 0.0
      %1336 = vmatprep.subr.mxu0 0.0
      %1337 = vmatpush1.msra.mxu0 0.0
      %1338 = vmatprep.subr.mxu0 0.0
      %1339 = vmatpush1.msra.mxu0 0.0
      %1340 = vmatprep.subr.mxu0 0.0
      %1341 = vmatpush1.msra.mxu0 0.0
      %1342 = vmatprep.subr.mxu0 0.0
      %1343 = vmatpush1.msra.mxu0 0.0
      %1344 = vmatprep.subr.mxu0 0.0
      %1345 = vmatpush1.msra.mxu0 0.0
      %1346 = vmatprep.subr.mxu0 0.0
      %1347 = vmatpush1.msra.mxu0 0.0
      %1348 = vmatprep.subr.mxu0 0.0
      %1349 = vmatpush1.msra.mxu0 0.0
      %1350 = vmatprep.subr.mxu0 0.0
      %1351 = vmatpush1.msra.mxu0 0.0
      %1352 = vmatprep.subr.mxu0 0.0
      %1353 = vmatpush1.msra.mxu0 0.0
      %1354 = vmatprep.subr.mxu0 0.0
      %1355 = vmatpush1.msra.mxu0 0.0
      %1356 = vmatprep.subr.mxu0 0.0
      %1357 = vmatpush1.msra.mxu0 0.0
      %1358 = vmatprep.subr.mxu0 0.0
      %1359 = vmatpush1.msra.mxu0 0.0
      %1360 = vmatprep.subr.mxu0 0.0
      %1361 = vmatpush1.msra.mxu0 0.0
      %1362 = vmatprep.subr.mxu0 0.0
      %1363 = vmatpush1.msra.mxu0 0.0
      %1364 = vmatprep.subr.mxu0 0.0
      %1365 = vmatpush1.msra.mxu0 0.0
      %1366 = vmatprep.subr.mxu0 0.0
      %1367 = vmatpush1.msra.mxu0 0.0
      %1368 = vmatprep.subr.mxu0 0.0
      %1369 = vmatpush1.msra.mxu0 0.0
      %1370 = vmatprep.subr.mxu0 0.0
      %1371 = vmatpush1.msra.mxu0 0.0
      %1372 = vmatprep.subr.mxu0 0.0
      %1373 = vmatpush1.msra.mxu0 0.0
      %1374 = vmatprep.subr.mxu0 0.0
      %1375 = vmatpush1.msra.mxu0 0.0
      %1376 = vmatprep.subr.mxu0 0.0
      %1377 = vmatpush1.msra.mxu0 0.0
      %1378 = vmatprep.subr.mxu0 0.0
      %1379 = vmatpush1.msra.mxu0 0.0
      %1380 = vmatprep.mubr.f32.mxu0 0.0
      %1381 = vmatmul.mubr.f32.gmra.mrb[0].mxu0 %v567
      %v1382 = vpop.f32.mrb[0].mxu0
      %v1383 = vadd.f32 0.0, %v1382
      %v1384 = vpop.f32.mrb[0].mxu0
      %1385 = vmatprep.mubr.f32.mxu0 0.0
      %1386 = vmatmul.mubr.f32.gmra.mrb[0].mxu0 %v570
      %v1387 = vpop.f32.mrb[0].mxu0
      %v1388 = vadd.f32 0.0, %v1387
      %v1389 = vpop.f32.mrb[0].mxu0
      %1390 = vdwg.mxu0
      %v1391 = vsub.f32 %v1314, %v1383
      %v1392 = vsub.f32 %v1315, %v1388
      %v1393 = vmul.f32 %v1391, 1.442695
      %v1394 = vpow.pop %v1393
      %v1395 = vmul.f32 %v1392, 1.442695
      %v1396 = vpow.pop %v1395
      %v1397 = vlaneseq
      %v1398 = vshrl.u32 %v1397, 7
      %v1399 = vsub.s32 0, %v1398
      %v1400 = vrot.slane %v1388, %v1399
      %v1401 = vsub.f32 %v1383, %v1400
      %v1402 = vsub.f32 %v1388, %v1400
      %v1403 = vmul.f32 %v1401, 1.442695
      %v1404 = vpow.pop %v1403
      %v1405 = vmul.f32 %v1402, 1.442695
      %v1406 = vpow.pop %v1405
      %v1407 = vmul.f32 %v1302, %v1394
      %v1408 = vmul.f32 %v1303, %v1396
      %v1409 = vmul.f32 %v1388, 1.442695
      %v1410 = vpow.pop %v1409
      %v1411 = vlaneseq
      %v1412 = vshrl.u32 %v1411, 7
      %v1413 = vsub.s32 0, %v1412
      %v1414 = vrot.slane %v1410, %v1413
      %v1415 = vmul.f32 %v1407, %v1414
      %v1416 = vmul.f32 %v1408, %v1414
      %v1417 = vmul.f32 %v1304, %v1404
      %v1418 = vmul.f32 %v1305, %v1406
      %v1420 = vrot.slane %v1388, 7
      %v1422 = vsub.f32 %v1388, %v1420
      %v1423 = vmul.f32 %v1422, 1.442695
      %v1424 = vpow.pop %v1423
      %v1425 = vlaneseq
      %v1426 = vshrl.u32 %v1425, 7
      %v1427 = vsub.s32 0, %v1426
      %v1428 = vrot.slane %v1424, %v1427
      %v1429 = vmul.f32 %v1417, %v1428
      %v1430 = vmul.f32 %v1418, %v1428
      %v1431 = vsub.f32 0.0, %v1388
      %v1432 = vmul.f32 %v1431, 1.442695
      %v1433 = vpow.pop %v1432
      %v1434 = vmul.f32 %v1302, %v694
      %v1435 = vmul.f32 %v1303, %v694
      %v1436 = vmul.f32 %v1434, %v1304
      %v1437 = vmul.f32 %v1435, %v1305
      %v1438 = vld [vmem:[#allocation2] sm:$0xff]
      %v1439 = vld [vmem:[#allocation2 + $0x8] sm:$0xff]
      %v1440 = vld [vmem:[#allocation2 + $0x10] sm:$0xff]
      %v1441 = vld [vmem:[#allocation2 + $0x18] sm:$0xff]
      %v1442 = vld [vmem:[#allocation2 + $0x20] sm:$0xff]
      %v1443 = vld [vmem:[#allocation2 + $0x28] sm:$0xff]
      %v1444 = vld [vmem:[#allocation2 + $0x30] sm:$0xff]
      %v1445 = vld [vmem:[#allocation2 + $0x38] sm:$0xff]
      %v1446 = vmul.f32 %v1417, %v521
      %v1447 = vmul.f32 %v1418, %v522
      %v1448 = vmul.f32 %v1417, %v523
      %v1449 = vmul.f32 %v1418, %v524
      %v1450 = vmul.f32 %v1417, %v525
      %v1451 = vmul.f32 %v1418, %v526
      %v1452 = vmul.f32 %v1417, %v527
      %v1453 = vmul.f32 %v1418, %v528
      %v1454 = vmul.f32 %v1306, %v521
      %v1455 = vmul.f32 %v1307, %v522
      %v1456 = vmul.f32 %v1306, %v523
      %v1457 = vmul.f32 %v1307, %v524
      %v1458 = vmul.f32 %v1306, %v525
      %v1459 = vmul.f32 %v1307, %v526
      %v1460 = vmul.f32 %v1306, %v527
      %v1461 = vmul.f32 %v1307, %v528
      %v1463 = vsel %vm724, %v1415, 0
      %v1466 = vsel %vm724, %v1416, 0
      %v1469 = vsel %vm724, %v1446, 0
      %v1472 = vsel %vm724, %v1447, 0
      %v1475 = vsel %vm724, %v1448, 0
      %v1478 = vsel %vm724, %v1449, 0
      %v1481 = vsel %vm724, %v1450, 0
      %v1484 = vsel %vm724, %v1451, 0
      %v1487 = vsel %vm724, %v1452, 0
      %v1490 = vsel %vm724, %v1453, 0
      %1492 = vmatprep.subr.mxu0 0.0
      %1493 = vmatpush1.xpose.msra.mxu0 %v1469
      %1494 = vmatprep.subr.mxu0 0.0
      %1495 = vmatpush1.xpose.msra.mxu0 %v1472
      %1496 = vmatprep.subr.mxu0 0.0
      %1497 = vmatpush1.xpose.msra.mxu0 %v1475
      %1498 = vmatprep.subr.mxu0 0.0
      %1499 = vmatpush1.xpose.msra.mxu0 %v1478
      %1500 = vmatprep.subr.mxu0 0.0
      %1501 = vmatpush1.xpose.msra.mxu0 %v1481
      %1502 = vmatprep.subr.mxu0 0.0
      %1503 = vmatpush1.xpose.msra.mxu0 %v1484
      %1504 = vmatprep.subr.mxu0 0.0
      %1505 = vmatpush1.xpose.msra.mxu0 %v1487
      %1506 = vmatprep.subr.mxu0 0.0
      %1507 = vmatpush1.xpose.msra.mxu0 %v1490
      %1508 = vmatprep.subr.mxu0 0.0
      %1509 = vmatpush1.xpose.msra.mxu0 0.0
      %1510 = vmatprep.subr.mxu0 0.0
      %1511 = vmatpush1.xpose.msra.mxu0 0.0
      %1512 = vmatprep.subr.mxu0 0.0
      %1513 = vmatpush1.xpose.msra.mxu0 0.0
      %1514 = vmatprep.subr.mxu0 0.0
      %1515 = vmatpush1.xpose.msra.mxu0 0.0
      %1516 = vmatprep.subr.mxu0 0.0
      %1517 = vmatpush1.xpose.msra.mxu0 0.0
      %1518 = vmatprep.subr.mxu0 0.0
      %1519 = vmatpush1.xpose.msra.mxu0 0.0
      %1520 = vmatprep.subr.mxu0 0.0
      %1521 = vmatpush1.xpose.msra.mxu0 0.0
      %1522 = vmatprep.subr.mxu0 0.0
      %1523 = vmatpush1.xpose.msra.mxu0 0.0
      %1524 = vmatprep.subr.mxu0 0.0
      %1525 = vmatpush1.xpose.msra.mxu0 0.0
      %1526 = vmatprep.subr.mxu0 0.0
      %1527 = vmatpush1.xpose.msra.mxu0 0.0
      %1528 = vmatprep.subr.mxu0 0.0
      %1529 = vmatpush1.xpose.msra.mxu0 0.0
      %1530 = vmatprep.subr.mxu0 0.0
      %1531 = vmatpush1.xpose.msra.mxu0 0.0
      %1532 = vmatprep.subr.mxu0 0.0
      %1533 = vmatpush1.xpose.msra.mxu0 0.0
      %1534 = vmatprep.subr.mxu0 0.0
      %1535 = vmatpush1.xpose.msra.mxu0 0.0
      %1536 = vmatprep.subr.mxu0 0.0
      %1537 = vmatpush1.xpose.msra.mxu0 0.0
      %1538 = vmatprep.subr.mxu0 0.0
      %1539 = vmatpush1.xpose.msra.mxu0 0.0
      %1540 = vmatprep.subr.mxu0 0.0
      %1541 = vmatpush1.xpose.msra.mxu0 0.0
      %1542 = vmatprep.subr.mxu0 0.0
      %1543 = vmatpush1.xpose.msra.mxu0 0.0
      %1544 = vmatprep.subr.mxu0 0.0
      %1545 = vmatpush1.xpose.msra.mxu0 0.0
      %1546 = vmatprep.subr.mxu0 0.0
      %1547 = vmatpush1.xpose.msra.mxu0 0.0
      %1548 = vmatprep.subr.mxu0 0.0
      %1549 = vmatpush1.xpose.msra.mxu0 0.0
      %1550 = vmatprep.subr.mxu0 0.0
      %1551 = vmatpush1.xpose.msra.mxu0 0.0
      %1552 = vmatprep.subr.mxu0 0.0
      %1553 = vmatpush1.xpose.msra.mxu0 0.0
      %1554 = vmatprep.subr.mxu0 0.0
      %1555 = vmatpush1.xpose.msra.mxu0 0.0
      %1556 = vmatprep.mubr.f32.mxu0 0.0
      %1557 = vmatmul.mubr.f32.gmra.mrb[0].mxu0 %v1463
      %v1558 = vpop.f32.mrb[0].mxu0
      %v1559 = vadd.f32 0.0, %v1558
      %v1560 = vpop.f32.mrb[0].mxu0
      %1561 = vmatprep.mubr.f32.mxu0 0.0
      %1562 = vmatmul.mubr.f32.gmra.mrb[0].mxu0 %v1466
      %v1563 = vpop.f32.mrb[0].mxu0
      %v1564 = vadd.f32 0.0, %v1563
      %v1565 = vpop.f32.mrb[0].mxu0
      %1566 = vdwg.mxu0
      %v1567 = vsel %vm511, %v1559, 0.0
      %v1568 = vsel %vm512, %v1564, 0.0
      %v1570 = vsel %vm724, %v1567, 0
      %v1573 = vsel %vm724, %v1568, 0
      %1575 = vmatprep.subr.mxu0 0.0
      %1576 = vmatpush1.msra.mxu0 %v1454
      %1577 = vmatprep.subr.mxu0 0.0
      %1578 = vmatpush1.msra.mxu0 %v1455
      %1579 = vmatprep.subr.mxu0 0.0
      %1580 = vmatpush1.msra.mxu0 %v1456
      %1581 = vmatprep.subr.mxu0 0.0
      %1582 = vmatpush1.msra.mxu0 %v1457
      %1583 = vmatprep.subr.mxu0 0.0
      %1584 = vmatpush1.msra.mxu0 %v1458
      %1585 = vmatprep.subr.mxu0 0.0
      %1586 = vmatpush1.msra.mxu0 %v1459
      %1587 = vmatprep.subr.mxu0 0.0
      %1588 = vmatpush1.msra.mxu0 %v1460
      %1589 = vmatprep.subr.mxu0 0.0
      %1590 = vmatpush1.msra.mxu0 %v1461
      %1591 = vmatprep.subr.mxu0 0.0
      %1592 = vmatpush1.msra.mxu0 0.0
      %1593 = vmatprep.subr.mxu0 0.0
      %1594 = vmatpush1.msra.mxu0 0.0
      %1595 = vmatprep.subr.mxu0 0.0
      %1596 = vmatpush1.msra.mxu0 0.0
      %1597 = vmatprep.subr.mxu0 0.0
      %1598 = vmatpush1.msra.mxu0 0.0
      %1599 = vmatprep.subr.mxu0 0.0
      %1600 = vmatpush1.msra.mxu0 0.0
      %1601 = vmatprep.subr.mxu0 0.0
      %1602 = vmatpush1.msra.mxu0 0.0
      %1603 = vmatprep.subr.mxu0 0.0
      %1604 = vmatpush1.msra.mxu0 0.0
      %1605 = vmatprep.subr.mxu0 0.0
      %1606 = vmatpush1.msra.mxu0 0.0
      %1607 = vmatprep.subr.mxu0 0.0
      %1608 = vmatpush1.msra.mxu0 0.0
      %1609 = vmatprep.subr.mxu0 0.0
      %1610 = vmatpush1.msra.mxu0 0.0
      %1611 = vmatprep.subr.mxu0 0.0
      %1612 = vmatpush1.msra.mxu0 0.0
      %1613 = vmatprep.subr.mxu0 0.0
      %1614 = vmatpush1.msra.mxu0 0.0
      %1615 = vmatprep.subr.mxu0 0.0
      %1616 = vmatpush1.msra.mxu0 0.0
      %1617 = vmatprep.subr.mxu0 0.0
      %1618 = vmatpush1.msra.mxu0 0.0
      %1619 = vmatprep.subr.mxu0 0.0
      %1620 = vmatpush1.msra.mxu0 0.0
      %1621 = vmatprep.subr.mxu0 0.0
      %1622 = vmatpush1.msra.mxu0 0.0
      %1623 = vmatprep.subr.mxu0 0.0
      %1624 = vmatpush1.msra.mxu0 0.0
      %1625 = vmatprep.subr.mxu0 0.0
      %1626 = vmatpush1.msra.mxu0 0.0
      %1627 = vmatprep.subr.mxu0 0.0
      %1628 = vmatpush1.msra.mxu0 0.0
      %1629 = vmatprep.subr.mxu0 0.0
      %1630 = vmatpush1.msra.mxu0 0.0
      %1631 = vmatprep.subr.mxu0 0.0
      %1632 = vmatpush1.msra.mxu0 0.0
      %1633 = vmatprep.subr.mxu0 0.0
      %1634 = vmatpush1.msra.mxu0 0.0
      %1635 = vmatprep.subr.mxu0 0.0
      %1636 = vmatpush1.msra.mxu0 0.0
      %1637 = vmatprep.subr.mxu0 0.0
      %1638 = vmatpush1.msra.mxu0 0.0
      %1639 = vmatprep.mubr.f32.mxu0 0.0
      %1640 = vmatmul.mubr.f32.gmra.mrb[0].mxu0 %v1570
      %v1641 = vpop.f32.mrb[0].mxu0
      %v1642 = vadd.f32 0.0, %v1641
      %v1643 = vpop.f32.mrb[0].mxu0
      %1644 = vmatprep.mubr.f32.mxu0 0.0
      %1645 = vmatmul.mubr.f32.gmra.mrb[0].mxu0 %v1573
      %v1646 = vpop.f32.mrb[0].mxu0
      %v1647 = vadd.f32 0.0, %v1646
      %v1648 = vpop.f32.mrb[0].mxu0
      %1649 = vdwg.mxu0
      %v1651 = vsel %vm724, %v1407, 0
      %v1654 = vsel %vm724, %v1408, 0
      %v1657 = vsel %vm724, %v1438, 0
      %v1660 = vsel %vm724, %v1439, 0
      %v1663 = vsel %vm724, %v1440, 0
      %v1666 = vsel %vm724, %v1441, 0
      %v1669 = vsel %vm724, %v1442, 0
      %v1672 = vsel %vm724, %v1443, 0
      %v1675 = vsel %vm724, %v1444, 0
      %v1678 = vsel %vm724, %v1445, 0
      %1680 = vmatprep.subr.mxu0 0.0
      %1681 = vmatpush1.xpose.msra.mxu0 %v1657
      %1682 = vmatprep.subr.mxu0 0.0
      %1683 = vmatpush1.xpose.msra.mxu0 %v1660
      %1684 = vmatprep.subr.mxu0 0.0
      %1685 = vmatpush1.xpose.msra.mxu0 %v1663
      %1686 = vmatprep.subr.mxu0 0.0
      %1687 = vmatpush1.xpose.msra.mxu0 %v1666
      %1688 = vmatprep.subr.mxu0 0.0
      %1689 = vmatpush1.xpose.msra.mxu0 %v1669
      %1690 = vmatprep.subr.mxu0 0.0
      %1691 = vmatpush1.xpose.msra.mxu0 %v1672
      %1692 = vmatprep.subr.mxu0 0.0
      %1693 = vmatpush1.xpose.msra.mxu0 %v1675
      %1694 = vmatprep.subr.mxu0 0.0
      %1695 = vmatpush1.xpose.msra.mxu0 %v1678
      %1696 = vmatprep.subr.mxu0 0.0
      %1697 = vmatpush1.xpose.msra.mxu0 0.0
      %1698 = vmatprep.subr.mxu0 0.0
      %1699 = vmatpush1.xpose.msra.mxu0 0.0
      %1700 = vmatprep.subr.mxu0 0.0
      %1701 = vmatpush1.xpose.msra.mxu0 0.0
      %1702 = vmatprep.subr.mxu0 0.0
      %1703 = vmatpush1.xpose.msra.mxu0 0.0
      %1704 = vmatprep.subr.mxu0 0.0
      %1705 = vmatpush1.xpose.msra.mxu0 0.0
      %1706 = vmatprep.subr.mxu0 0.0
      %1707 = vmatpush1.xpose.msra.mxu0 0.0
      %1708 = vmatprep.subr.mxu0 0.0
      %1709 = vmatpush1.xpose.msra.mxu0 0.0
      %1710 = vmatprep.subr.mxu0 0.0
      %1711 = vmatpush1.xpose.msra.mxu0 0.0
      %1712 = vmatprep.subr.mxu0 0.0
      %1713 = vmatpush1.xpose.msra.mxu0 0.0
      %1714 = vmatprep.subr.mxu0 0.0
      %1715 = vmatpush1.xpose.msra.mxu0 0.0
      %1716 = vmatprep.subr.mxu0 0.0
      %1717 = vmatpush1.xpose.msra.mxu0 0.0
      %1718 = vmatprep.subr.mxu0 0.0
      %1719 = vmatpush1.xpose.msra.mxu0 0.0
      %1720 = vmatprep.subr.mxu0 0.0
      %1721 = vmatpush1.xpose.msra.mxu0 0.0
      %1722 = vmatprep.subr.mxu0 0.0
      %1723 = vmatpush1.xpose.msra.mxu0 0.0
      %1724 = vmatprep.subr.mxu0 0.0
      %1725 = vmatpush1.xpose.msra.mxu0 0.0
      %1726 = vmatprep.subr.mxu0 0.0
      %1727 = vmatpush1.xpose.msra.mxu0 0.0
      %1728 = vmatprep.subr.mxu0 0.0
      %1729 = vmatpush1.xpose.msra.mxu0 0.0
      %1730 = vmatprep.subr.mxu0 0.0
      %1731 = vmatpush1.xpose.msra.mxu0 0.0
      %1732 = vmatprep.subr.mxu0 0.0
      %1733 = vmatpush1.xpose.msra.mxu0 0.0
      %1734 = vmatprep.subr.mxu0 0.0
      %1735 = vmatpush1.xpose.msra.mxu0 0.0
      %1736 = vmatprep.subr.mxu0 0.0
      %1737 = vmatpush1.xpose.msra.mxu0 0.0
      %1738 = vmatprep.subr.mxu0 0.0
      %1739 = vmatpush1.xpose.msra.mxu0 0.0
      %1740 = vmatprep.subr.mxu0 0.0
      %1741 = vmatpush1.xpose.msra.mxu0 0.0
      %1742 = vmatprep.subr.mxu0 0.0
      %1743 = vmatpush1.xpose.msra.mxu0 0.0
      %1744 = vmatprep.mubr.f32.mxu0 0.0
      %1745 = vmatmul.mubr.f32.gmra.mrb[0].mxu0 %v1651
      %v1746 = vpop.f32.mrb[0].mxu0
      %v1747 = vadd.f32 %v1642, %v1746
      %v1748 = vpop.f32.mrb[0].mxu0
      %1749 = vmatprep.mubr.f32.mxu0 0.0
      %1750 = vmatmul.mubr.f32.gmra.mrb[0].mxu0 %v1654
      %v1751 = vpop.f32.mrb[0].mxu0
      %v1752 = vadd.f32 %v1647, %v1751
      %v1753 = vpop.f32.mrb[0].mxu0
      %1754 = vdwg.mxu0
      %v1756 = vsel %vm724, %v1436, 0
      %v1759 = vsel %vm724, %v1437, 0
      %1761 = vmatprep.subr.mxu0 0.0
      %1762 = vmatpush1.msra.mxu0 %v513
      %1763 = vmatprep.subr.mxu0 0.0
      %1764 = vmatpush1.msra.mxu0 %v514
      %1765 = vmatprep.subr.mxu0 0.0
      %1766 = vmatpush1.msra.mxu0 %v515
      %1767 = vmatprep.subr.mxu0 0.0
      %1768 = vmatpush1.msra.mxu0 %v516
      %1769 = vmatprep.subr.mxu0 0.0
      %1770 = vmatpush1.msra.mxu0 %v517
      %1771 = vmatprep.subr.mxu0 0.0
      %1772 = vmatpush1.msra.mxu0 %v518
      %1773 = vmatprep.subr.mxu0 0.0
      %1774 = vmatpush1.msra.mxu0 %v519
      %1775 = vmatprep.subr.mxu0 0.0
      %1776 = vmatpush1.msra.mxu0 %v520
      %1777 = vmatprep.subr.mxu0 0.0
      %1778 = vmatpush1.msra.mxu0 0.0
      %1779 = vmatprep.subr.mxu0 0.0
      %1780 = vmatpush1.msra.mxu0 0.0
      %1781 = vmatprep.subr.mxu0 0.0
      %1782 = vmatpush1.msra.mxu0 0.0
      %1783 = vmatprep.subr.mxu0 0.0
      %1784 = vmatpush1.msra.mxu0 0.0
      %1785 = vmatprep.subr.mxu0 0.0
      %1786 = vmatpush1.msra.mxu0 0.0
      %1787 = vmatprep.subr.mxu0 0.0
      %1788 = vmatpush1.msra.mxu0 0.0
      %1789 = vmatprep.subr.mxu0 0.0
      %1790 = vmatpush1.msra.mxu0 0.0
      %1791 = vmatprep.subr.mxu0 0.0
      %1792 = vmatpush1.msra.mxu0 0.0
      %1793 = vmatprep.subr.mxu0 0.0
      %1794 = vmatpush1.msra.mxu0 0.0
      %1795 = vmatprep.subr.mxu0 0.0
      %1796 = vmatpush1.msra.mxu0 0.0
      %1797 = vmatprep.subr.mxu0 0.0
      %1798 = vmatpush1.msra.mxu0 0.0
      %1799 = vmatprep.subr.mxu0 0.0
      %1800 = vmatpush1.msra.mxu0 0.0
      %1801 = vmatprep.subr.mxu0 0.0
      %1802 = vmatpush1.msra.mxu0 0.0
      %1803 = vmatprep.subr.mxu0 0.0
      %1804 = vmatpush1.msra.mxu0 0.0
      %1805 = vmatprep.subr.mxu0 0.0
      %1806 = vmatpush1.msra.mxu0 0.0
      %1807 = vmatprep.subr.mxu0 0.0
      %1808 = vmatpush1.msra.mxu0 0.0
      %1809 = vmatprep.subr.mxu0 0.0
      %1810 = vmatpush1.msra.mxu0 0.0
      %1811 = vmatprep.subr.mxu0 0.0
      %1812 = vmatpush1.msra.mxu0 0.0
      %1813 = vmatprep.subr.mxu0 0.0
      %1814 = vmatpush1.msra.mxu0 0.0
      %1815 = vmatprep.subr.mxu0 0.0
      %1816 = vmatpush1.msra.mxu0 0.0
      %1817 = vmatprep.subr.mxu0 0.0
      %1818 = vmatpush1.msra.mxu0 0.0
      %1819 = vmatprep.subr.mxu0 0.0
      %1820 = vmatpush1.msra.mxu0 0.0
      %1821 = vmatprep.subr.mxu0 0.0
      %1822 = vmatpush1.msra.mxu0 0.0
      %1823 = vmatprep.subr.mxu0 0.0
      %1824 = vmatpush1.msra.mxu0 0.0
      %1825 = vmatprep.mubr.f32.mxu0 0.0
      %1826 = vmatmul.mubr.f32.gmra.mrb[0].mxu0 %v1756
      %v1827 = vpop.f32.mrb[0].mxu0
      %v1828 = vadd.f32 0.0, %v1827
      %v1829 = vpop.f32.mrb[0].mxu0
      %1830 = vmatprep.mubr.f32.mxu0 0.0
      %1831 = vmatmul.mubr.f32.gmra.mrb[0].mxu0 %v1759
      %v1832 = vpop.f32.mrb[0].mxu0
      %v1833 = vadd.f32 0.0, %v1832
      %v1834 = vpop.f32.mrb[0].mxu0
      %1835 = vdwg.mxu0
      %v1836 = vmul.f32 %v1828, %v1306
      %v1837 = vmul.f32 %v1833, %v1307
      %v1838 = vadd.f32 %v1747, %v1836
      %v1839 = vadd.f32 %v1752, %v1837
      %1840 = vst.msk [vmem:[%s505 + $0x10] sm:$0xff] %vm724, %v1838
      %1841 = vst.msk [vmem:[%s505 + $0x18] sm:$0xff] %vm724, %v1839
      %1842 = vxpose.xlu0.b32.start [1/16] %v1306, 128
      %1843 = vxpose.xlu0.b32.cont [2/16] %v1307, 128
      %1844 = vxpose.xlu0.b32.cont [3/16] 0.0, 128
      %1845 = vxpose.xlu0.b32.cont [4/16] 0.0, 128
      %1846 = vxpose.xlu0.b32.cont [5/16] 0.0, 128
      %1847 = vxpose.xlu0.b32.cont [6/16] 0.0, 128
      %1848 = vxpose.xlu0.b32.cont [7/16] 0.0, 128
      %1849 = vxpose.xlu0.b32.cont [8/16] 0.0, 128
      %1850 = vxpose.xlu0.b32.cont [9/16] 0.0, 128
      %1851 = vxpose.xlu0.b32.cont [10/16] 0.0, 128
      %1852 = vxpose.xlu0.b32.cont [11/16] 0.0, 128
      %1853 = vxpose.xlu0.b32.cont [12/16] 0.0, 128
      %1854 = vxpose.xlu0.b32.cont [13/16] 0.0, 128
      %1855 = vxpose.xlu0.b32.cont [14/16] 0.0, 128
      %1856 = vxpose.xlu0.b32.cont [15/16] 0.0, 128
      %1857 = vxpose.xlu0.b32.end [16/16] 0.0, 128
      %v1858 = vpop.trf.xlu0
      %v1859 = vpop.trf.xlu0
      %v1860 = vpop.trf.xlu0
      %v1861 = vpop.trf.xlu0
      %v1862 = vpop.trf.xlu0
      %v1863 = vpop.trf.xlu0
      %v1864 = vpop.trf.xlu0
      %v1865 = vpop.trf.xlu0
      %v1866 = vpop.trf.xlu0
      %v1867 = vpop.trf.xlu0
      %v1868 = vpop.trf.xlu0
      %v1869 = vpop.trf.xlu0
      %v1870 = vpop.trf.xlu0
      %v1871 = vpop.trf.xlu0
      %v1872 = vpop.trf.xlu0
      %v1873 = vpop.trf.xlu0
      %v1875 = vsel %vm565, %v1858, 0
      %v1878 = vsel %vm565, %v1859, 0
      %v1881 = vsel %vm565, %v1860, 0
      %v1884 = vsel %vm565, %v1861, 0
      %v1887 = vsel %vm565, %v1862, 0
      %v1890 = vsel %vm565, %v1863, 0
      %v1893 = vsel %vm565, %v1864, 0
      %v1896 = vsel %vm565, %v1865, 0
      %1898 = vmatprep.subr.mxu0 0.0
      %1899 = vmatpush1.msra.mxu0 %v1429
      %1900 = vmatprep.subr.mxu0 0.0
      %1901 = vmatpush1.msra.mxu0 %v1430
      %1902 = vmatprep.subr.mxu0 0.0
      %1903 = vmatpush1.msra.mxu0 0.0
      %1904 = vmatprep.subr.mxu0 0.0
      %1905 = vmatpush1.msra.mxu0 0.0
      %1906 = vmatprep.subr.mxu0 0.0
      %1907 = vmatpush1.msra.mxu0 0.0
      %1908 = vmatprep.subr.mxu0 0.0
      %1909 = vmatpush1.msra.mxu0 0.0
      %1910 = vmatprep.subr.mxu0 0.0
      %1911 = vmatpush1.msra.mxu0 0.0
      %1912 = vmatprep.subr.mxu0 0.0
      %1913 = vmatpush1.msra.mxu0 0.0
      %1914 = vmatprep.subr.mxu0 0.0
      %1915 = vmatpush1.msra.mxu0 0.0
      %1916 = vmatprep.subr.mxu0 0.0
      %1917 = vmatpush1.msra.mxu0 0.0
      %1918 = vmatprep.subr.mxu0 0.0
      %1919 = vmatpush1.msra.mxu0 0.0
      %1920 = vmatprep.subr.mxu0 0.0
      %1921 = vmatpush1.msra.mxu0 0.0
      %1922 = vmatprep.subr.mxu0 0.0
      %1923 = vmatpush1.msra.mxu0 0.0
      %1924 = vmatprep.subr.mxu0 0.0
      %1925 = vmatpush1.msra.mxu0 0.0
      %1926 = vmatprep.subr.mxu0 0.0
      %1927 = vmatpush1.msra.mxu0 0.0
      %1928 = vmatprep.subr.mxu0 0.0
      %1929 = vmatpush1.msra.mxu0 0.0
      %1930 = vmatprep.subr.mxu0 0.0
      %1931 = vmatpush1.msra.mxu0 0.0
      %1932 = vmatprep.subr.mxu0 0.0
      %1933 = vmatpush1.msra.mxu0 0.0
      %1934 = vmatprep.subr.mxu0 0.0
      %1935 = vmatpush1.msra.mxu0 0.0
      %1936 = vmatprep.subr.mxu0 0.0
      %1937 = vmatpush1.msra.mxu0 0.0
      %1938 = vmatprep.subr.mxu0 0.0
      %1939 = vmatpush1.msra.mxu0 0.0
      %1940 = vmatprep.subr.mxu0 0.0
      %1941 = vmatpush1.msra.mxu0 0.0
      %1942 = vmatprep.subr.mxu0 0.0
      %1943 = vmatpush1.msra.mxu0 0.0
      %1944 = vmatprep.subr.mxu0 0.0
      %1945 = vmatpush1.msra.mxu0 0.0
      %1946 = vmatprep.subr.mxu0 0.0
      %1947 = vmatpush1.msra.mxu0 0.0
      %1948 = vmatprep.subr.mxu0 0.0
      %1949 = vmatpush1.msra.mxu0 0.0
      %1950 = vmatprep.subr.mxu0 0.0
      %1951 = vmatpush1.msra.mxu0 0.0
      %1952 = vmatprep.subr.mxu0 0.0
      %1953 = vmatpush1.msra.mxu0 0.0
      %1954 = vmatprep.subr.mxu0 0.0
      %1955 = vmatpush1.msra.mxu0 0.0
      %1956 = vmatprep.subr.mxu0 0.0
      %1957 = vmatpush1.msra.mxu0 0.0
      %1958 = vmatprep.subr.mxu0 0.0
      %1959 = vmatpush1.msra.mxu0 0.0
      %1960 = vmatprep.subr.mxu0 0.0
      %1961 = vmatpush1.msra.mxu0 0.0
      %1962 = vmatprep.mubr.f32.mxu0 0.0
      %1963 = vmatmul.mubr.f32.gmra.mrb[0].mxu0 %v1875
      %v1964 = vpop.f32.mrb[0].mxu0
      %v1965 = vadd.f32 0.0, %v1964
      %v1966 = vpop.f32.mrb[0].mxu0
      %1967 = vmatprep.mubr.f32.mxu0 0.0
      %1968 = vmatmul.mubr.f32.gmra.mrb[0].mxu0 %v1878
      %v1969 = vpop.f32.mrb[0].mxu0
      %v1970 = vadd.f32 0.0, %v1969
      %v1971 = vpop.f32.mrb[0].mxu0
      %1972 = vmatprep.mubr.f32.mxu0 0.0
      %1973 = vmatmul.mubr.f32.gmra.mrb[0].mxu0 %v1881
      %v1974 = vpop.f32.mrb[0].mxu0
      %v1975 = vadd.f32 0.0, %v1974
      %v1976 = vpop.f32.mrb[0].mxu0
      %1977 = vmatprep.mubr.f32.mxu0 0.0
      %1978 = vmatmul.mubr.f32.gmra.mrb[0].mxu0 %v1884
      %v1979 = vpop.f32.mrb[0].mxu0
      %v1980 = vadd.f32 0.0, %v1979
      %v1981 = vpop.f32.mrb[0].mxu0
      %1982 = vmatprep.mubr.f32.mxu0 0.0
      %1983 = vmatmul.mubr.f32.gmra.mrb[0].mxu0 %v1887
      %v1984 = vpop.f32.mrb[0].mxu0
      %v1985 = vadd.f32 0.0, %v1984
      %v1986 = vpop.f32.mrb[0].mxu0
      %1987 = vmatprep.mubr.f32.mxu0 0.0
      %1988 = vmatmul.mubr.f32.gmra.mrb[0].mxu0 %v1890
      %v1989 = vpop.f32.mrb[0].mxu0
      %v1990 = vadd.f32 0.0, %v1989
      %v1991 = vpop.f32.mrb[0].mxu0
      %1992 = vmatprep.mubr.f32.mxu0 0.0
      %1993 = vmatmul.mubr.f32.gmra.mrb[0].mxu0 %v1893
      %v1994 = vpop.f32.mrb[0].mxu0
      %v1995 = vadd.f32 0.0, %v1994
      %v1996 = vpop.f32.mrb[0].mxu0
      %1997 = vmatprep.mubr.f32.mxu0 0.0
      %1998 = vmatmul.mubr.f32.gmra.mrb[0].mxu0 %v1896
      %v1999 = vpop.f32.mrb[0].mxu0
      %v2000 = vadd.f32 0.0, %v1999
      %v2001 = vpop.f32.mrb[0].mxu0
      %2002 = vdwg.mxu0
      %v2003 = vlaneseq
      %v2004 = vshrl.u32 %v2003, 7
      %v2005 = vsub.s32 7, %v2004
      %v2006 = vrot.slane %v1433, %v2005
      %v2007 = vmul.f32 %v1438, %v2006
      %v2008 = vmul.f32 %v1439, %v2006
      %v2009 = vmul.f32 %v1440, %v2006
      %v2010 = vmul.f32 %v1441, %v2006
      %v2011 = vmul.f32 %v1442, %v2006
      %v2012 = vmul.f32 %v1443, %v2006
      %v2013 = vmul.f32 %v1444, %v2006
      %v2014 = vmul.f32 %v1445, %v2006
      %v2015 = vmul.f32 %v1965, %v513
      %v2016 = vmul.f32 %v1970, %v514
      %v2017 = vmul.f32 %v1975, %v515
      %v2018 = vmul.f32 %v1980, %v516
      %v2019 = vmul.f32 %v1985, %v517
      %v2020 = vmul.f32 %v1990, %v518
      %v2021 = vmul.f32 %v1995, %v519
      %v2022 = vmul.f32 %v2000, %v520
      %v2023 = vadd.f32 %v2007, %v2015
      %v2024 = vadd.f32 %v2008, %v2016
      %v2025 = vadd.f32 %v2009, %v2017
      %v2026 = vadd.f32 %v2010, %v2018
      %v2027 = vadd.f32 %v2011, %v2019
      %v2028 = vadd.f32 %v2012, %v2020
      %v2029 = vadd.f32 %v2013, %v2021
      %v2030 = vadd.f32 %v2014, %v2022
      %2031 = vst.msk [vmem:[#allocation2] sm:$0xff] %vm724, %v2023
      %2032 = vst.msk [vmem:[#allocation2 + $0x8] sm:$0xff] %vm724, %v2024
      %2033 = vst.msk [vmem:[#allocation2 + $0x10] sm:$0xff] %vm724, %v2025
      %2034 = vst.msk [vmem:[#allocation2 + $0x18] sm:$0xff] %vm724, %v2026
      %2035 = vst.msk [vmem:[#allocation2 + $0x20] sm:$0xff] %vm724, %v2027
      %2036 = vst.msk [vmem:[#allocation2 + $0x28] sm:$0xff] %vm724, %v2028
      %2037 = vst.msk [vmem:[#allocation2 + $0x30] sm:$0xff] %vm724, %v2029
      %2038 = vst.msk [vmem:[#allocation2 + $0x38] sm:$0xff] %vm724, %v2030
      %v2039 = vld [vmem:[%s465 + $0x20] sm:$0xff]
      %v2040 = vld [vmem:[%s465 + $0x28] sm:$0xff]
      %v2041 = vld [vmem:[%s475 + $0x20] sm:$0xff]
      %v2042 = vld [vmem:[%s475 + $0x28] sm:$0xff]
      %v2043 = vld [vmem:[%s485 + $0x20] sm:$0xff]
      %v2044 = vld [vmem:[%s485 + $0x28] sm:$0xff]
      %v2045 = vld [vmem:[%s495 + $0x20] sm:$0xff]
      %v2046 = vld [vmem:[%s495 + $0x28] sm:$0xff]
      %v2047 = vmul.f32 %v2045, 1.442695
      %v2048 = vpow.pop %v2047
      %v2049 = vmul.f32 %v2046, 1.442695
      %v2050 = vpow.pop %v2049
      %v2051 = vmin.f32 %v2048, 7.7777777
      %v2052 = vmin.f32 %v2050, 7.7777777
      %2053 = vmatprep.subr.mxu0 0.0
      %2054 = vmatpush1.msra.mxu0 %v2051
      %2055 = vmatprep.subr.mxu0 0.0
      %2056 = vmatpush1.msra.mxu0 %v2052
      %2057 = vmatprep.subr.mxu0 0.0
      %2058 = vmatpush1.msra.mxu0 0.0
      %2059 = vmatprep.subr.mxu0 0.0
      %2060 = vmatpush1.msra.mxu0 0.0
      %2061 = vmatprep.subr.mxu0 0.0
      %2062 = vmatpush1.msra.mxu0 0.0
      %2063 = vmatprep.subr.mxu0 0.0
      %2064 = vmatpush1.msra.mxu0 0.0
      %2065 = vmatprep.subr.mxu0 0.0
      %2066 = vmatpush1.msra.mxu0 0.0
      %2067 = vmatprep.subr.mxu0 0.0
      %2068 = vmatpush1.msra.mxu0 0.0
      %2069 = vmatprep.subr.mxu0 0.0
      %2070 = vmatpush1.msra.mxu0 0.0
      %2071 = vmatprep.subr.mxu0 0.0
      %2072 = vmatpush1.msra.mxu0 0.0
      %2073 = vmatprep.subr.mxu0 0.0
      %2074 = vmatpush1.msra.mxu0 0.0
      %2075 = vmatprep.subr.mxu0 0.0
      %2076 = vmatpush1.msra.mxu0 0.0
      %2077 = vmatprep.subr.mxu0 0.0
      %2078 = vmatpush1.msra.mxu0 0.0
      %2079 = vmatprep.subr.mxu0 0.0
      %2080 = vmatpush1.msra.mxu0 0.0
      %2081 = vmatprep.subr.mxu0 0.0
      %2082 = vmatpush1.msra.mxu0 0.0
      %2083 = vmatprep.subr.mxu0 0.0
      %2084 = vmatpush1.msra.mxu0 0.0
      %2085 = vmatprep.subr.mxu0 0.0
      %2086 = vmatpush1.msra.mxu0 0.0
      %2087 = vmatprep.subr.mxu0 0.0
      %2088 = vmatpush1.msra.mxu0 0.0
      %2089 = vmatprep.subr.mxu0 0.0
      %2090 = vmatpush1.msra.mxu0 0.0
      %2091 = vmatprep.subr.mxu0 0.0
      %2092 = vmatpush1.msra.mxu0 0.0
      %2093 = vmatprep.subr.mxu0 0.0
      %2094 = vmatpush1.msra.mxu0 0.0
      %2095 = vmatprep.subr.mxu0 0.0
      %2096 = vmatpush1.msra.mxu0 0.0
      %2097 = vmatprep.subr.mxu0 0.0
      %2098 = vmatpush1.msra.mxu0 0.0
      %2099 = vmatprep.subr.mxu0 0.0
      %2100 = vmatpush1.msra.mxu0 0.0
      %2101 = vmatprep.subr.mxu0 0.0
      %2102 = vmatpush1.msra.mxu0 0.0
      %2103 = vmatprep.subr.mxu0 0.0
      %2104 = vmatpush1.msra.mxu0 0.0
      %2105 = vmatprep.subr.mxu0 0.0
      %2106 = vmatpush1.msra.mxu0 0.0
      %2107 = vmatprep.subr.mxu0 0.0
      %2108 = vmatpush1.msra.mxu0 0.0
      %2109 = vmatprep.subr.mxu0 0.0
      %2110 = vmatpush1.msra.mxu0 0.0
      %2111 = vmatprep.subr.mxu0 0.0
      %2112 = vmatpush1.msra.mxu0 0.0
      %2113 = vmatprep.subr.mxu0 0.0
      %2114 = vmatpush1.msra.mxu0 0.0
      %2115 = vmatprep.subr.mxu0 0.0
      %2116 = vmatpush1.msra.mxu0 0.0
      %2117 = vmatprep.mubr.f32.mxu0 0.0
      %2118 = vmatmul.mubr.f32.gmra.mrb[0].mxu0 %v567
      %v2119 = vpop.f32.mrb[0].mxu0
      %v2120 = vadd.f32 0.0, %v2119
      %v2121 = vpop.f32.mrb[0].mxu0
      %2122 = vmatprep.mubr.f32.mxu0 0.0
      %2123 = vmatmul.mubr.f32.gmra.mrb[0].mxu0 %v570
      %v2124 = vpop.f32.mrb[0].mxu0
      %v2125 = vadd.f32 0.0, %v2124
      %v2126 = vpop.f32.mrb[0].mxu0
      %2127 = vdwg.mxu0
      %v2128 = vsub.f32 %v2051, %v2120
      %v2129 = vsub.f32 %v2052, %v2125
      %v2130 = vmul.f32 %v2128, 1.442695
      %v2131 = vpow.pop %v2130
      %v2132 = vmul.f32 %v2129, 1.442695
      %v2133 = vpow.pop %v2132
      %v2134 = vlaneseq
      %v2135 = vshrl.u32 %v2134, 7
      %v2136 = vsub.s32 0, %v2135
      %v2137 = vrot.slane %v2125, %v2136
      %v2138 = vsub.f32 %v2120, %v2137
      %v2139 = vsub.f32 %v2125, %v2137
      %v2140 = vmul.f32 %v2138, 1.442695
      %v2141 = vpow.pop %v2140
      %v2142 = vmul.f32 %v2139, 1.442695
      %v2143 = vpow.pop %v2142
      %v2144 = vmul.f32 %v2039, %v2131
      %v2145 = vmul.f32 %v2040, %v2133
      %v2146 = vmul.f32 %v2125, 1.442695
      %v2147 = vpow.pop %v2146
      %v2148 = vlaneseq
      %v2149 = vshrl.u32 %v2148, 7
      %v2150 = vsub.s32 0, %v2149
      %v2151 = vrot.slane %v2147, %v2150
      %v2152 = vmul.f32 %v2144, %v2151
      %v2153 = vmul.f32 %v2145, %v2151
      %v2154 = vmul.f32 %v2041, %v2141
      %v2155 = vmul.f32 %v2042, %v2143
      %v2157 = vrot.slane %v2125, 7
      %v2159 = vsub.f32 %v2125, %v2157
      %v2160 = vmul.f32 %v2159, 1.442695
      %v2161 = vpow.pop %v2160
      %v2162 = vlaneseq
      %v2163 = vshrl.u32 %v2162, 7
      %v2164 = vsub.s32 0, %v2163
      %v2165 = vrot.slane %v2161, %v2164
      %v2166 = vmul.f32 %v2154, %v2165
      %v2167 = vmul.f32 %v2155, %v2165
      %v2168 = vsub.f32 0.0, %v2125
      %v2169 = vmul.f32 %v2168, 1.442695
      %v2170 = vpow.pop %v2169
      %v2171 = vmul.f32 %v2039, %v694
      %v2172 = vmul.f32 %v2040, %v694
      %v2173 = vmul.f32 %v2171, %v2041
      %v2174 = vmul.f32 %v2172, %v2042
      %v2175 = vld [vmem:[#allocation2] sm:$0xff]
      %v2176 = vld [vmem:[#allocation2 + $0x8] sm:$0xff]
      %v2177 = vld [vmem:[#allocation2 + $0x10] sm:$0xff]
      %v2178 = vld [vmem:[#allocation2 + $0x18] sm:$0xff]
      %v2179 = vld [vmem:[#allocation2 + $0x20] sm:$0xff]
      %v2180 = vld [vmem:[#allocation2 + $0x28] sm:$0xff]
      %v2181 = vld [vmem:[#allocation2 + $0x30] sm:$0xff]
      %v2182 = vld [vmem:[#allocation2 + $0x38] sm:$0xff]
      %v2183 = vmul.f32 %v2154, %v521
      %v2184 = vmul.f32 %v2155, %v522
      %v2185 = vmul.f32 %v2154, %v523
      %v2186 = vmul.f32 %v2155, %v524
      %v2187 = vmul.f32 %v2154, %v525
      %v2188 = vmul.f32 %v2155, %v526
      %v2189 = vmul.f32 %v2154, %v527
      %v2190 = vmul.f32 %v2155, %v528
      %v2191 = vmul.f32 %v2043, %v521
      %v2192 = vmul.f32 %v2044, %v522
      %v2193 = vmul.f32 %v2043, %v523
      %v2194 = vmul.f32 %v2044, %v524
      %v2195 = vmul.f32 %v2043, %v525
      %v2196 = vmul.f32 %v2044, %v526
      %v2197 = vmul.f32 %v2043, %v527
      %v2198 = vmul.f32 %v2044, %v528
      %v2200 = vsel %vm724, %v2152, 0
      %v2203 = vsel %vm724, %v2153, 0
      %v2206 = vsel %vm724, %v2183, 0
      %v2209 = vsel %vm724, %v2184, 0
      %v2212 = vsel %vm724, %v2185, 0
      %v2215 = vsel %vm724, %v2186, 0
      %v2218 = vsel %vm724, %v2187, 0
      %v2221 = vsel %vm724, %v2188, 0
      %v2224 = vsel %vm724, %v2189, 0
      %v2227 = vsel %vm724, %v2190, 0
      %2229 = vmatprep.subr.mxu0 0.0
      %2230 = vmatpush1.xpose.msra.mxu0 %v2206
      %2231 = vmatprep.subr.mxu0 0.0
      %2232 = vmatpush1.xpose.msra.mxu0 %v2209
      %2233 = vmatprep.subr.mxu0 0.0
      %2234 = vmatpush1.xpose.msra.mxu0 %v2212
      %2235 = vmatprep.subr.mxu0 0.0
      %2236 = vmatpush1.xpose.msra.mxu0 %v2215
      %2237 = vmatprep.subr.mxu0 0.0
      %2238 = vmatpush1.xpose.msra.mxu0 %v2218
      %2239 = vmatprep.subr.mxu0 0.0
      %2240 = vmatpush1.xpose.msra.mxu0 %v2221
      %2241 = vmatprep.subr.mxu0 0.0
      %2242 = vmatpush1.xpose.msra.mxu0 %v2224
      %2243 = vmatprep.subr.mxu0 0.0
      %2244 = vmatpush1.xpose.msra.mxu0 %v2227
      %2245 = vmatprep.subr.mxu0 0.0
      %2246 = vmatpush1.xpose.msra.mxu0 0.0
      %2247 = vmatprep.subr.mxu0 0.0
      %2248 = vmatpush1.xpose.msra.mxu0 0.0
      %2249 = vmatprep.subr.mxu0 0.0
      %2250 = vmatpush1.xpose.msra.mxu0 0.0
      %2251 = vmatprep.subr.mxu0 0.0
      %2252 = vmatpush1.xpose.msra.mxu0 0.0
      %2253 = vmatprep.subr.mxu0 0.0
      %2254 = vmatpush1.xpose.msra.mxu0 0.0
      %2255 = vmatprep.subr.mxu0 0.0
      %2256 = vmatpush1.xpose.msra.mxu0 0.0
      %2257 = vmatprep.subr.mxu0 0.0
      %2258 = vmatpush1.xpose.msra.mxu0 0.0
      %2259 = vmatprep.subr.mxu0 0.0
      %2260 = vmatpush1.xpose.msra.mxu0 0.0
      %2261 = vmatprep.subr.mxu0 0.0
      %2262 = vmatpush1.xpose.msra.mxu0 0.0
      %2263 = vmatprep.subr.mxu0 0.0
      %2264 = vmatpush1.xpose.msra.mxu0 0.0
      %2265 = vmatprep.subr.mxu0 0.0
      %2266 = vmatpush1.xpose.msra.mxu0 0.0
      %2267 = vmatprep.subr.mxu0 0.0
      %2268 = vmatpush1.xpose.msra.mxu0 0.0
      %2269 = vmatprep.subr.mxu0 0.0
      %2270 = vmatpush1.xpose.msra.mxu0 0.0
      %2271 = vmatprep.subr.mxu0 0.0
      %2272 = vmatpush1.xpose.msra.mxu0 0.0
      %2273 = vmatprep.subr.mxu0 0.0
      %2274 = vmatpush1.xpose.msra.mxu0 0.0
      %2275 = vmatprep.subr.mxu0 0.0
      %2276 = vmatpush1.xpose.msra.mxu0 0.0
      %2277 = vmatprep.subr.mxu0 0.0
      %2278 = vmatpush1.xpose.msra.mxu0 0.0
      %2279 = vmatprep.subr.mxu0 0.0
      %2280 = vmatpush1.xpose.msra.mxu0 0.0
      %2281 = vmatprep.subr.mxu0 0.0
      %2282 = vmatpush1.xpose.msra.mxu0 0.0
      %2283 = vmatprep.subr.mxu0 0.0
      %2284 = vmatpush1.xpose.msra.mxu0 0.0
      %2285 = vmatprep.subr.mxu0 0.0
      %2286 = vmatpush1.xpose.msra.mxu0 0.0
      %2287 = vmatprep.subr.mxu0 0.0
      %2288 = vmatpush1.xpose.msra.mxu0 0.0
      %2289 = vmatprep.subr.mxu0 0.0
      %2290 = vmatpush1.xpose.msra.mxu0 0.0
      %2291 = vmatprep.subr.mxu0 0.0
      %2292 = vmatpush1.xpose.msra.mxu0 0.0
      %2293 = vmatprep.mubr.f32.mxu0 0.0
      %2294 = vmatmul.mubr.f32.gmra.mrb[0].mxu0 %v2200
      %v2295 = vpop.f32.mrb[0].mxu0
      %v2296 = vadd.f32 0.0, %v2295
      %v2297 = vpop.f32.mrb[0].mxu0
      %2298 = vmatprep.mubr.f32.mxu0 0.0
      %2299 = vmatmul.mubr.f32.gmra.mrb[0].mxu0 %v2203
      %v2300 = vpop.f32.mrb[0].mxu0
      %v2301 = vadd.f32 0.0, %v2300
      %v2302 = vpop.f32.mrb[0].mxu0
      %2303 = vdwg.mxu0
      %v2304 = vsel %vm511, %v2296, 0.0
      %v2305 = vsel %vm512, %v2301, 0.0
      %v2307 = vsel %vm724, %v2304, 0
      %v2310 = vsel %vm724, %v2305, 0
      %2312 = vmatprep.subr.mxu0 0.0
      %2313 = vmatpush1.msra.mxu0 %v2191
      %2314 = vmatprep.subr.mxu0 0.0
      %2315 = vmatpush1.msra.mxu0 %v2192
      %2316 = vmatprep.subr.mxu0 0.0
      %2317 = vmatpush1.msra.mxu0 %v2193
      %2318 = vmatprep.subr.mxu0 0.0
      %2319 = vmatpush1.msra.mxu0 %v2194
      %2320 = vmatprep.subr.mxu0 0.0
      %2321 = vmatpush1.msra.mxu0 %v2195
      %2322 = vmatprep.subr.mxu0 0.0
      %2323 = vmatpush1.msra.mxu0 %v2196
      %2324 = vmatprep.subr.mxu0 0.0
      %2325 = vmatpush1.msra.mxu0 %v2197
      %2326 = vmatprep.subr.mxu0 0.0
      %2327 = vmatpush1.msra.mxu0 %v2198
      %2328 = vmatprep.subr.mxu0 0.0
      %2329 = vmatpush1.msra.mxu0 0.0
      %2330 = vmatprep.subr.mxu0 0.0
      %2331 = vmatpush1.msra.mxu0 0.0
      %2332 = vmatprep.subr.mxu0 0.0
      %2333 = vmatpush1.msra.mxu0 0.0
      %2334 = vmatprep.subr.mxu0 0.0
      %2335 = vmatpush1.msra.mxu0 0.0
      %2336 = vmatprep.subr.mxu0 0.0
      %2337 = vmatpush1.msra.mxu0 0.0
      %2338 = vmatprep.subr.mxu0 0.0
      %2339 = vmatpush1.msra.mxu0 0.0
      %2340 = vmatprep.subr.mxu0 0.0
      %2341 = vmatpush1.msra.mxu0 0.0
      %2342 = vmatprep.subr.mxu0 0.0
      %2343 = vmatpush1.msra.mxu0 0.0
      %2344 = vmatprep.subr.mxu0 0.0
      %2345 = vmatpush1.msra.mxu0 0.0
      %2346 = vmatprep.subr.mxu0 0.0
      %2347 = vmatpush1.msra.mxu0 0.0
      %2348 = vmatprep.subr.mxu0 0.0
      %2349 = vmatpush1.msra.mxu0 0.0
      %2350 = vmatprep.subr.mxu0 0.0
      %2351 = vmatpush1.msra.mxu0 0.0
      %2352 = vmatprep.subr.mxu0 0.0
      %2353 = vmatpush1.msra.mxu0 0.0
      %2354 = vmatprep.subr.mxu0 0.0
      %2355 = vmatpush1.msra.mxu0 0.0
      %2356 = vmatprep.subr.mxu0 0.0
      %2357 = vmatpush1.msra.mxu0 0.0
      %2358 = vmatprep.subr.mxu0 0.0
      %2359 = vmatpush1.msra.mxu0 0.0
      %2360 = vmatprep.subr.mxu0 0.0
      %2361 = vmatpush1.msra.mxu0 0.0
      %2362 = vmatprep.subr.mxu0 0.0
      %2363 = vmatpush1.msra.mxu0 0.0
      %2364 = vmatprep.subr.mxu0 0.0
      %2365 = vmatpush1.msra.mxu0 0.0
      %2366 = vmatprep.subr.mxu0 0.0
      %2367 = vmatpush1.msra.mxu0 0.0
      %2368 = vmatprep.subr.mxu0 0.0
      %2369 = vmatpush1.msra.mxu0 0.0
      %2370 = vmatprep.subr.mxu0 0.0
      %2371 = vmatpush1.msra.mxu0 0.0
      %2372 = vmatprep.subr.mxu0 0.0
      %2373 = vmatpush1.msra.mxu0 0.0
      %2374 = vmatprep.subr.mxu0 0.0
      %2375 = vmatpush1.msra.mxu0 0.0
      %2376 = vmatprep.mubr.f32.mxu0 0.0
      %2377 = vmatmul.mubr.f32.gmra.mrb[0].mxu0 %v2307
      %v2378 = vpop.f32.mrb[0].mxu0
      %v2379 = vadd.f32 0.0, %v2378
      %v2380 = vpop.f32.mrb[0].mxu0
      %2381 = vmatprep.mubr.f32.mxu0 0.0
      %2382 = vmatmul.mubr.f32.gmra.mrb[0].mxu0 %v2310
      %v2383 = vpop.f32.mrb[0].mxu0
      %v2384 = vadd.f32 0.0, %v2383
      %v2385 = vpop.f32.mrb[0].mxu0
      %2386 = vdwg.mxu0
      %v2388 = vsel %vm724, %v2144, 0
      %v2391 = vsel %vm724, %v2145, 0
      %v2394 = vsel %vm724, %v2175, 0
      %v2397 = vsel %vm724, %v2176, 0
      %v2400 = vsel %vm724, %v2177, 0
      %v2403 = vsel %vm724, %v2178, 0
      %v2406 = vsel %vm724, %v2179, 0
      %v2409 = vsel %vm724, %v2180, 0
      %v2412 = vsel %vm724, %v2181, 0
      %v2415 = vsel %vm724, %v2182, 0
      %2417 = vmatprep.subr.mxu0 0.0
      %2418 = vmatpush1.xpose.msra.mxu0 %v2394
      %2419 = vmatprep.subr.mxu0 0.0
      %2420 = vmatpush1.xpose.msra.mxu0 %v2397
      %2421 = vmatprep.subr.mxu0 0.0
      %2422 = vmatpush1.xpose.msra.mxu0 %v2400
      %2423 = vmatprep.subr.mxu0 0.0
      %2424 = vmatpush1.xpose.msra.mxu0 %v2403
      %2425 = vmatprep.subr.mxu0 0.0
      %2426 = vmatpush1.xpose.msra.mxu0 %v2406
      %2427 = vmatprep.subr.mxu0 0.0
      %2428 = vmatpush1.xpose.msra.mxu0 %v2409
      %2429 = vmatprep.subr.mxu0 0.0
      %2430 = vmatpush1.xpose.msra.mxu0 %v2412
      %2431 = vmatprep.subr.mxu0 0.0
      %2432 = vmatpush1.xpose.msra.mxu0 %v2415
      %2433 = vmatprep.subr.mxu0 0.0
      %2434 = vmatpush1.xpose.msra.mxu0 0.0
      %2435 = vmatprep.subr.mxu0 0.0
      %2436 = vmatpush1.xpose.msra.mxu0 0.0
      %2437 = vmatprep.subr.mxu0 0.0
      %2438 = vmatpush1.xpose.msra.mxu0 0.0
      %2439 = vmatprep.subr.mxu0 0.0
      %2440 = vmatpush1.xpose.msra.mxu0 0.0
      %2441 = vmatprep.subr.mxu0 0.0
      %2442 = vmatpush1.xpose.msra.mxu0 0.0
      %2443 = vmatprep.subr.mxu0 0.0
      %2444 = vmatpush1.xpose.msra.mxu0 0.0
      %2445 = vmatprep.subr.mxu0 0.0
      %2446 = vmatpush1.xpose.msra.mxu0 0.0
      %2447 = vmatprep.subr.mxu0 0.0
      %2448 = vmatpush1.xpose.msra.mxu0 0.0
      %2449 = vmatprep.subr.mxu0 0.0
      %2450 = vmatpush1.xpose.msra.mxu0 0.0
      %2451 = vmatprep.subr.mxu0 0.0
      %2452 = vmatpush1.xpose.msra.mxu0 0.0
      %2453 = vmatprep.subr.mxu0 0.0
      %2454 = vmatpush1.xpose.msra.mxu0 0.0
      %2455 = vmatprep.subr.mxu0 0.0
      %2456 = vmatpush1.xpose.msra.mxu0 0.0
      %2457 = vmatprep.subr.mxu0 0.0
      %2458 = vmatpush1.xpose.msra.mxu0 0.0
      %2459 = vmatprep.subr.mxu0 0.0
      %2460 = vmatpush1.xpose.msra.mxu0 0.0
      %2461 = vmatprep.subr.mxu0 0.0
      %2462 = vmatpush1.xpose.msra.mxu0 0.0
      %2463 = vmatprep.subr.mxu0 0.0
      %2464 = vmatpush1.xpose.msra.mxu0 0.0
      %2465 = vmatprep.subr.mxu0 0.0
      %2466 = vmatpush1.xpose.msra.mxu0 0.0
      %2467 = vmatprep.subr.mxu0 0.0
      %2468 = vmatpush1.xpose.msra.mxu0 0.0
      %2469 = vmatprep.subr.mxu0 0.0
      %2470 = vmatpush1.xpose.msra.mxu0 0.0
      %2471 = vmatprep.subr.mxu0 0.0
      %2472 = vmatpush1.xpose.msra.mxu0 0.0
      %2473 = vmatprep.subr.mxu0 0.0
      %2474 = vmatpush1.xpose.msra.mxu0 0.0
      %2475 = vmatprep.subr.mxu0 0.0
      %2476 = vmatpush1.xpose.msra.mxu0 0.0
      %2477 = vmatprep.subr.mxu0 0.0
      %2478 = vmatpush1.xpose.msra.mxu0 0.0
      %2479 = vmatprep.subr.mxu0 0.0
      %2480 = vmatpush1.xpose.msra.mxu0 0.0
      %2481 = vmatprep.mubr.f32.mxu0 0.0
      %2482 = vmatmul.mubr.f32.gmra.mrb[0].mxu0 %v2388
      %v2483 = vpop.f32.mrb[0].mxu0
      %v2484 = vadd.f32 %v2379, %v2483
      %v2485 = vpop.f32.mrb[0].mxu0
      %2486 = vmatprep.mubr.f32.mxu0 0.0
      %2487 = vmatmul.mubr.f32.gmra.mrb[0].mxu0 %v2391
      %v2488 = vpop.f32.mrb[0].mxu0
      %v2489 = vadd.f32 %v2384, %v2488
      %v2490 = vpop.f32.mrb[0].mxu0
      %2491 = vdwg.mxu0
      %v2493 = vsel %vm724, %v2173, 0
      %v2496 = vsel %vm724, %v2174, 0
      %2498 = vmatprep.subr.mxu0 0.0
      %2499 = vmatpush1.msra.mxu0 %v513
      %2500 = vmatprep.subr.mxu0 0.0
      %2501 = vmatpush1.msra.mxu0 %v514
      %2502 = vmatprep.subr.mxu0 0.0
      %2503 = vmatpush1.msra.mxu0 %v515
      %2504 = vmatprep.subr.mxu0 0.0
      %2505 = vmatpush1.msra.mxu0 %v516
      %2506 = vmatprep.subr.mxu0 0.0
      %2507 = vmatpush1.msra.mxu0 %v517
      %2508 = vmatprep.subr.mxu0 0.0
      %2509 = vmatpush1.msra.mxu0 %v518
      %2510 = vmatprep.subr.mxu0 0.0
      %2511 = vmatpush1.msra.mxu0 %v519
      %2512 = vmatprep.subr.mxu0 0.0
      %2513 = vmatpush1.msra.mxu0 %v520
      %2514 = vmatprep.subr.mxu0 0.0
      %2515 = vmatpush1.msra.mxu0 0.0
      %2516 = vmatprep.subr.mxu0 0.0
      %2517 = vmatpush1.msra.mxu0 0.0
      %2518 = vmatprep.subr.mxu0 0.0
      %2519 = vmatpush1.msra.mxu0 0.0
      %2520 = vmatprep.subr.mxu0 0.0
      %2521 = vmatpush1.msra.mxu0 0.0
      %2522 = vmatprep.subr.mxu0 0.0
      %2523 = vmatpush1.msra.mxu0 0.0
      %2524 = vmatprep.subr.mxu0 0.0
      %2525 = vmatpush1.msra.mxu0 0.0
      %2526 = vmatprep.subr.mxu0 0.0
      %2527 = vmatpush1.msra.mxu0 0.0
      %2528 = vmatprep.subr.mxu0 0.0
      %2529 = vmatpush1.msra.mxu0 0.0
      %2530 = vmatprep.subr.mxu0 0.0
      %2531 = vmatpush1.msra.mxu0 0.0
      %2532 = vmatprep.subr.mxu0 0.0
      %2533 = vmatpush1.msra.mxu0 0.0
      %2534 = vmatprep.subr.mxu0 0.0
      %2535 = vmatpush1.msra.mxu0 0.0
      %2536 = vmatprep.subr.mxu0 0.0
      %2537 = vmatpush1.msra.mxu0 0.0
      %2538 = vmatprep.subr.mxu0 0.0
      %2539 = vmatpush1.msra.mxu0 0.0
      %2540 = vmatprep.subr.mxu0 0.0
      %2541 = vmatpush1.msra.mxu0 0.0
      %2542 = vmatprep.subr.mxu0 0.0
      %2543 = vmatpush1.msra.mxu0 0.0
      %2544 = vmatprep.subr.mxu0 0.0
      %2545 = vmatpush1.msra.mxu0 0.0
      %2546 = vmatprep.subr.mxu0 0.0
      %2547 = vmatpush1.msra.mxu0 0.0
      %2548 = vmatprep.subr.mxu0 0.0
      %2549 = vmatpush1.msra.mxu0 0.0
      %2550 = vmatprep.subr.mxu0 0.0
      %2551 = vmatpush1.msra.mxu0 0.0
      %2552 = vmatprep.subr.mxu0 0.0
      %2553 = vmatpush1.msra.mxu0 0.0
      %2554 = vmatprep.subr.mxu0 0.0
      %2555 = vmatpush1.msra.mxu0 0.0
      %2556 = vmatprep.subr.mxu0 0.0
      %2557 = vmatpush1.msra.mxu0 0.0
      %2558 = vmatprep.subr.mxu0 0.0
      %2559 = vmatpush1.msra.mxu0 0.0
      %2560 = vmatprep.subr.mxu0 0.0
      %2561 = vmatpush1.msra.mxu0 0.0
      %2562 = vmatprep.mubr.f32.mxu0 0.0
      %2563 = vmatmul.mubr.f32.gmra.mrb[0].mxu0 %v2493
      %v2564 = vpop.f32.mrb[0].mxu0
      %v2565 = vadd.f32 0.0, %v2564
      %v2566 = vpop.f32.mrb[0].mxu0
      %2567 = vmatprep.mubr.f32.mxu0 0.0
      %2568 = vmatmul.mubr.f32.gmra.mrb[0].mxu0 %v2496
      %v2569 = vpop.f32.mrb[0].mxu0
      %v2570 = vadd.f32 0.0, %v2569
      %v2571 = vpop.f32.mrb[0].mxu0
      %2572 = vdwg.mxu0
      %v2573 = vmul.f32 %v2565, %v2043
      %v2574 = vmul.f32 %v2570, %v2044
      %v2575 = vadd.f32 %v2484, %v2573
      %v2576 = vadd.f32 %v2489, %v2574
      %2577 = vst.msk [vmem:[%s505 + $0x20] sm:$0xff] %vm724, %v2575
      %2578 = vst.msk [vmem:[%s505 + $0x28] sm:$0xff] %vm724, %v2576
      %2579 = vxpose.xlu0.b32.start [1/16] %v2043, 128
      %2580 = vxpose.xlu0.b32.cont [2/16] %v2044, 128
      %2581 = vxpose.xlu0.b32.cont [3/16] 0.0, 128
      %2582 = vxpose.xlu0.b32.cont [4/16] 0.0, 128
      %2583 = vxpose.xlu0.b32.cont [5/16] 0.0, 128
      %2584 = vxpose.xlu0.b32.cont [6/16] 0.0, 128
      %2585 = vxpose.xlu0.b32.cont [7/16] 0.0, 128
      %2586 = vxpose.xlu0.b32.cont [8/16] 0.0, 128
      %2587 = vxpose.xlu0.b32.cont [9/16] 0.0, 128
      %2588 = vxpose.xlu0.b32.cont [10/16] 0.0, 128
      %2589 = vxpose.xlu0.b32.cont [11/16] 0.0, 128
      %2590 = vxpose.xlu0.b32.cont [12/16] 0.0, 128
      %2591 = vxpose.xlu0.b32.cont [13/16] 0.0, 128
      %2592 = vxpose.xlu0.b32.cont [14/16] 0.0, 128
      %2593 = vxpose.xlu0.b32.cont [15/16] 0.0, 128
      %2594 = vxpose.xlu0.b32.end [16/16] 0.0, 128
      %v2595 = vpop.trf.xlu0
      %v2596 = vpop.trf.xlu0
      %v2597 = vpop.trf.xlu0
      %v2598 = vpop.trf.xlu0
      %v2599 = vpop.trf.xlu0
      %v2600 = vpop.trf.xlu0
      %v2601 = vpop.trf.xlu0
      %v2602 = vpop.trf.xlu0
      %v2603 = vpop.trf.xlu0
      %v2604 = vpop.trf.xlu0
      %v2605 = vpop.trf.xlu0
      %v2606 = vpop.trf.xlu0
      %v2607 = vpop.trf.xlu0
      %v2608 = vpop.trf.xlu0
      %v2609 = vpop.trf.xlu0
      %v2610 = vpop.trf.xlu0
      %v2612 = vsel %vm565, %v2595, 0
      %v2615 = vsel %vm565, %v2596, 0
      %v2618 = vsel %vm565, %v2597, 0
      %v2621 = vsel %vm565, %v2598, 0
      %v2624 = vsel %vm565, %v2599, 0
      %v2627 = vsel %vm565, %v2600, 0
      %v2630 = vsel %vm565, %v2601, 0
      %v2633 = vsel %vm565, %v2602, 0
      %2635 = vmatprep.subr.mxu0 0.0
      %2636 = vmatpush1.msra.mxu0 %v2166
      %2637 = vmatprep.subr.mxu0 0.0
      %2638 = vmatpush1.msra.mxu0 %v2167
      %2639 = vmatprep.subr.mxu0 0.0
      %2640 = vmatpush1.msra.mxu0 0.0
      %2641 = vmatprep.subr.mxu0 0.0
      %2642 = vmatpush1.msra.mxu0 0.0
      %2643 = vmatprep.subr.mxu0 0.0
      %2644 = vmatpush1.msra.mxu0 0.0
      %2645 = vmatprep.subr.mxu0 0.0
      %2646 = vmatpush1.msra.mxu0 0.0
      %2647 = vmatprep.subr.mxu0 0.0
      %2648 = vmatpush1.msra.mxu0 0.0
      %2649 = vmatprep.subr.mxu0 0.0
      %2650 = vmatpush1.msra.mxu0 0.0
      %2651 = vmatprep.subr.mxu0 0.0
      %2652 = vmatpush1.msra.mxu0 0.0
      %2653 = vmatprep.subr.mxu0 0.0
      %2654 = vmatpush1.msra.mxu0 0.0
      %2655 = vmatprep.subr.mxu0 0.0
      %2656 = vmatpush1.msra.mxu0 0.0
      %2657 = vmatprep.subr.mxu0 0.0
      %2658 = vmatpush1.msra.mxu0 0.0
      %2659 = vmatprep.subr.mxu0 0.0
      %2660 = vmatpush1.msra.mxu0 0.0
      %2661 = vmatprep.subr.mxu0 0.0
      %2662 = vmatpush1.msra.mxu0 0.0
      %2663 = vmatprep.subr.mxu0 0.0
      %2664 = vmatpush1.msra.mxu0 0.0
      %2665 = vmatprep.subr.mxu0 0.0
      %2666 = vmatpush1.msra.mxu0 0.0
      %2667 = vmatprep.subr.mxu0 0.0
      %2668 = vmatpush1.msra.mxu0 0.0
      %2669 = vmatprep.subr.mxu0 0.0
      %2670 = vmatpush1.msra.mxu0 0.0
      %2671 = vmatprep.subr.mxu0 0.0
      %2672 = vmatpush1.msra.mxu0 0.0
      %2673 = vmatprep.subr.mxu0 0.0
      %2674 = vmatpush1.msra.mxu0 0.0
      %2675 = vmatprep.subr.mxu0 0.0
      %2676 = vmatpush1.msra.mxu0 0.0
      %2677 = vmatprep.subr.mxu0 0.0
      %2678 = vmatpush1.msra.mxu0 0.0
      %2679 = vmatprep.subr.mxu0 0.0
      %2680 = vmatpush1.msra.mxu0 0.0
      %2681 = vmatprep.subr.mxu0 0.0
      %2682 = vmatpush1.msra.mxu0 0.0
      %2683 = vmatprep.subr.mxu0 0.0
      %2684 = vmatpush1.msra.mxu0 0.0
      %2685 = vmatprep.subr.mxu0 0.0
      %2686 = vmatpush1.msra.mxu0 0.0
      %2687 = vmatprep.subr.mxu0 0.0
      %2688 = vmatpush1.msra.mxu0 0.0
      %2689 = vmatprep.subr.mxu0 0.0
      %2690 = vmatpush1.msra.mxu0 0.0
      %2691 = vmatprep.subr.mxu0 0.0
      %2692 = vmatpush1.msra.mxu0 0.0
      %2693 = vmatprep.subr.mxu0 0.0
      %2694 = vmatpush1.msra.mxu0 0.0
      %2695 = vmatprep.subr.mxu0 0.0
      %2696 = vmatpush1.msra.mxu0 0.0
      %2697 = vmatprep.subr.mxu0 0.0
      %2698 = vmatpush1.msra.mxu0 0.0
      %2699 = vmatprep.mubr.f32.mxu0 0.0
      %2700 = vmatmul.mubr.f32.gmra.mrb[0].mxu0 %v2612
      %v2701 = vpop.f32.mrb[0].mxu0
      %v2702 = vadd.f32 0.0, %v2701
      %v2703 = vpop.f32.mrb[0].mxu0
      %2704 = vmatprep.mubr.f32.mxu0 0.0
      %2705 = vmatmul.mubr.f32.gmra.mrb[0].mxu0 %v2615
      %v2706 = vpop.f32.mrb[0].mxu0
      %v2707 = vadd.f32 0.0, %v2706
      %v2708 = vpop.f32.mrb[0].mxu0
      %2709 = vmatprep.mubr.f32.mxu0 0.0
      %2710 = vmatmul.mubr.f32.gmra.mrb[0].mxu0 %v2618
      %v2711 = vpop.f32.mrb[0].mxu0
      %v2712 = vadd.f32 0.0, %v2711
      %v2713 = vpop.f32.mrb[0].mxu0
      %2714 = vmatprep.mubr.f32.mxu0 0.0
      %2715 = vmatmul.mubr.f32.gmra.mrb[0].mxu0 %v2621
      %v2716 = vpop.f32.mrb[0].mxu0
      %v2717 = vadd.f32 0.0, %v2716
      %v2718 = vpop.f32.mrb[0].mxu0
      %2719 = vmatprep.mubr.f32.mxu0 0.0
      %2720 = vmatmul.mubr.f32.gmra.mrb[0].mxu0 %v2624
      %v2721 = vpop.f32.mrb[0].mxu0
      %v2722 = vadd.f32 0.0, %v2721
      %v2723 = vpop.f32.mrb[0].mxu0
      %2724 = vmatprep.mubr.f32.mxu0 0.0
      %2725 = vmatmul.mubr.f32.gmra.mrb[0].mxu0 %v2627
      %v2726 = vpop.f32.mrb[0].mxu0
      %v2727 = vadd.f32 0.0, %v2726
      %v2728 = vpop.f32.mrb[0].mxu0
      %2729 = vmatprep.mubr.f32.mxu0 0.0
      %2730 = vmatmul.mubr.f32.gmra.mrb[0].mxu0 %v2630
      %v2731 = vpop.f32.mrb[0].mxu0
      %v2732 = vadd.f32 0.0, %v2731
      %v2733 = vpop.f32.mrb[0].mxu0
      %2734 = vmatprep.mubr.f32.mxu0 0.0
      %2735 = vmatmul.mubr.f32.gmra.mrb[0].mxu0 %v2633
      %v2736 = vpop.f32.mrb[0].mxu0
      %v2737 = vadd.f32 0.0, %v2736
      %v2738 = vpop.f32.mrb[0].mxu0
      %2739 = vdwg.mxu0
      %v2740 = vlaneseq
      %v2741 = vshrl.u32 %v2740, 7
      %v2742 = vsub.s32 7, %v2741
      %v2743 = vrot.slane %v2170, %v2742
      %v2744 = vmul.f32 %v2175, %v2743
      %v2745 = vmul.f32 %v2176, %v2743
      %v2746 = vmul.f32 %v2177, %v2743
      %v2747 = vmul.f32 %v2178, %v2743
      %v2748 = vmul.f32 %v2179, %v2743
      %v2749 = vmul.f32 %v2180, %v2743
      %v2750 = vmul.f32 %v2181, %v2743
      %v2751 = vmul.f32 %v2182, %v2743
      %v2752 = vmul.f32 %v2702, %v513
      %v2753 = vmul.f32 %v2707, %v514
      %v2754 = vmul.f32 %v2712, %v515
      %v2755 = vmul.f32 %v2717, %v516
      %v2756 = vmul.f32 %v2722, %v517
      %v2757 = vmul.f32 %v2727, %v518
      %v2758 = vmul.f32 %v2732, %v519
      %v2759 = vmul.f32 %v2737, %v520
      %v2760 = vadd.f32 %v2744, %v2752
      %v2761 = vadd.f32 %v2745, %v2753
      %v2762 = vadd.f32 %v2746, %v2754
      %v2763 = vadd.f32 %v2747, %v2755
      %v2764 = vadd.f32 %v2748, %v2756
      %v2765 = vadd.f32 %v2749, %v2757
      %v2766 = vadd.f32 %v2750, %v2758
      %v2767 = vadd.f32 %v2751, %v2759
      %2768 = vst.msk [vmem:[#allocation2] sm:$0xff] %vm724, %v2760
      %2769 = vst.msk [vmem:[#allocation2 + $0x8] sm:$0xff] %vm724, %v2761
      %2770 = vst.msk [vmem:[#allocation2 + $0x10] sm:$0xff] %vm724, %v2762
      %2771 = vst.msk [vmem:[#allocation2 + $0x18] sm:$0xff] %vm724, %v2763
      %2772 = vst.msk [vmem:[#allocation2 + $0x20] sm:$0xff] %vm724, %v2764
      %2773 = vst.msk [vmem:[#allocation2 + $0x28] sm:$0xff] %vm724, %v2765
      %2774 = vst.msk [vmem:[#allocation2 + $0x30] sm:$0xff] %vm724, %v2766
      %2775 = vst.msk [vmem:[#allocation2 + $0x38] sm:$0xff] %vm724, %v2767
      %v2776 = vld [vmem:[%s465 + $0x30] sm:$0xff]
      %v2777 = vld [vmem:[%s465 + $0x38] sm:$0xff]
      %v2778 = vld [vmem:[%s475 + $0x30] sm:$0xff]
      %v2779 = vld [vmem:[%s475 + $0x38] sm:$0xff]
      %v2780 = vld [vmem:[%s485 + $0x30] sm:$0xff]
      %v2781 = vld [vmem:[%s485 + $0x38] sm:$0xff]
      %v2782 = vld [vmem:[%s495 + $0x30] sm:$0xff]
      %v2783 = vld [vmem:[%s495 + $0x38] sm:$0xff]
      %v2784 = vmul.f32 %v2782, 1.442695
      %v2785 = vpow.pop %v2784
      %v2786 = vmul.f32 %v2783, 1.442695
      %v2787 = vpow.pop %v2786
      %v2788 = vmin.f32 %v2785, 7.7777777
      %v2789 = vmin.f32 %v2787, 7.7777777
      %2790 = vmatprep.subr.mxu0 0.0
      %2791 = vmatpush1.msra.mxu0 %v2788
      %2792 = vmatprep.subr.mxu0 0.0
      %2793 = vmatpush1.msra.mxu0 %v2789
      %2794 = vmatprep.subr.mxu0 0.0
      %2795 = vmatpush1.msra.mxu0 0.0
      %2796 = vmatprep.subr.mxu0 0.0
      %2797 = vmatpush1.msra.mxu0 0.0
      %2798 = vmatprep.subr.mxu0 0.0
      %2799 = vmatpush1.msra.mxu0 0.0
      %2800 = vmatprep.subr.mxu0 0.0
      %2801 = vmatpush1.msra.mxu0 0.0
      %2802 = vmatprep.subr.mxu0 0.0
      %2803 = vmatpush1.msra.mxu0 0.0
      %2804 = vmatprep.subr.mxu0 0.0
      %2805 = vmatpush1.msra.mxu0 0.0
      %2806 = vmatprep.subr.mxu0 0.0
      %2807 = vmatpush1.msra.mxu0 0.0
      %2808 = vmatprep.subr.mxu0 0.0
      %2809 = vmatpush1.msra.mxu0 0.0
      %2810 = vmatprep.subr.mxu0 0.0
      %2811 = vmatpush1.msra.mxu0 0.0
      %2812 = vmatprep.subr.mxu0 0.0
      %2813 = vmatpush1.msra.mxu0 0.0
      %2814 = vmatprep.subr.mxu0 0.0
      %2815 = vmatpush1.msra.mxu0 0.0
      %2816 = vmatprep.subr.mxu0 0.0
      %2817 = vmatpush1.msra.mxu0 0.0
      %2818 = vmatprep.subr.mxu0 0.0
      %2819 = vmatpush1.msra.mxu0 0.0
      %2820 = vmatprep.subr.mxu0 0.0
      %2821 = vmatpush1.msra.mxu0 0.0
      %2822 = vmatprep.subr.mxu0 0.0
      %2823 = vmatpush1.msra.mxu0 0.0
      %2824 = vmatprep.subr.mxu0 0.0
      %2825 = vmatpush1.msra.mxu0 0.0
      %2826 = vmatprep.subr.mxu0 0.0
      %2827 = vmatpush1.msra.mxu0 0.0
      %2828 = vmatprep.subr.mxu0 0.0
      %2829 = vmatpush1.msra.mxu0 0.0
      %2830 = vmatprep.subr.mxu0 0.0
      %2831 = vmatpush1.msra.mxu0 0.0
      %2832 = vmatprep.subr.mxu0 0.0
      %2833 = vmatpush1.msra.mxu0 0.0
      %2834 = vmatprep.subr.mxu0 0.0
      %2835 = vmatpush1.msra.mxu0 0.0
      %2836 = vmatprep.subr.mxu0 0.0
      %2837 = vmatpush1.msra.mxu0 0.0
      %2838 = vmatprep.subr.mxu0 0.0
      %2839 = vmatpush1.msra.mxu0 0.0
      %2840 = vmatprep.subr.mxu0 0.0
      %2841 = vmatpush1.msra.mxu0 0.0
      %2842 = vmatprep.subr.mxu0 0.0
      %2843 = vmatpush1.msra.mxu0 0.0
      %2844 = vmatprep.subr.mxu0 0.0
      %2845 = vmatpush1.msra.mxu0 0.0
      %2846 = vmatprep.subr.mxu0 0.0
      %2847 = vmatpush1.msra.mxu0 0.0
      %2848 = vmatprep.subr.mxu0 0.0
      %2849 = vmatpush1.msra.mxu0 0.0
      %2850 = vmatprep.subr.mxu0 0.0
      %2851 = vmatpush1.msra.mxu0 0.0
      %2852 = vmatprep.subr.mxu0 0.0
      %2853 = vmatpush1.msra.mxu0 0.0
      %2854 = vmatprep.mubr.f32.mxu0 0.0
      %2855 = vmatmul.mubr.f32.gmra.mrb[0].mxu0 %v567
      %v2856 = vpop.f32.mrb[0].mxu0
      %v2857 = vadd.f32 0.0, %v2856
      %v2858 = vpop.f32.mrb[0].mxu0
      %2859 = vmatprep.mubr.f32.mxu0 0.0
      %2860 = vmatmul.mubr.f32.gmra.mrb[0].mxu0 %v570
      %v2861 = vpop.f32.mrb[0].mxu0
      %v2862 = vadd.f32 0.0, %v2861
      %v2863 = vpop.f32.mrb[0].mxu0
      %2864 = vdwg.mxu0
      %v2865 = vsub.f32 %v2788, %v2857
      %v2866 = vsub.f32 %v2789, %v2862
      %v2867 = vmul.f32 %v2865, 1.442695
      %v2868 = vpow.pop %v2867
      %v2869 = vmul.f32 %v2866, 1.442695
      %v2870 = vpow.pop %v2869
      %v2871 = vlaneseq
      %v2872 = vshrl.u32 %v2871, 7
      %v2873 = vsub.s32 0, %v2872
      %v2874 = vrot.slane %v2862, %v2873
      %v2875 = vsub.f32 %v2857, %v2874
      %v2876 = vsub.f32 %v2862, %v2874
      %v2877 = vmul.f32 %v2875, 1.442695
      %v2878 = vpow.pop %v2877
      %v2879 = vmul.f32 %v2876, 1.442695
      %v2880 = vpow.pop %v2879
      %v2881 = vmul.f32 %v2776, %v2868
      %v2882 = vmul.f32 %v2777, %v2870
      %v2883 = vmul.f32 %v2862, 1.442695
      %v2884 = vpow.pop %v2883
      %v2885 = vlaneseq
      %v2886 = vshrl.u32 %v2885, 7
      %v2887 = vsub.s32 0, %v2886
      %v2888 = vrot.slane %v2884, %v2887
      %v2889 = vmul.f32 %v2881, %v2888
      %v2890 = vmul.f32 %v2882, %v2888
      %v2891 = vmul.f32 %v2778, %v2878
      %v2892 = vmul.f32 %v2779, %v2880
      %v2894 = vrot.slane %v2862, 7
      %v2896 = vsub.f32 %v2862, %v2894
      %v2897 = vmul.f32 %v2896, 1.442695
      %v2898 = vpow.pop %v2897
      %v2899 = vlaneseq
      %v2900 = vshrl.u32 %v2899, 7
      %v2901 = vsub.s32 0, %v2900
      %v2902 = vrot.slane %v2898, %v2901
      %v2903 = vmul.f32 %v2891, %v2902
      %v2904 = vmul.f32 %v2892, %v2902
      %v2905 = vsub.f32 0.0, %v2862
      %v2906 = vmul.f32 %v2905, 1.442695
      %v2907 = vpow.pop %v2906
      %v2908 = vmul.f32 %v2776, %v694
      %v2909 = vmul.f32 %v2777, %v694
      %v2910 = vmul.f32 %v2908, %v2778
      %v2911 = vmul.f32 %v2909, %v2779
      %v2912 = vld [vmem:[#allocation2] sm:$0xff]
      %v2913 = vld [vmem:[#allocation2 + $0x8] sm:$0xff]
      %v2914 = vld [vmem:[#allocation2 + $0x10] sm:$0xff]
      %v2915 = vld [vmem:[#allocation2 + $0x18] sm:$0xff]
      %v2916 = vld [vmem:[#allocation2 + $0x20] sm:$0xff]
      %v2917 = vld [vmem:[#allocation2 + $0x28] sm:$0xff]
      %v2918 = vld [vmem:[#allocation2 + $0x30] sm:$0xff]
      %v2919 = vld [vmem:[#allocation2 + $0x38] sm:$0xff]
      %v2920 = vmul.f32 %v2891, %v521
      %v2921 = vmul.f32 %v2892, %v522
      %v2922 = vmul.f32 %v2891, %v523
      %v2923 = vmul.f32 %v2892, %v524
      %v2924 = vmul.f32 %v2891, %v525
      %v2925 = vmul.f32 %v2892, %v526
      %v2926 = vmul.f32 %v2891, %v527
      %v2927 = vmul.f32 %v2892, %v528
      %v2928 = vmul.f32 %v2780, %v521
      %v2929 = vmul.f32 %v2781, %v522
      %v2930 = vmul.f32 %v2780, %v523
      %v2931 = vmul.f32 %v2781, %v524
      %v2932 = vmul.f32 %v2780, %v525
      %v2933 = vmul.f32 %v2781, %v526
      %v2934 = vmul.f32 %v2780, %v527
      %v2935 = vmul.f32 %v2781, %v528
      %v2937 = vsel %vm724, %v2889, 0
      %v2940 = vsel %vm724, %v2890, 0
      %v2943 = vsel %vm724, %v2920, 0
      %v2946 = vsel %vm724, %v2921, 0
      %v2949 = vsel %vm724, %v2922, 0
      %v2952 = vsel %vm724, %v2923, 0
      %v2955 = vsel %vm724, %v2924, 0
      %v2958 = vsel %vm724, %v2925, 0
      %v2961 = vsel %vm724, %v2926, 0
      %v2964 = vsel %vm724, %v2927, 0
      %2966 = vmatprep.subr.mxu0 0.0
      %2967 = vmatpush1.xpose.msra.mxu0 %v2943
      %2968 = vmatprep.subr.mxu0 0.0
      %2969 = vmatpush1.xpose.msra.mxu0 %v2946
      %2970 = vmatprep.subr.mxu0 0.0
      %2971 = vmatpush1.xpose.msra.mxu0 %v2949
      %2972 = vmatprep.subr.mxu0 0.0
      %2973 = vmatpush1.xpose.msra.mxu0 %v2952
      %2974 = vmatprep.subr.mxu0 0.0
      %2975 = vmatpush1.xpose.msra.mxu0 %v2955
      %2976 = vmatprep.subr.mxu0 0.0
      %2977 = vmatpush1.xpose.msra.mxu0 %v2958
      %2978 = vmatprep.subr.mxu0 0.0
      %2979 = vmatpush1.xpose.msra.mxu0 %v2961
      %2980 = vmatprep.subr.mxu0 0.0
      %2981 = vmatpush1.xpose.msra.mxu0 %v2964
      %2982 = vmatprep.subr.mxu0 0.0
      %2983 = vmatpush1.xpose.msra.mxu0 0.0
      %2984 = vmatprep.subr.mxu0 0.0
      %2985 = vmatpush1.xpose.msra.mxu0 0.0
      %2986 = vmatprep.subr.mxu0 0.0
      %2987 = vmatpush1.xpose.msra.mxu0 0.0
      %2988 = vmatprep.subr.mxu0 0.0
      %2989 = vmatpush1.xpose.msra.mxu0 0.0
      %2990 = vmatprep.subr.mxu0 0.0
      %2991 = vmatpush1.xpose.msra.mxu0 0.0
      %2992 = vmatprep.subr.mxu0 0.0
      %2993 = vmatpush1.xpose.msra.mxu0 0.0
      %2994 = vmatprep.subr.mxu0 0.0
      %2995 = vmatpush1.xpose.msra.mxu0 0.0
      %2996 = vmatprep.subr.mxu0 0.0
      %2997 = vmatpush1.xpose.msra.mxu0 0.0
      %2998 = vmatprep.subr.mxu0 0.0
      %2999 = vmatpush1.xpose.msra.mxu0 0.0
      %3000 = vmatprep.subr.mxu0 0.0
      %3001 = vmatpush1.xpose.msra.mxu0 0.0
      %3002 = vmatprep.subr.mxu0 0.0
      %3003 = vmatpush1.xpose.msra.mxu0 0.0
      %3004 = vmatprep.subr.mxu0 0.0
      %3005 = vmatpush1.xpose.msra.mxu0 0.0
      %3006 = vmatprep.subr.mxu0 0.0
      %3007 = vmatpush1.xpose.msra.mxu0 0.0
      %3008 = vmatprep.subr.mxu0 0.0
      %3009 = vmatpush1.xpose.msra.mxu0 0.0
      %3010 = vmatprep.subr.mxu0 0.0
      %3011 = vmatpush1.xpose.msra.mxu0 0.0
      %3012 = vmatprep.subr.mxu0 0.0
      %3013 = vmatpush1.xpose.msra.mxu0 0.0
      %3014 = vmatprep.subr.mxu0 0.0
      %3015 = vmatpush1.xpose.msra.mxu0 0.0
      %3016 = vmatprep.subr.mxu0 0.0
      %3017 = vmatpush1.xpose.msra.mxu0 0.0
      %3018 = vmatprep.subr.mxu0 0.0
      %3019 = vmatpush1.xpose.msra.mxu0 0.0
      %3020 = vmatprep.subr.mxu0 0.0
      %3021 = vmatpush1.xpose.msra.mxu0 0.0
      %3022 = vmatprep.subr.mxu0 0.0
      %3023 = vmatpush1.xpose.msra.mxu0 0.0
      %3024 = vmatprep.subr.mxu0 0.0
      %3025 = vmatpush1.xpose.msra.mxu0 0.0
      %3026 = vmatprep.subr.mxu0 0.0
      %3027 = vmatpush1.xpose.msra.mxu0 0.0
      %3028 = vmatprep.subr.mxu0 0.0
      %3029 = vmatpush1.xpose.msra.mxu0 0.0
      %3030 = vmatprep.mubr.f32.mxu0 0.0
      %3031 = vmatmul.mubr.f32.gmra.mrb[0].mxu0 %v2937
      %v3032 = vpop.f32.mrb[0].mxu0
      %v3033 = vadd.f32 0.0, %v3032
      %v3034 = vpop.f32.mrb[0].mxu0
      %3035 = vmatprep.mubr.f32.mxu0 0.0
      %3036 = vmatmul.mubr.f32.gmra.mrb[0].mxu0 %v2940
      %v3037 = vpop.f32.mrb[0].mxu0
      %v3038 = vadd.f32 0.0, %v3037
      %v3039 = vpop.f32.mrb[0].mxu0
      %3040 = vdwg.mxu0
      %v3041 = vsel %vm511, %v3033, 0.0
      %v3042 = vsel %vm512, %v3038, 0.0
      %v3044 = vsel %vm724, %v3041, 0
      %v3047 = vsel %vm724, %v3042, 0
      %3049 = vmatprep.subr.mxu0 0.0
      %3050 = vmatpush1.msra.mxu0 %v2928
      %3051 = vmatprep.subr.mxu0 0.0
      %3052 = vmatpush1.msra.mxu0 %v2929
      %3053 = vmatprep.subr.mxu0 0.0
      %3054 = vmatpush1.msra.mxu0 %v2930
      %3055 = vmatprep.subr.mxu0 0.0
      %3056 = vmatpush1.msra.mxu0 %v2931
      %3057 = vmatprep.subr.mxu0 0.0
      %3058 = vmatpush1.msra.mxu0 %v2932
      %3059 = vmatprep.subr.mxu0 0.0
      %3060 = vmatpush1.msra.mxu0 %v2933
      %3061 = vmatprep.subr.mxu0 0.0
      %3062 = vmatpush1.msra.mxu0 %v2934
      %3063 = vmatprep.subr.mxu0 0.0
      %3064 = vmatpush1.msra.mxu0 %v2935
      %3065 = vmatprep.subr.mxu0 0.0
      %3066 = vmatpush1.msra.mxu0 0.0
      %3067 = vmatprep.subr.mxu0 0.0
      %3068 = vmatpush1.msra.mxu0 0.0
      %3069 = vmatprep.subr.mxu0 0.0
      %3070 = vmatpush1.msra.mxu0 0.0
      %3071 = vmatprep.subr.mxu0 0.0
      %3072 = vmatpush1.msra.mxu0 0.0
      %3073 = vmatprep.subr.mxu0 0.0
      %3074 = vmatpush1.msra.mxu0 0.0
      %3075 = vmatprep.subr.mxu0 0.0
      %3076 = vmatpush1.msra.mxu0 0.0
      %3077 = vmatprep.subr.mxu0 0.0
      %3078 = vmatpush1.msra.mxu0 0.0
      %3079 = vmatprep.subr.mxu0 0.0
      %3080 = vmatpush1.msra.mxu0 0.0
      %3081 = vmatprep.subr.mxu0 0.0
      %3082 = vmatpush1.msra.mxu0 0.0
      %3083 = vmatprep.subr.mxu0 0.0
      %3084 = vmatpush1.msra.mxu0 0.0
      %3085 = vmatprep.subr.mxu0 0.0
      %3086 = vmatpush1.msra.mxu0 0.0
      %3087 = vmatprep.subr.mxu0 0.0
      %3088 = vmatpush1.msra.mxu0 0.0
      %3089 = vmatprep.subr.mxu0 0.0
      %3090 = vmatpush1.msra.mxu0 0.0
      %3091 = vmatprep.subr.mxu0 0.0
      %3092 = vmatpush1.msra.mxu0 0.0
      %3093 = vmatprep.subr.mxu0 0.0
      %3094 = vmatpush1.msra.mxu0 0.0
      %3095 = vmatprep.subr.mxu0 0.0
      %3096 = vmatpush1.msra.mxu0 0.0
      %3097 = vmatprep.subr.mxu0 0.0
      %3098 = vmatpush1.msra.mxu0 0.0
      %3099 = vmatprep.subr.mxu0 0.0
      %3100 = vmatpush1.msra.mxu0 0.0
      %3101 = vmatprep.subr.mxu0 0.0
      %3102 = vmatpush1.msra.mxu0 0.0
      %3103 = vmatprep.subr.mxu0 0.0
      %3104 = vmatpush1.msra.mxu0 0.0
      %3105 = vmatprep.subr.mxu0 0.0
      %3106 = vmatpush1.msra.mxu0 0.0
      %3107 = vmatprep.subr.mxu0 0.0
      %3108 = vmatpush1.msra.mxu0 0.0
      %3109 = vmatprep.subr.mxu0 0.0
      %3110 = vmatpush1.msra.mxu0 0.0
      %3111 = vmatprep.subr.mxu0 0.0
      %3112 = vmatpush1.msra.mxu0 0.0
      %3113 = vmatprep.mubr.f32.mxu0 0.0
      %3114 = vmatmul.mubr.f32.gmra.mrb[0].mxu0 %v3044
      %v3115 = vpop.f32.mrb[0].mxu0
      %v3116 = vadd.f32 0.0, %v3115
      %v3117 = vpop.f32.mrb[0].mxu0
      %3118 = vmatprep.mubr.f32.mxu0 0.0
      %3119 = vmatmul.mubr.f32.gmra.mrb[0].mxu0 %v3047
      %v3120 = vpop.f32.mrb[0].mxu0
      %v3121 = vadd.f32 0.0, %v3120
      %v3122 = vpop.f32.mrb[0].mxu0
      %3123 = vdwg.mxu0
      %v3125 = vsel %vm724, %v2881, 0
      %v3128 = vsel %vm724, %v2882, 0
      %v3131 = vsel %vm724, %v2912, 0
      %v3134 = vsel %vm724, %v2913, 0
      %v3137 = vsel %vm724, %v2914, 0
      %v3140 = vsel %vm724, %v2915, 0
      %v3143 = vsel %vm724, %v2916, 0
      %v3146 = vsel %vm724, %v2917, 0
      %v3149 = vsel %vm724, %v2918, 0
      %v3152 = vsel %vm724, %v2919, 0
      %3154 = vmatprep.subr.mxu0 0.0
      %3155 = vmatpush1.xpose.msra.mxu0 %v3131
      %3156 = vmatprep.subr.mxu0 0.0
      %3157 = vmatpush1.xpose.msra.mxu0 %v3134
      %3158 = vmatprep.subr.mxu0 0.0
      %3159 = vmatpush1.xpose.msra.mxu0 %v3137
      %3160 = vmatprep.subr.mxu0 0.0
      %3161 = vmatpush1.xpose.msra.mxu0 %v3140
      %3162 = vmatprep.subr.mxu0 0.0
      %3163 = vmatpush1.xpose.msra.mxu0 %v3143
      %3164 = vmatprep.subr.mxu0 0.0
      %3165 = vmatpush1.xpose.msra.mxu0 %v3146
      %3166 = vmatprep.subr.mxu0 0.0
      %3167 = vmatpush1.xpose.msra.mxu0 %v3149
      %3168 = vmatprep.subr.mxu0 0.0
      %3169 = vmatpush1.xpose.msra.mxu0 %v3152
      %3170 = vmatprep.subr.mxu0 0.0
      %3171 = vmatpush1.xpose.msra.mxu0 0.0
      %3172 = vmatprep.subr.mxu0 0.0
      %3173 = vmatpush1.xpose.msra.mxu0 0.0
      %3174 = vmatprep.subr.mxu0 0.0
      %3175 = vmatpush1.xpose.msra.mxu0 0.0
      %3176 = vmatprep.subr.mxu0 0.0
      %3177 = vmatpush1.xpose.msra.mxu0 0.0
      %3178 = vmatprep.subr.mxu0 0.0
      %3179 = vmatpush1.xpose.msra.mxu0 0.0
      %3180 = vmatprep.subr.mxu0 0.0
      %3181 = vmatpush1.xpose.msra.mxu0 0.0
      %3182 = vmatprep.subr.mxu0 0.0
      %3183 = vmatpush1.xpose.msra.mxu0 0.0
      %3184 = vmatprep.subr.mxu0 0.0
      %3185 = vmatpush1.xpose.msra.mxu0 0.0
      %3186 = vmatprep.subr.mxu0 0.0
      %3187 = vmatpush1.xpose.msra.mxu0 0.0
      %3188 = vmatprep.subr.mxu0 0.0
      %3189 = vmatpush1.xpose.msra.mxu0 0.0
      %3190 = vmatprep.subr.mxu0 0.0
      %3191 = vmatpush1.xpose.msra.mxu0 0.0
      %3192 = vmatprep.subr.mxu0 0.0
      %3193 = vmatpush1.xpose.msra.mxu0 0.0
      %3194 = vmatprep.subr.mxu0 0.0
      %3195 = vmatpush1.xpose.msra.mxu0 0.0
      %3196 = vmatprep.subr.mxu0 0.0
      %3197 = vmatpush1.xpose.msra.mxu0 0.0
      %3198 = vmatprep.subr.mxu0 0.0
      %3199 = vmatpush1.xpose.msra.mxu0 0.0
      %3200 = vmatprep.subr.mxu0 0.0
      %3201 = vmatpush1.xpose.msra.mxu0 0.0
      %3202 = vmatprep.subr.mxu0 0.0
      %3203 = vmatpush1.xpose.msra.mxu0 0.0
      %3204 = vmatprep.subr.mxu0 0.0
      %3205 = vmatpush1.xpose.msra.mxu0 0.0
      %3206 = vmatprep.subr.mxu0 0.0
      %3207 = vmatpush1.xpose.msra.mxu0 0.0
      %3208 = vmatprep.subr.mxu0 0.0
      %3209 = vmatpush1.xpose.msra.mxu0 0.0
      %3210 = vmatprep.subr.mxu0 0.0
      %3211 = vmatpush1.xpose.msra.mxu0 0.0
      %3212 = vmatprep.subr.mxu0 0.0
      %3213 = vmatpush1.xpose.msra.mxu0 0.0
      %3214 = vmatprep.subr.mxu0 0.0
      %3215 = vmatpush1.xpose.msra.mxu0 0.0
      %3216 = vmatprep.subr.mxu0 0.0
      %3217 = vmatpush1.xpose.msra.mxu0 0.0
      %3218 = vmatprep.mubr.f32.mxu0 0.0
      %3219 = vmatmul.mubr.f32.gmra.mrb[0].mxu0 %v3125
      %v3220 = vpop.f32.mrb[0].mxu0
      %v3221 = vadd.f32 %v3116, %v3220
      %v3222 = vpop.f32.mrb[0].mxu0
      %3223 = vmatprep.mubr.f32.mxu0 0.0
      %3224 = vmatmul.mubr.f32.gmra.mrb[0].mxu0 %v3128
      %v3225 = vpop.f32.mrb[0].mxu0
      %v3226 = vadd.f32 %v3121, %v3225
      %v3227 = vpop.f32.mrb[0].mxu0
      %3228 = vdwg.mxu0
      %v3230 = vsel %vm724, %v2910, 0
      %v3233 = vsel %vm724, %v2911, 0
      %3235 = vmatprep.subr.mxu0 0.0
      %3236 = vmatpush1.msra.mxu0 %v513
      %3237 = vmatprep.subr.mxu0 0.0
      %3238 = vmatpush1.msra.mxu0 %v514
      %3239 = vmatprep.subr.mxu0 0.0
      %3240 = vmatpush1.msra.mxu0 %v515
      %3241 = vmatprep.subr.mxu0 0.0
      %3242 = vmatpush1.msra.mxu0 %v516
      %3243 = vmatprep.subr.mxu0 0.0
      %3244 = vmatpush1.msra.mxu0 %v517
      %3245 = vmatprep.subr.mxu0 0.0
      %3246 = vmatpush1.msra.mxu0 %v518
      %3247 = vmatprep.subr.mxu0 0.0
      %3248 = vmatpush1.msra.mxu0 %v519
      %3249 = vmatprep.subr.mxu0 0.0
      %3250 = vmatpush1.msra.mxu0 %v520
      %3251 = vmatprep.subr.mxu0 0.0
      %3252 = vmatpush1.msra.mxu0 0.0
      %3253 = vmatprep.subr.mxu0 0.0
      %3254 = vmatpush1.msra.mxu0 0.0
      %3255 = vmatprep.subr.mxu0 0.0
      %3256 = vmatpush1.msra.mxu0 0.0
      %3257 = vmatprep.subr.mxu0 0.0
      %3258 = vmatpush1.msra.mxu0 0.0
      %3259 = vmatprep.subr.mxu0 0.0
      %3260 = vmatpush1.msra.mxu0 0.0
      %3261 = vmatprep.subr.mxu0 0.0
      %3262 = vmatpush1.msra.mxu0 0.0
      %3263 = vmatprep.subr.mxu0 0.0
      %3264 = vmatpush1.msra.mxu0 0.0
      %3265 = vmatprep.subr.mxu0 0.0
      %3266 = vmatpush1.msra.mxu0 0.0
      %3267 = vmatprep.subr.mxu0 0.0
      %3268 = vmatpush1.msra.mxu0 0.0
      %3269 = vmatprep.subr.mxu0 0.0
      %3270 = vmatpush1.msra.mxu0 0.0
      %3271 = vmatprep.subr.mxu0 0.0
      %3272 = vmatpush1.msra.mxu0 0.0
      %3273 = vmatprep.subr.mxu0 0.0
      %3274 = vmatpush1.msra.mxu0 0.0
      %3275 = vmatprep.subr.mxu0 0.0
      %3276 = vmatpush1.msra.mxu0 0.0
      %3277 = vmatprep.subr.mxu0 0.0
      %3278 = vmatpush1.msra.mxu0 0.0
      %3279 = vmatprep.subr.mxu0 0.0
      %3280 = vmatpush1.msra.mxu0 0.0
      %3281 = vmatprep.subr.mxu0 0.0
      %3282 = vmatpush1.msra.mxu0 0.0
      %3283 = vmatprep.subr.mxu0 0.0
      %3284 = vmatpush1.msra.mxu0 0.0
      %3285 = vmatprep.subr.mxu0 0.0
      %3286 = vmatpush1.msra.mxu0 0.0
      %3287 = vmatprep.subr.mxu0 0.0
      %3288 = vmatpush1.msra.mxu0 0.0
      %3289 = vmatprep.subr.mxu0 0.0
      %3290 = vmatpush1.msra.mxu0 0.0
      %3291 = vmatprep.subr.mxu0 0.0
      %3292 = vmatpush1.msra.mxu0 0.0
      %3293 = vmatprep.subr.mxu0 0.0
      %3294 = vmatpush1.msra.mxu0 0.0
      %3295 = vmatprep.subr.mxu0 0.0
      %3296 = vmatpush1.msra.mxu0 0.0
      %3297 = vmatprep.subr.mxu0 0.0
      %3298 = vmatpush1.msra.mxu0 0.0
      %3299 = vmatprep.mubr.f32.mxu0 0.0
      %3300 = vmatmul.mubr.f32.gmra.mrb[0].mxu0 %v3230
      %v3301 = vpop.f32.mrb[0].mxu0
      %v3302 = vadd.f32 0.0, %v3301
      %v3303 = vpop.f32.mrb[0].mxu0
      %3304 = vmatprep.mubr.f32.mxu0 0.0
      %3305 = vmatmul.mubr.f32.gmra.mrb[0].mxu0 %v3233
      %v3306 = vpop.f32.mrb[0].mxu0
      %v3307 = vadd.f32 0.0, %v3306
      %v3308 = vpop.f32.mrb[0].mxu0
      %3309 = vdwg.mxu0
      %v3310 = vmul.f32 %v3302, %v2780
      %v3311 = vmul.f32 %v3307, %v2781
      %v3312 = vadd.f32 %v3221, %v3310
      %v3313 = vadd.f32 %v3226, %v3311
      %3314 = vst.msk [vmem:[%s505 + $0x30] sm:$0xff] %vm724, %v3312
      %3315 = vst.msk [vmem:[%s505 + $0x38] sm:$0xff] %vm724, %v3313
      %3316 = vxpose.xlu0.b32.start [1/16] %v2780, 128
      %3317 = vxpose.xlu0.b32.cont [2/16] %v2781, 128
      %3318 = vxpose.xlu0.b32.cont [3/16] 0.0, 128
      %3319 = vxpose.xlu0.b32.cont [4/16] 0.0, 128
      %3320 = vxpose.xlu0.b32.cont [5/16] 0.0, 128
      %3321 = vxpose.xlu0.b32.cont [6/16] 0.0, 128
      %3322 = vxpose.xlu0.b32.cont [7/16] 0.0, 128
      %3323 = vxpose.xlu0.b32.cont [8/16] 0.0, 128
      %3324 = vxpose.xlu0.b32.cont [9/16] 0.0, 128
      %3325 = vxpose.xlu0.b32.cont [10/16] 0.0, 128
      %3326 = vxpose.xlu0.b32.cont [11/16] 0.0, 128
      %3327 = vxpose.xlu0.b32.cont [12/16] 0.0, 128
      %3328 = vxpose.xlu0.b32.cont [13/16] 0.0, 128
      %3329 = vxpose.xlu0.b32.cont [14/16] 0.0, 128
      %3330 = vxpose.xlu0.b32.cont [15/16] 0.0, 128
      %3331 = vxpose.xlu0.b32.end [16/16] 0.0, 128
      %v3332 = vpop.trf.xlu0
      %v3333 = vpop.trf.xlu0
      %v3334 = vpop.trf.xlu0
      %v3335 = vpop.trf.xlu0
      %v3336 = vpop.trf.xlu0
      %v3337 = vpop.trf.xlu0
      %v3338 = vpop.trf.xlu0
      %v3339 = vpop.trf.xlu0
      %v3340 = vpop.trf.xlu0
      %v3341 = vpop.trf.xlu0
      %v3342 = vpop.trf.xlu0
      %v3343 = vpop.trf.xlu0
      %v3344 = vpop.trf.xlu0
      %v3345 = vpop.trf.xlu0
      %v3346 = vpop.trf.xlu0
      %v3347 = vpop.trf.xlu0
      %v3349 = vsel %vm565, %v3332, 0
      %v3352 = vsel %vm565, %v3333, 0
      %v3355 = vsel %vm565, %v3334, 0
      %v3358 = vsel %vm565, %v3335, 0
      %v3361 = vsel %vm565, %v3336, 0
      %v3364 = vsel %vm565, %v3337, 0
      %v3367 = vsel %vm565, %v3338, 0
      %v3370 = vsel %vm565, %v3339, 0
      %3372 = vmatprep.subr.mxu0 0.0
      %3373 = vmatpush1.msra.mxu0 %v2903
      %3374 = vmatprep.subr.mxu0 0.0
      %3375 = vmatpush1.msra.mxu0 %v2904
      %3376 = vmatprep.subr.mxu0 0.0
      %3377 = vmatpush1.msra.mxu0 0.0
      %3378 = vmatprep.subr.mxu0 0.0
      %3379 = vmatpush1.msra.mxu0 0.0
      %3380 = vmatprep.subr.mxu0 0.0
      %3381 = vmatpush1.msra.mxu0 0.0
      %3382 = vmatprep.subr.mxu0 0.0
      %3383 = vmatpush1.msra.mxu0 0.0
      %3384 = vmatprep.subr.mxu0 0.0
      %3385 = vmatpush1.msra.mxu0 0.0
      %3386 = vmatprep.subr.mxu0 0.0
      %3387 = vmatpush1.msra.mxu0 0.0
      %3388 = vmatprep.subr.mxu0 0.0
      %3389 = vmatpush1.msra.mxu0 0.0
      %3390 = vmatprep.subr.mxu0 0.0
      %3391 = vmatpush1.msra.mxu0 0.0
      %3392 = vmatprep.subr.mxu0 0.0
      %3393 = vmatpush1.msra.mxu0 0.0
      %3394 = vmatprep.subr.mxu0 0.0
      %3395 = vmatpush1.msra.mxu0 0.0
      %3396 = vmatprep.subr.mxu0 0.0
      %3397 = vmatpush1.msra.mxu0 0.0
      %3398 = vmatprep.subr.mxu0 0.0
      %3399 = vmatpush1.msra.mxu0 0.0
      %3400 = vmatprep.subr.mxu0 0.0
      %3401 = vmatpush1.msra.mxu0 0.0
      %3402 = vmatprep.subr.mxu0 0.0
      %3403 = vmatpush1.msra.mxu0 0.0
      %3404 = vmatprep.subr.mxu0 0.0
      %3405 = vmatpush1.msra.mxu0 0.0
      %3406 = vmatprep.subr.mxu0 0.0
      %3407 = vmatpush1.msra.mxu0 0.0
      %3408 = vmatprep.subr.mxu0 0.0
      %3409 = vmatpush1.msra.mxu0 0.0
      %3410 = vmatprep.subr.mxu0 0.0
      %3411 = vmatpush1.msra.mxu0 0.0
      %3412 = vmatprep.subr.mxu0 0.0
      %3413 = vmatpush1.msra.mxu0 0.0
      %3414 = vmatprep.subr.mxu0 0.0
      %3415 = vmatpush1.msra.mxu0 0.0
      %3416 = vmatprep.subr.mxu0 0.0
      %3417 = vmatpush1.msra.mxu0 0.0
      %3418 = vmatprep.subr.mxu0 0.0
      %3419 = vmatpush1.msra.mxu0 0.0
      %3420 = vmatprep.subr.mxu0 0.0
      %3421 = vmatpush1.msra.mxu0 0.0
      %3422 = vmatprep.subr.mxu0 0.0
      %3423 = vmatpush1.msra.mxu0 0.0
      %3424 = vmatprep.subr.mxu0 0.0
      %3425 = vmatpush1.msra.mxu0 0.0
      %3426 = vmatprep.subr.mxu0 0.0
      %3427 = vmatpush1.msra.mxu0 0.0
      %3428 = vmatprep.subr.mxu0 0.0
      %3429 = vmatpush1.msra.mxu0 0.0
      %3430 = vmatprep.subr.mxu0 0.0
      %3431 = vmatpush1.msra.mxu0 0.0
      %3432 = vmatprep.subr.mxu0 0.0
      %3433 = vmatpush1.msra.mxu0 0.0
      %3434 = vmatprep.subr.mxu0 0.0
      %3435 = vmatpush1.msra.mxu0 0.0
      %3436 = vmatprep.mubr.f32.mxu0 0.0
      %3437 = vmatmul.mubr.f32.gmra.mrb[0].mxu0 %v3349
      %v3438 = vpop.f32.mrb[0].mxu0
      %v3439 = vadd.f32 0.0, %v3438
      %v3440 = vpop.f32.mrb[0].mxu0
      %3441 = vmatprep.mubr.f32.mxu0 0.0
      %3442 = vmatmul.mubr.f32.gmra.mrb[0].mxu0 %v3352
      %v3443 = vpop.f32.mrb[0].mxu0
      %v3444 = vadd.f32 0.0, %v3443
      %v3445 = vpop.f32.mrb[0].mxu0
      %3446 = vmatprep.mubr.f32.mxu0 0.0
      %3447 = vmatmul.mubr.f32.gmra.mrb[0].mxu0 %v3355
      %v3448 = vpop.f32.mrb[0].mxu0
      %v3449 = vadd.f32 0.0, %v3448
      %v3450 = vpop.f32.mrb[0].mxu0
      %3451 = vmatprep.mubr.f32.mxu0 0.0
      %3452 = vmatmul.mubr.f32.gmra.mrb[0].mxu0 %v3358
      %v3453 = vpop.f32.mrb[0].mxu0
      %v3454 = vadd.f32 0.0, %v3453
      %v3455 = vpop.f32.mrb[0].mxu0
      %3456 = vmatprep.mubr.f32.mxu0 0.0
      %3457 = vmatmul.mubr.f32.gmra.mrb[0].mxu0 %v3361
      %v3458 = vpop.f32.mrb[0].mxu0
      %v3459 = vadd.f32 0.0, %v3458
      %v3460 = vpop.f32.mrb[0].mxu0
      %3461 = vmatprep.mubr.f32.mxu0 0.0
      %3462 = vmatmul.mubr.f32.gmra.mrb[0].mxu0 %v3364
      %v3463 = vpop.f32.mrb[0].mxu0
      %v3464 = vadd.f32 0.0, %v3463
      %v3465 = vpop.f32.mrb[0].mxu0
      %3466 = vmatprep.mubr.f32.mxu0 0.0
      %3467 = vmatmul.mubr.f32.gmra.mrb[0].mxu0 %v3367
      %v3468 = vpop.f32.mrb[0].mxu0
      %v3469 = vadd.f32 0.0, %v3468
      %v3470 = vpop.f32.mrb[0].mxu0
      %3471 = vmatprep.mubr.f32.mxu0 0.0
      %3472 = vmatmul.mubr.f32.gmra.mrb[0].mxu0 %v3370
      %v3473 = vpop.f32.mrb[0].mxu0
      %v3474 = vadd.f32 0.0, %v3473
      %v3475 = vpop.f32.mrb[0].mxu0
      %3476 = vdwg.mxu0
      %v3477 = vlaneseq
      %v3478 = vshrl.u32 %v3477, 7
      %v3479 = vsub.s32 7, %v3478
      %v3480 = vrot.slane %v2907, %v3479
      %v3481 = vmul.f32 %v2912, %v3480
      %v3482 = vmul.f32 %v2913, %v3480
      %v3483 = vmul.f32 %v2914, %v3480
      %v3484 = vmul.f32 %v2915, %v3480
      %v3485 = vmul.f32 %v2916, %v3480
      %v3486 = vmul.f32 %v2917, %v3480
      %v3487 = vmul.f32 %v2918, %v3480
      %v3488 = vmul.f32 %v2919, %v3480
      %v3489 = vmul.f32 %v3439, %v513
      %v3490 = vmul.f32 %v3444, %v514
      %v3491 = vmul.f32 %v3449, %v515
      %v3492 = vmul.f32 %v3454, %v516
      %v3493 = vmul.f32 %v3459, %v517
      %v3494 = vmul.f32 %v3464, %v518
      %v3495 = vmul.f32 %v3469, %v519
      %v3496 = vmul.f32 %v3474, %v520
      %v3497 = vadd.f32 %v3481, %v3489
      %v3498 = vadd.f32 %v3482, %v3490
      %v3499 = vadd.f32 %v3483, %v3491
      %v3500 = vadd.f32 %v3484, %v3492
      %v3501 = vadd.f32 %v3485, %v3493
      %v3502 = vadd.f32 %v3486, %v3494
      %v3503 = vadd.f32 %v3487, %v3495
      %v3504 = vadd.f32 %v3488, %v3496
      %3505 = vst.msk [vmem:[#allocation2] sm:$0xff] %vm724, %v3497
      %3506 = vst.msk [vmem:[#allocation2 + $0x8] sm:$0xff] %vm724, %v3498
      %3507 = vst.msk [vmem:[#allocation2 + $0x10] sm:$0xff] %vm724, %v3499
      %3508 = vst.msk [vmem:[#allocation2 + $0x18] sm:$0xff] %vm724, %v3500
      %3509 = vst.msk [vmem:[#allocation2 + $0x20] sm:$0xff] %vm724, %v3501
      %3510 = vst.msk [vmem:[#allocation2 + $0x28] sm:$0xff] %vm724, %v3502
      %3511 = vst.msk [vmem:[#allocation2 + $0x30] sm:$0xff] %vm724, %v3503
      %3512 = vst.msk [vmem:[#allocation2 + $0x38] sm:$0xff] %vm724, %v3504
      %s3513 = smul.u32 8, %s26
      %p3514 = scmp.lt.s32.totalorder %s25, 1
      %s3515 = scalar_select %p3514, %s25, 1
      %p3516 = scmp.lt.s32.totalorder %s3513, 15
      %s3517 = scalar_select %p3516, %s3513, 15
      %s3518 = smul.addr %s3515, 16
      %s3519 = sadd.s32 %s3517, %s3518
      %s3520 = smul.addr %s3519, 8
      %s3521 = scalar_lea.vmem %s10, %s3520
      // Predicated region
      $region65: #{_lambda_.1} parent=59 // pred_check
        %p3522 = pneg %p291
      $region66: #{_lambda_.1} parent=59 // pred_check_branch
        %3524 = sbr.rel (%p3522) target = $region68
      $region67: #{_lambda_.1} parent=59 // pred_region
        %s3525 = smul.u32 8, %s26
      $region68: #{_lambda_.1} parent=59 // pred_fallthru
        _
    $region60: #{_lambda_.1} parent=5 // pred_fallthru
      _
    %p3526 = scmp.le.s32.totalorder 2, %s16
    // Predicated region
    $region69: #{_lambda_.1} parent=5 // pred_check
      %p3527 = pneg %p3526
    $region70: #{_lambda_.1} parent=5 // pred_check_branch
      %3529 = sbr.rel (%p3527) target = $region72
    $region71: #{_lambda_.1} parent=5 // pred_region
      %s3530 = ssub.s32 %s16, 2
      // Predicated region
      $region73: #{_lambda_.1} parent=71 // pred_check
        %p3531 = pneg %p297
      $region74: #{_lambda_.1} parent=71 // pred_check_branch
        %3533 = sbr.rel (%p3531) target = $region76
      $region75: #{_lambda_.1} parent=71 // pred_region
        %s3534 = smul.u32 8, %s28
        %p3535 = scmp.lt.s32.totalorder %s27, 1
        %s3536 = scalar_select %p3535, %s27, 1
        %p3537 = scmp.lt.s32.totalorder %s3534, 15
        %s3538 = scalar_select %p3537, %s3534, 15
        %s3539 = smul.addr %s3536, 16
        %s3540 = sadd.s32 %s3538, %s3539
        %s3541 = smul.addr %s3540, 8
        %s3542 = scalar_lea.vmem %s10, %s3541
      $region76: #{_lambda_.1} parent=71 // pred_fallthru
        _
    $region72: #{_lambda_.1} parent=5 // pred_fallthru
      _
  $region6: #{_lambda_.1} parent=0 // loop_footer
    %s20 = sadd.s32 1, %s16
  $region7: #{_lambda_.1} parent=0 // loop_footer_branch
    %15 = sbr.rel target = $region3
  $region8: #{_lambda_.1} parent=0 // loop_exit
    _

</llo_original>
